<compile_context>
chip_gen: v6e
topology: v6e:2x2x1
jax: 0.10.0
libtpu: 0.0.40
codegen_flags: <defaults>
</compile_context>

<pallas_src>
import math

import jax
import jax.numpy as jnp
import numpy as np
from jax.experimental import pallas as pl
from jax.experimental.pallas import tpu as pltpu


def _make_kernel(n_heads, head_dim, d_model, d_ff):
    H, hd, D = n_heads, head_dim, d_model
    inv_scale = 1.0 / math.sqrt(hd)
    bf16 = jnp.bfloat16

    def mm(a, w_bf16, bias):
        # lane-dense 2D matmul, bf16 inputs, f32 accumulation, f32 bias add
        return jnp.dot(a.astype(bf16), w_bf16,
                       preferred_element_type=jnp.float32) + bias

    def split_heads(x):                      # (L, H*hd) -> (H, L, hd)
        L = x.shape[0]
        return jnp.transpose(x.reshape(L, H, hd), (1, 0, 2))

    def merge_heads(x):                      # (H, L, w) -> (L, H*w)
        L, w = x.shape[1], x.shape[2]
        return jnp.transpose(x, (1, 0, 2)).reshape(L, H * w)

    def layer_norm(v, g, b):
        mu = jnp.mean(v, axis=-1, keepdims=True)
        var = jnp.mean(jnp.square(v - mu), axis=-1, keepdims=True)
        return (v - mu) * jax.lax.rsqrt(var + 1e-5) * g + b

    def attend(Qh, Kh, Vh, mask, attn_ref):
        # Qh:(H,Tq,hd)  Kh/Vh:(H,Tk,hd) bf16 ; mask broadcastable to (H,Tq,Tk)
        e = jnp.einsum('hqd,hkd->hqk', Qh, Kh,
                       preferred_element_type=jnp.float32) * inv_scale
        e = jnp.where(mask == 0.0, -10000.0, e)        # matches masked_fill
        m = jnp.max(e, axis=-1, keepdims=True)
        p = jnp.exp(e - m)
        a = p / jnp.sum(p, axis=-1, keepdims=True)     # exact probabilities
        attn_ref[0] = merge_heads(a)                   # lane-dense (Tq, H*Tk)
        ctx = jnp.einsum('hqk,hkd->hqd', a.astype(bf16), Vh,
                         preferred_element_type=jnp.float32)
        return merge_heads(ctx)                        # (Tq, D) f32

    def kernel(trg_ref, enc_ref, tmask_ref, smask_ref,
               wqkv_s_ref, wo_s_ref, wq_c_ref, wkv_c_ref, wo_c_ref,
               w1_ref, w2_ref, bvec_ref,
               out_ref, sattn_ref, eattn_ref):
        x = trg_ref[0]                     # (T, D) f32
        enc = enc_ref[0]                   # (S, D) f32
        tmask = tmask_ref[0]               # (T, T) 0/1 f32
        smask = smask_ref[0]               # (1, S) 0/1 f32

        # ---------------- self attention: fused lane-dense QKV ----------------
        qkv = mm(x, wqkv_s_ref[...], bvec_ref[0:1, 0:3 * D])          # (T, 3D)
        Qh = split_heads(qkv[:, 0:D].astype(bf16))
        Kh = split_heads(qkv[:, D:2 * D].astype(bf16))
        Vh = split_heads(qkv[:, 2 * D:3 * D].astype(bf16))
        ctx = attend(Qh, Kh, Vh, tmask, sattn_ref)
        sa = mm(ctx, wo_s_ref[...], bvec_ref[3:4, 0:D])                # (T, D)
        x1 = layer_norm(x + sa, bvec_ref[7:8, 0:D], bvec_ref[8:9, 0:D])

        # ---------------- encoder (cross) attention ---------------------------
        q = mm(x1, wq_c_ref[...], bvec_ref[1:2, 0:D])                  # (T, D)
        kv = mm(enc, wkv_c_ref[...], bvec_ref[2:3, 0:2 * D])           # (S, 2D)
        Qh = split_heads(q.astype(bf16))
        Kh = split_heads(kv[:, 0:D].astype(bf16))
        Vh = split_heads(kv[:, D:2 * D].astype(bf16))
        ctx = attend(Qh, Kh, Vh, smask, eattn_ref)
        ea = mm(ctx, wo_c_ref[...], bvec_ref[4:5, 0:D])
        x2 = layer_norm(x1 + ea, bvec_ref[9:10, 0:D], bvec_ref[10:11, 0:D])

        # ---------------- positionwise feed-forward ---------------------------
        h1 = jnp.maximum(mm(x2, w1_ref[...], bvec_ref[5:6, 0:d_ff]), 0.0)
        ff = mm(h1, w2_ref[...], bvec_ref[6:7, 0:D])
        x3 = layer_norm(x2 + ff, bvec_ref[11:12, 0:D], bvec_ref[12:13, 0:D])

        out_ref[0] = x3
        # TODO(synk): dropout layers run as identity (inference mode, no RNG).

    return kernel


def decoder_layer(trg, enc_src, trg_mask, src_mask, params, n_heads):
    (sa_wq, sa_bq, sa_wk, sa_bk, sa_wv, sa_bv, sa_wo, sa_bo,
     ea_wq, ea_bq, ea_wk, ea_bk, ea_wv, ea_bv, ea_wo, ea_bo,
     ln1_g, ln1_b, ln2_g, ln2_b, ln3_g, ln3_b,
     ff_w1, ff_b1, ff_w2, ff_b2) = params

    B, T, D = trg.shape
    S = enc_src.shape[1]
    H = n_heads
    hd = D // H
    d_ff = ff_w1.shape[1]

    # ---- exact-shape bf16 weight arrays (no zero padding anywhere) ----------
    w_qkv_s = jnp.concatenate([sa_wq, sa_wk, sa_wv], axis=1).astype(jnp.bfloat16)
    w_o_s = sa_wo.astype(jnp.bfloat16)
    w_q_c = ea_wq.astype(jnp.bfloat16)
    w_kv_c = jnp.concatenate([ea_wk, ea_wv], axis=1).astype(jnp.bfloat16)
    w_o_c = ea_wo.astype(jnp.bfloat16)
    w1 = ff_w1.astype(jnp.bfloat16)            # (D, d_ff)
    w2 = ff_w2.astype(jnp.bfloat16)            # (d_ff, D)

    # ---- small f32 vectors (biases + LayerNorm params) in one packed slab ---
    W = max(3 * D, d_ff)

    def row(v):
        v = jnp.reshape(v, (-1,))
        return jnp.pad(v, (0, W - v.shape[0]))

    b_vec = jnp.stack([
        row(jnp.concatenate([sa_bq.reshape(-1), sa_bk.reshape(-1),
                             sa_bv.reshape(-1)])),                 # 0: self QKV
        row(ea_bq),                                                # 1: cross Q
        row(jnp.concatenate([ea_bk.reshape(-1), ea_bv.reshape(-1)])),  # 2
        row(sa_bo),                                                # 3
        row(ea_bo),                                                # 4
        row(ff_b1),                                                # 5
        row(ff_b2),                                                # 6
        row(ln1_g), row(ln1_b),                                    # 7, 8
        row(ln2_g), row(ln2_b),                                    # 9, 10
        row(ln3_g), row(ln3_b),                                    # 11, 12
    ]).astype(jnp.float32)

    # ---- masks: keep 0/1 floats, squeeze the broadcast head dim --------------
    tmask = trg_mask.reshape(B, T, T).astype(jnp.float32)
    smask = src_mask.reshape(B, 1, S).astype(jnp.float32)

    def batched(shape):
        nd = len(shape)
        return pl.BlockSpec((1,) + tuple(shape[1:]),
                            lambda b, _nd=nd: (b,) + (0,) * (_nd - 1))

    def const(arr):
        nd = arr.ndim
        return pl.BlockSpec(arr.shape, lambda b, _nd=nd: (0,) * _nd)

    in_arrays = [trg, enc_src, tmask, smask,
                 w_qkv_s, w_o_s, w_q_c, w_kv_c, w_o_c, w1, w2, b_vec]
    in_specs = [batched(trg.shape), batched(enc_src.shape),
                batched(tmask.shape), batched(smask.shape),
                const(w_qkv_s), const(w_o_s), const(w_q_c), const(w_kv_c),
                const(w_o_c), const(w1), const(w2), const(b_vec)]

    # lane-dense attention-prob outputs: (B, T, H*Tk); unfolded below
    out_shape = (
        jax.ShapeDtypeStruct((B, T, D), jnp.float32),
        jax.ShapeDtypeStruct((B, T, H * T), jnp.float32),
        jax.ShapeDtypeStruct((B, T, H * S), jnp.float32),
    )
    out_specs = (batched((B, T, D)),
                 batched((B, T, H * T)),
                 batched((B, T, H * S)))

    kernel = _make_kernel(H, hd, D, d_ff)
    out, sa_dense, ea_dense = pl.pallas_call(
        kernel,
        out_shape=out_shape,
        grid_spec=pltpu.PrefetchScalarGridSpec(
            num_scalar_prefetch=0,
            grid=(B,),
            in_specs=in_specs,
            out_specs=out_specs,
        ),
        compiler_params=pltpu.CompilerParams(
            dimension_semantics=("parallel",)),
    )(*in_arrays)

    # layout plumbing outside the kernel: (B,T,H*Tk) -> (B,H,T,Tk)
    self_attn = jnp.transpose(sa_dense.reshape(B, T, H, T), (0, 2, 1, 3))
    enc_attn = jnp.transpose(ea_dense.reshape(B, T, H, S), (0, 2, 1, 3))
    return out, self_attn, enc_attn


# ------------------------- pure-JAX reference -------------------------
def _ref_mha(q, kv, wq, bq, wk, bk, wv, bv, wo, bo, mask, n_heads):
    B, Tq, D = q.shape
    Tk = kv.shape[1]
    hdim = D // n_heads
    Q = q @ wq + bq[0]
    K = kv @ wk + bk[0]
    V = kv @ wv + bv[0]
    Qh = Q.reshape(B, Tq, n_heads, hdim).transpose(0, 2, 1, 3)
    Kh = K.reshape(B, Tk, n_heads, hdim).transpose(0, 2, 1, 3)
    Vh = V.reshape(B, Tk, n_heads, hdim).transpose(0, 2, 1, 3)
    e = (Qh @ Kh.transpose(0, 1, 3, 2)) / math.sqrt(hdim)
    e = jnp.where(mask == 0.0, -10000.0, e)
    a = jax.nn.softmax(e, axis=-1)
    ctx = (a @ Vh).transpose(0, 2, 1, 3).reshape(B, Tq, D)
    return ctx @ wo + bo[0], a


def _ref_ln(x, g, b):
    mu = jnp.mean(x, axis=-1, keepdims=True)
    var = jnp.mean((x - mu) ** 2, axis=-1, keepdims=True)
    return (x - mu) * jax.lax.rsqrt(var + 1e-5) * g[0] + b[0]


def decoder_layer_ref(trg, enc_src, trg_mask, src_mask, params, n_heads):
    (sa_wq, sa_bq, sa_wk, sa_bk, sa_wv, sa_bv, sa_wo, sa_bo,
     ea_wq, ea_bq, ea_wk, ea_bk, ea_wv, ea_bv, ea_wo, ea_bo,
     ln1_g, ln1_b, ln2_g, ln2_b, ln3_g, ln3_b,
     ff_w1, ff_b1, ff_w2, ff_b2) = params
    sa, sa_a = _ref_mha(trg, trg, sa_wq, sa_bq, sa_wk, sa_bk, sa_wv, sa_bv,
                        sa_wo, sa_bo, trg_mask, n_heads)
    x1 = _ref_ln(trg + sa, ln1_g, ln1_b)
    ea, ea_a = _ref_mha(x1, enc_src, ea_wq, ea_bq, ea_wk, ea_bk, ea_wv, ea_bv,
                        ea_wo, ea_bo, src_mask, n_heads)
    x2 = _ref_ln(x1 + ea, ln2_g, ln2_b)
    ff = jnp.maximum(x2 @ ff_w1 + ff_b1[0], 0.0) @ ff_w2 + ff_b2[0]
    x3 = _ref_ln(x2 + ff, ln3_g, ln3_b)
    return x3, sa_a, ea_a


if __name__ == "__main__":
    B, T, S = 2, 8, 12
    d_model, n_heads, d_ff = 32, 4, 64

    key = jax.random.PRNGKey(0)
    ks = jax.random.split(key, 40)
    ki = iter(ks)

    def w(shape, scale=0.05):
        return (scale * jax.random.normal(next(ki), shape)).astype(jnp.float32)

    # Parameters (weights already transposed to (in, out); 1-D params as (1, N)).
    def attn_params():
        return [w((d_model, d_model)), w((1, d_model)),   # Wq, bq
                w((d_model, d_model)), w((1, d_model)),   # Wk, bk
                w((d_model, d_model)), w((1, d_model)),   # Wv, bv
                w((d_model, d_model)), w((1, d_model))]   # Wo, bo

    params = []
    params += attn_params()                               # self-attention
    params += attn_params()                               # encoder-attention
    for _ in range(3):                                    # 3 layer norms
        params += [(1.0 + 0.1 * jax.random.normal(next(ki), (1, d_model))).astype(jnp.float32),
                   (0.01 * jax.random.normal(next(ki), (1, d_model))).astype(jnp.float32)]
    params += [w((d_model, d_ff)), w((1, d_ff)),          # fc_1
               w((d_ff, d_model)), w((1, d_model))]       # fc_2
    params = tuple(params)

    trg = jax.random.normal(next(ki), (B, T, d_model), dtype=jnp.float32)
    enc_src = jax.random.normal(next(ki), (B, S, d_model), dtype=jnp.float32)

    # causal target mask [B,1,T,T]; source padding mask [B,1,1,S]
    trg_mask = jnp.broadcast_to(jnp.tril(jnp.ones((T, T), jnp.float32)),
                                (B, 1, T, T)).astype(jnp.float32)
    src_mask = jnp.ones((B, 1, 1, S), jnp.float32).at[1, 0, 0, S - 2:].set(0.0)

    out, self_attn, enc_attn = decoder_layer(trg, enc_src, trg_mask, src_mask,
                                             params, n_heads)
    jax.block_until_ready((out, self_attn, enc_attn))

    ref_out, ref_sa, ref_ea = decoder_layer_ref(trg, enc_src, trg_mask, src_mask,
                                                params, n_heads)
    # bf16 matmuls with f32 accumulation -> slightly loosened tolerances.
    np.testing.assert_allclose(np.asarray(out), np.asarray(ref_out),
                               atol=3e-2, rtol=3e-2)
    np.testing.assert_allclose(np.asarray(self_attn), np.asarray(ref_sa),
                               atol=1e-2, rtol=5e-2)
    np.testing.assert_allclose(np.asarray(enc_attn), np.asarray(ref_ea),
                               atol=1e-2, rtol=5e-2)

    print("KERNEL_OK")
</pallas_src>

<mosaic_0001>
module attributes {stable_mosaic.version = 11 : i64} {
  func.func @kernel(%arg0: i32, %arg1: memref<1x8x32xf32, #tpu.memory_space<vmem>>, %arg2: memref<1x12x32xf32, #tpu.memory_space<vmem>>, %arg3: memref<1x8x8xf32, #tpu.memory_space<vmem>>, %arg4: memref<1x1x12xf32, #tpu.memory_space<vmem>>, %arg5: memref<32x96xbf16, #tpu.memory_space<vmem>>, %arg6: memref<32x32xbf16, #tpu.memory_space<vmem>>, %arg7: memref<32x32xbf16, #tpu.memory_space<vmem>>, %arg8: memref<32x64xbf16, #tpu.memory_space<vmem>>, %arg9: memref<32x32xbf16, #tpu.memory_space<vmem>>, %arg10: memref<32x64xbf16, #tpu.memory_space<vmem>>, %arg11: memref<64x32xbf16, #tpu.memory_space<vmem>>, %arg12: memref<13x96xf32, #tpu.memory_space<vmem>>, %arg13: memref<1x8x32xf32, #tpu.memory_space<vmem>>, %arg14: memref<1x8x32xf32, #tpu.memory_space<vmem>>, %arg15: memref<1x8x48xf32, #tpu.memory_space<vmem>>) attributes {dimension_semantics = [#tpu.dimension_semantics<parallel>], iteration_bounds = array<i64: 2>, scalar_prefetch = 0 : i64, scratch_operands = 0 : i64, tpu.core_type = #tpu.core_type<tc>, window_params = [{transform_indices = @transform_0, window_bounds = array<i64: 1, 8, 32>}, {transform_indices = @transform_1, window_bounds = array<i64: 1, 12, 32>}, {transform_indices = @transform_2, window_bounds = array<i64: 1, 8, 8>}, {transform_indices = @transform_3, window_bounds = array<i64: 1, 1, 12>}, {pipeline_mode = #tpu.pipeline_mode<synchronous>, transform_indices = @transform_4, window_bounds = array<i64: 32, 96>}, {pipeline_mode = #tpu.pipeline_mode<synchronous>, transform_indices = @transform_5, window_bounds = array<i64: 32, 32>}, {pipeline_mode = #tpu.pipeline_mode<synchronous>, transform_indices = @transform_6, window_bounds = array<i64: 32, 32>}, {pipeline_mode = #tpu.pipeline_mode<synchronous>, transform_indices = @transform_7, window_bounds = array<i64: 32, 64>}, {pipeline_mode = #tpu.pipeline_mode<synchronous>, transform_indices = @transform_8, window_bounds = array<i64: 32, 32>}, {pipeline_mode = #tpu.pipeline_mode<synchronous>, transform_indices = @transform_9, window_bounds = array<i64: 32, 64>}, {pipeline_mode = #tpu.pipeline_mode<synchronous>, transform_indices = @transform_10, window_bounds = array<i64: 64, 32>}, {pipeline_mode = #tpu.pipeline_mode<synchronous>, transform_indices = @transform_11, window_bounds = array<i64: 13, 96>}, {transform_indices = @transform_12, window_bounds = array<i64: 1, 8, 32>}, {transform_indices = @transform_13, window_bounds = array<i64: 1, 8, 32>}, {transform_indices = @transform_14, window_bounds = array<i64: 1, 8, 48>}]} {
    %c0 = arith.constant 0 : index
    %c0_0 = arith.constant 0 : index
    %c0_1 = arith.constant 0 : index
    %0 = vector.load %arg1[%c0, %c0_0, %c0_1] : memref<1x8x32xf32, #tpu.memory_space<vmem>>, vector<1x8x32xf32>
    %1 = vector.shape_cast %0 : vector<1x8x32xf32> to vector<8x32xf32>
    %c0_2 = arith.constant 0 : index
    %c0_3 = arith.constant 0 : index
    %c0_4 = arith.constant 0 : index
    %2 = vector.load %arg2[%c0_2, %c0_3, %c0_4] : memref<1x12x32xf32, #tpu.memory_space<vmem>>, vector<1x12x32xf32>
    %3 = vector.shape_cast %2 : vector<1x12x32xf32> to vector<12x32xf32>
    %c0_5 = arith.constant 0 : index
    %c0_6 = arith.constant 0 : index
    %c0_7 = arith.constant 0 : index
    %4 = vector.load %arg3[%c0_5, %c0_6, %c0_7] : memref<1x8x8xf32, #tpu.memory_space<vmem>>, vector<1x8x8xf32>
    %5 = vector.shape_cast %4 : vector<1x8x8xf32> to vector<8x8xf32>
    %c0_8 = arith.constant 0 : index
    %c0_9 = arith.constant 0 : index
    %c0_10 = arith.constant 0 : index
    %6 = vector.load %arg4[%c0_8, %c0_9, %c0_10] : memref<1x1x12xf32, #tpu.memory_space<vmem>>, vector<1x1x12xf32>
    %7 = vector.shape_cast %6 : vector<1x1x12xf32> to vector<1x12xf32>
    %c0_11 = arith.constant 0 : index
    %c0_12 = arith.constant 0 : index
    %8 = vector.load %arg5[%c0_11, %c0_12] : memref<32x96xbf16, #tpu.memory_space<vmem>>, vector<32x96xbf16>
    %c0_13 = arith.constant 0 : index
    %c0_14 = arith.constant 0 : index
    %9 = vector.load %arg12[%c0_13, %c0_14] : memref<13x96xf32, #tpu.memory_space<vmem>>, vector<1x96xf32>
    %10 = arith.truncf %1 : vector<8x32xf32> to vector<8x32xbf16>
    %cst = arith.constant dense<0.000000e+00> : vector<8x96xf32>
    %11 = tpu.matmul %10, %8, %cst {dimension_numbers = #tpu.dot_dimension_numbers<[1], [0], [0], [1], [0, 0, 1, 1], [], []>} : vector<8x32xbf16>, vector<32x96xbf16>, vector<8x96xf32> -> vector<8x96xf32>
    %12 = vector.broadcast %9 : vector<1x96xf32> to vector<8x96xf32>
    %13 = arith.addf %11, %12 : vector<8x96xf32>
    %14 = vector.extract_strided_slice %13 {offsets = [0, 0], sizes = [8, 32], strides = [1, 1]} : vector<8x96xf32> to vector<8x32xf32>
    %15 = arith.truncf %14 : vector<8x32xf32> to vector<8x32xbf16>
    %16 = vector.shape_cast %15 : vector<8x32xbf16> to vector<8x4x8xbf16>
    %17 = tpu.transpose %16, [1, 0, 2] : vector<8x4x8xbf16> -> vector<4x8x8xbf16>
    %18 = vector.extract_strided_slice %13 {offsets = [0, 32], sizes = [8, 32], strides = [1, 1]} : vector<8x96xf32> to vector<8x32xf32>
    %19 = arith.truncf %18 : vector<8x32xf32> to vector<8x32xbf16>
    %20 = vector.shape_cast %19 : vector<8x32xbf16> to vector<8x4x8xbf16>
    %21 = tpu.transpose %20, [1, 0, 2] : vector<8x4x8xbf16> -> vector<4x8x8xbf16>
    %22 = vector.extract_strided_slice %13 {offsets = [0, 64], sizes = [8, 32], strides = [1, 1]} : vector<8x96xf32> to vector<8x32xf32>
    %23 = arith.truncf %22 : vector<8x32xf32> to vector<8x32xbf16>
    %24 = vector.shape_cast %23 : vector<8x32xbf16> to vector<8x4x8xbf16>
    %25 = tpu.transpose %24, [1, 0, 2] : vector<8x4x8xbf16> -> vector<4x8x8xbf16>
    "tpu.trace_start"() <{level = 10 : i32, message = "hqd,hkd->hqk"}> : () -> ()
    %cst_15 = arith.constant dense<0.000000e+00> : vector<4x8x8xf32>
    %26 = tpu.matmul %17, %21, %cst_15 {dimension_numbers = #tpu.dot_dimension_numbers<[2], [2], [1], [1], [0, 0, 0, 1, 1, 1], [0], [0]>} : vector<4x8x8xbf16>, vector<4x8x8xbf16>, vector<4x8x8xf32> -> vector<4x8x8xf32>
    "tpu.trace_stop"() : () -> ()
    %cst_16 = arith.constant 0.353553385 : f32
    %27 = vector.broadcast %cst_16 : f32 to vector<4x8x8xf32>
    %28 = arith.mulf %26, %27 : vector<4x8x8xf32>
    %cst_17 = arith.constant 0.000000e+00 : f32
    %29 = vector.broadcast %cst_17 : f32 to vector<8x8xf32>
    %30 = arith.cmpf oeq, %5, %29 : vector<8x8xf32>
    %cst_18 = arith.constant -1.000000e+04 : f32
    %31 = vector.shape_cast %30 : vector<8x8xi1> to vector<1x8x8xi1>
    %32 = vector.broadcast %31 : vector<1x8x8xi1> to vector<4x8x8xi1>
    %33 = vector.broadcast %cst_18 : f32 to vector<4x8x8xf32>
    %34 = arith.select %32, %33, %28 : vector<4x8x8xi1>, vector<4x8x8xf32>
    %cst_19 = arith.constant dense<0xFF800000> : vector<4x8xf32>
    %35 = vector.multi_reduction <maximumf>, %34, %cst_19 [2] : vector<4x8x8xf32> to vector<4x8xf32>
    %36 = vector.shape_cast %35 : vector<4x8xf32> to vector<4x8x1xf32>
    %37 = vector.broadcast %36 : vector<4x8x1xf32> to vector<4x8x8xf32>
    %38 = arith.subf %34, %37 : vector<4x8x8xf32>
    %39 = math.exp %38 : vector<4x8x8xf32>
    %cst_20 = arith.constant dense<0.000000e+00> : vector<4x8xf32>
    %40 = vector.multi_reduction <add>, %39, %cst_20 [2] : vector<4x8x8xf32> to vector<4x8xf32>
    %41 = vector.shape_cast %40 : vector<4x8xf32> to vector<4x8x1xf32>
    %42 = vector.broadcast %41 : vector<4x8x1xf32> to vector<4x8x8xf32>
    %43 = arith.divf %39, %42 : vector<4x8x8xf32>
    %44 = tpu.transpose %43, [1, 0, 2] : vector<4x8x8xf32> -> vector<8x4x8xf32>
    %45 = vector.shape_cast %44 : vector<8x4x8xf32> to vector<8x32xf32>
    %c0_21 = arith.constant 0 : index
    %c0_22 = arith.constant 0 : index
    %c0_23 = arith.constant 0 : index
    %46 = vector.load %arg14[%c0_21, %c0_22, %c0_23] : memref<1x8x32xf32, #tpu.memory_space<vmem>>, vector<1x8x32xf32>
    %47 = vector.shape_cast %46 : vector<1x8x32xf32> to vector<8x32xf32>
    %48 = vector.shape_cast %45 : vector<8x32xf32> to vector<1x8x32xf32>
    tpu.vector_store %arg14[%c0_21, %c0_22, %c0_23], %48 {strides = array<i32>} : memref<1x8x32xf32, #tpu.memory_space<vmem>>, vector<1x8x32xf32>,
    %49 = arith.truncf %43 : vector<4x8x8xf32> to vector<4x8x8xbf16>
    "tpu.trace_start"() <{level = 10 : i32, message = "hqk,hkd->hqd"}> : () -> ()
    %cst_24 = arith.constant dense<0.000000e+00> : vector<4x8x8xf32>
    %50 = tpu.matmul %49, %25, %cst_24 {dimension_numbers = #tpu.dot_dimension_numbers<[2], [1], [1], [2], [0, 0, 0, 1, 1, 2], [0], [0]>} : vector<4x8x8xbf16>, vector<4x8x8xbf16>, vector<4x8x8xf32> -> vector<4x8x8xf32>
    "tpu.trace_stop"() : () -> ()
    %51 = tpu.transpose %50, [1, 0, 2] : vector<4x8x8xf32> -> vector<8x4x8xf32>
    %52 = vector.shape_cast %51 : vector<8x4x8xf32> to vector<8x32xf32>
    %c0_25 = arith.constant 0 : index
    %c0_26 = arith.constant 0 : index
    %53 = vector.load %arg6[%c0_25, %c0_26] : memref<32x32xbf16, #tpu.memory_space<vmem>>, vector<32x32xbf16>
    %c3 = arith.constant 3 : index
    %c0_27 = arith.constant 0 : index
    %54 = vector.load %arg12[%c3, %c0_27] : memref<13x96xf32, #tpu.memory_space<vmem>>, vector<1x32xf32>
    %55 = arith.truncf %52 : vector<8x32xf32> to vector<8x32xbf16>
    %cst_28 = arith.constant dense<0.000000e+00> : vector<8x32xf32>
    %56 = tpu.matmul %55, %53, %cst_28 {dimension_numbers = #tpu.dot_dimension_numbers<[1], [0], [0], [1], [0, 0, 1, 1], [], []>} : vector<8x32xbf16>, vector<32x32xbf16>, vector<8x32xf32> -> vector<8x32xf32>
    %57 = vector.broadcast %54 : vector<1x32xf32> to vector<8x32xf32>
    %58 = arith.addf %56, %57 : vector<8x32xf32>
    %59 = arith.addf %1, %58 : vector<8x32xf32>
    %c7 = arith.constant 7 : index
    %c0_29 = arith.constant 0 : index
    %60 = vector.load %arg12[%c7, %c0_29] : memref<13x96xf32, #tpu.memory_space<vmem>>, vector<1x32xf32>
    %c8 = arith.constant 8 : index
    %c0_30 = arith.constant 0 : index
    %61 = vector.load %arg12[%c8, %c0_30] : memref<13x96xf32, #tpu.memory_space<vmem>>, vector<1x32xf32>
    %cst_31 = arith.constant dense<0.000000e+00> : vector<8xf32>
    %62 = vector.multi_reduction <add>, %59, %cst_31 [1] : vector<8x32xf32> to vector<8xf32>
    %63 = vector.shape_cast %62 : vector<8xf32> to vector<8x1xf32>
    %cst_32 = arith.constant 3.200000e+01 : f32
    %64 = vector.broadcast %cst_32 : f32 to vector<8x1xf32>
    %65 = arith.divf %63, %64 : vector<8x1xf32>
    %66 = vector.broadcast %65 : vector<8x1xf32> to vector<8x32xf32>
    %67 = arith.subf %59, %66 : vector<8x32xf32>
    %68 = arith.mulf %67, %67 : vector<8x32xf32>
    %cst_33 = arith.constant dense<0.000000e+00> : vector<8xf32>
    %69 = vector.multi_reduction <add>, %68, %cst_33 [1] : vector<8x32xf32> to vector<8xf32>
    %70 = vector.shape_cast %69 : vector<8xf32> to vector<8x1xf32>
    %cst_34 = arith.constant 3.200000e+01 : f32
    %71 = vector.broadcast %cst_34 : f32 to vector<8x1xf32>
    %72 = arith.divf %70, %71 : vector<8x1xf32>
    %73 = vector.broadcast %65 : vector<8x1xf32> to vector<8x32xf32>
    %74 = arith.subf %59, %73 : vector<8x32xf32>
    %cst_35 = arith.constant 9.99999974E-6 : f32
    %75 = vector.broadcast %cst_35 : f32 to vector<8x1xf32>
    %76 = arith.addf %72, %75 : vector<8x1xf32>
    %77 = math.rsqrt %76 : vector<8x1xf32>
    %78 = vector.broadcast %77 : vector<8x1xf32> to vector<8x32xf32>
    %79 = arith.mulf %74, %78 : vector<8x32xf32>
    %80 = vector.broadcast %60 : vector<1x32xf32> to vector<8x32xf32>
    %81 = arith.mulf %79, %80 : vector<8x32xf32>
    %82 = vector.broadcast %61 : vector<1x32xf32> to vector<8x32xf32>
    %83 = arith.addf %81, %82 : vector<8x32xf32>
    %c0_36 = arith.constant 0 : index
    %c0_37 = arith.constant 0 : index
    %84 = vector.load %arg7[%c0_36, %c0_37] : memref<32x32xbf16, #tpu.memory_space<vmem>>, vector<32x32xbf16>
    %c1 = arith.constant 1 : index
    %c0_38 = arith.constant 0 : index
    %85 = vector.load %arg12[%c1, %c0_38] : memref<13x96xf32, #tpu.memory_space<vmem>>, vector<1x32xf32>
    %86 = arith.truncf %83 : vector<8x32xf32> to vector<8x32xbf16>
    %cst_39 = arith.constant dense<0.000000e+00> : vector<8x32xf32>
    %87 = tpu.matmul %86, %84, %cst_39 {dimension_numbers = #tpu.dot_dimension_numbers<[1], [0], [0], [1], [0, 0, 1, 1], [], []>} : vector<8x32xbf16>, vector<32x32xbf16>, vector<8x32xf32> -> vector<8x32xf32>
    %88 = vector.broadcast %85 : vector<1x32xf32> to vector<8x32xf32>
    %89 = arith.addf %87, %88 : vector<8x32xf32>
    %c0_40 = arith.constant 0 : index
    %c0_41 = arith.constant 0 : index
    %90 = vector.load %arg8[%c0_40, %c0_41] : memref<32x64xbf16, #tpu.memory_space<vmem>>, vector<32x64xbf16>
    %c2 = arith.constant 2 : index
    %c0_42 = arith.constant 0 : index
    %91 = vector.load %arg12[%c2, %c0_42] : memref<13x96xf32, #tpu.memory_space<vmem>>, vector<1x64xf32>
    %92 = arith.truncf %3 : vector<12x32xf32> to vector<12x32xbf16>
    %cst_43 = arith.constant dense<0.000000e+00> : vector<12x64xf32>
    %93 = tpu.matmul %92, %90, %cst_43 {dimension_numbers = #tpu.dot_dimension_numbers<[1], [0], [0], [1], [0, 0, 1, 1], [], []>} : vector<12x32xbf16>, vector<32x64xbf16>, vector<12x64xf32> -> vector<12x64xf32>
    %94 = vector.broadcast %91 : vector<1x64xf32> to vector<12x64xf32>
    %95 = arith.addf %93, %94 : vector<12x64xf32>
    %96 = arith.truncf %89 : vector<8x32xf32> to vector<8x32xbf16>
    %97 = vector.shape_cast %96 : vector<8x32xbf16> to vector<8x4x8xbf16>
    %98 = tpu.transpose %97, [1, 0, 2] : vector<8x4x8xbf16> -> vector<4x8x8xbf16>
    %99 = vector.extract_strided_slice %95 {offsets = [0, 0], sizes = [12, 32], strides = [1, 1]} : vector<12x64xf32> to vector<12x32xf32>
    %100 = arith.truncf %99 : vector<12x32xf32> to vector<12x32xbf16>
    %101 = vector.shape_cast %100 : vector<12x32xbf16> to vector<12x4x8xbf16>
    %102 = tpu.transpose %101, [1, 0, 2] : vector<12x4x8xbf16> -> vector<4x12x8xbf16>
    %103 = vector.extract_strided_slice %95 {offsets = [0, 32], sizes = [12, 32], strides = [1, 1]} : vector<12x64xf32> to vector<12x32xf32>
    %104 = arith.truncf %103 : vector<12x32xf32> to vector<12x32xbf16>
    %105 = vector.shape_cast %104 : vector<12x32xbf16> to vector<12x4x8xbf16>
    %106 = tpu.transpose %105, [1, 0, 2] : vector<12x4x8xbf16> -> vector<4x12x8xbf16>
    "tpu.trace_start"() <{level = 10 : i32, message = "hqd,hkd->hqk"}> : () -> ()
    %cst_44 = arith.constant dense<0.000000e+00> : vector<4x8x12xf32>
    %107 = tpu.matmul %98, %102, %cst_44 {dimension_numbers = #tpu.dot_dimension_numbers<[2], [2], [1], [1], [0, 0, 0, 1, 1, 1], [0], [0]>} : vector<4x8x8xbf16>, vector<4x12x8xbf16>, vector<4x8x12xf32> -> vector<4x8x12xf32>
    "tpu.trace_stop"() : () -> ()
    %cst_45 = arith.constant 0.353553385 : f32
    %108 = vector.broadcast %cst_45 : f32 to vector<4x8x12xf32>
    %109 = arith.mulf %107, %108 : vector<4x8x12xf32>
    %cst_46 = arith.constant 0.000000e+00 : f32
    %110 = vector.broadcast %cst_46 : f32 to vector<1x12xf32>
    %111 = arith.cmpf oeq, %7, %110 : vector<1x12xf32>
    %cst_47 = arith.constant -1.000000e+04 : f32
    %112 = vector.shape_cast %111 : vector<1x12xi1> to vector<1x1x12xi1>
    %113 = vector.broadcast %112 : vector<1x1x12xi1> to vector<4x8x12xi1>
    %114 = vector.broadcast %cst_47 : f32 to vector<4x8x12xf32>
    %115 = arith.select %113, %114, %109 : vector<4x8x12xi1>, vector<4x8x12xf32>
    %cst_48 = arith.constant dense<0xFF800000> : vector<4x8xf32>
    %116 = vector.multi_reduction <maximumf>, %115, %cst_48 [2] : vector<4x8x12xf32> to vector<4x8xf32>
    %117 = vector.shape_cast %116 : vector<4x8xf32> to vector<4x8x1xf32>
    %118 = vector.broadcast %117 : vector<4x8x1xf32> to vector<4x8x12xf32>
    %119 = arith.subf %115, %118 : vector<4x8x12xf32>
    %120 = math.exp %119 : vector<4x8x12xf32>
    %cst_49 = arith.constant dense<0.000000e+00> : vector<4x8xf32>
    %121 = vector.multi_reduction <add>, %120, %cst_49 [2] : vector<4x8x12xf32> to vector<4x8xf32>
    %122 = vector.shape_cast %121 : vector<4x8xf32> to vector<4x8x1xf32>
    %123 = vector.broadcast %122 : vector<4x8x1xf32> to vector<4x8x12xf32>
    %124 = arith.divf %120, %123 : vector<4x8x12xf32>
    %125 = tpu.transpose %124, [1, 0, 2] : vector<4x8x12xf32> -> vector<8x4x12xf32>
    %126 = vector.shape_cast %125 : vector<8x4x12xf32> to vector<8x48xf32>
    %c0_50 = arith.constant 0 : index
    %c0_51 = arith.constant 0 : index
    %c0_52 = arith.constant 0 : index
    %127 = vector.load %arg15[%c0_50, %c0_51, %c0_52] : memref<1x8x48xf32, #tpu.memory_space<vmem>>, vector<1x8x48xf32>
    %128 = vector.shape_cast %127 : vector<1x8x48xf32> to vector<8x48xf32>
    %129 = vector.shape_cast %126 : vector<8x48xf32> to vector<1x8x48xf32>
    tpu.vector_store %arg15[%c0_50, %c0_51, %c0_52], %129 {strides = array<i32>} : memref<1x8x48xf32, #tpu.memory_space<vmem>>, vector<1x8x48xf32>,
    %130 = arith.truncf %124 : vector<4x8x12xf32> to vector<4x8x12xbf16>
    "tpu.trace_start"() <{level = 10 : i32, message = "hqk,hkd->hqd"}> : () -> ()
    %cst_53 = arith.constant dense<0.000000e+00> : vector<4x8x8xf32>
    %131 = tpu.matmul %130, %106, %cst_53 {dimension_numbers = #tpu.dot_dimension_numbers<[2], [1], [1], [2], [0, 0, 0, 1, 1, 2], [0], [0]>} : vector<4x8x12xbf16>, vector<4x12x8xbf16>, vector<4x8x8xf32> -> vector<4x8x8xf32>
    "tpu.trace_stop"() : () -> ()
    %132 = tpu.transpose %131, [1, 0, 2] : vector<4x8x8xf32> -> vector<8x4x8xf32>
    %133 = vector.shape_cast %132 : vector<8x4x8xf32> to vector<8x32xf32>
    %c0_54 = arith.constant 0 : index
    %c0_55 = arith.constant 0 : index
    %134 = vector.load %arg9[%c0_54, %c0_55] : memref<32x32xbf16, #tpu.memory_space<vmem>>, vector<32x32xbf16>
    %c4 = arith.constant 4 : index
    %c0_56 = arith.constant 0 : index
    %135 = vector.load %arg12[%c4, %c0_56] : memref<13x96xf32, #tpu.memory_space<vmem>>, vector<1x32xf32>
    %136 = arith.truncf %133 : vector<8x32xf32> to vector<8x32xbf16>
    %cst_57 = arith.constant dense<0.000000e+00> : vector<8x32xf32>
    %137 = tpu.matmul %136, %134, %cst_57 {dimension_numbers = #tpu.dot_dimension_numbers<[1], [0], [0], [1], [0, 0, 1, 1], [], []>} : vector<8x32xbf16>, vector<32x32xbf16>, vector<8x32xf32> -> vector<8x32xf32>
    %138 = vector.broadcast %135 : vector<1x32xf32> to vector<8x32xf32>
    %139 = arith.addf %137, %138 : vector<8x32xf32>
    %140 = arith.addf %83, %139 : vector<8x32xf32>
    %c9 = arith.constant 9 : index
    %c0_58 = arith.constant 0 : index
    %141 = vector.load %arg12[%c9, %c0_58] : memref<13x96xf32, #tpu.memory_space<vmem>>, vector<1x32xf32>
    %c10 = arith.constant 10 : index
    %c0_59 = arith.constant 0 : index
    %142 = vector.load %arg12[%c10, %c0_59] : memref<13x96xf32, #tpu.memory_space<vmem>>, vector<1x32xf32>
    %cst_60 = arith.constant dense<0.000000e+00> : vector<8xf32>
    %143 = vector.multi_reduction <add>, %140, %cst_60 [1] : vector<8x32xf32> to vector<8xf32>
    %144 = vector.shape_cast %143 : vector<8xf32> to vector<8x1xf32>
    %cst_61 = arith.constant 3.200000e+01 : f32
    %145 = vector.broadcast %cst_61 : f32 to vector<8x1xf32>
    %146 = arith.divf %144, %145 : vector<8x1xf32>
    %147 = vector.broadcast %146 : vector<8x1xf32> to vector<8x32xf32>
    %148 = arith.subf %140, %147 : vector<8x32xf32>
    %149 = arith.mulf %148, %148 : vector<8x32xf32>
    %cst_62 = arith.constant dense<0.000000e+00> : vector<8xf32>
    %150 = vector.multi_reduction <add>, %149, %cst_62 [1] : vector<8x32xf32> to vector<8xf32>
    %151 = vector.shape_cast %150 : vector<8xf32> to vector<8x1xf32>
    %cst_63 = arith.constant 3.200000e+01 : f32
    %152 = vector.broadcast %cst_63 : f32 to vector<8x1xf32>
    %153 = arith.divf %151, %152 : vector<8x1xf32>
    %154 = vector.broadcast %146 : vector<8x1xf32> to vector<8x32xf32>
    %155 = arith.subf %140, %154 : vector<8x32xf32>
    %cst_64 = arith.constant 9.99999974E-6 : f32
    %156 = vector.broadcast %cst_64 : f32 to vector<8x1xf32>
    %157 = arith.addf %153, %156 : vector<8x1xf32>
    %158 = math.rsqrt %157 : vector<8x1xf32>
    %159 = vector.broadcast %158 : vector<8x1xf32> to vector<8x32xf32>
    %160 = arith.mulf %155, %159 : vector<8x32xf32>
    %161 = vector.broadcast %141 : vector<1x32xf32> to vector<8x32xf32>
    %162 = arith.mulf %160, %161 : vector<8x32xf32>
    %163 = vector.broadcast %142 : vector<1x32xf32> to vector<8x32xf32>
    %164 = arith.addf %162, %163 : vector<8x32xf32>
    %c0_65 = arith.constant 0 : index
    %c0_66 = arith.constant 0 : index
    %165 = vector.load %arg10[%c0_65, %c0_66] : memref<32x64xbf16, #tpu.memory_space<vmem>>, vector<32x64xbf16>
    %c5 = arith.constant 5 : index
    %c0_67 = arith.constant 0 : index
    %166 = vector.load %arg12[%c5, %c0_67] : memref<13x96xf32, #tpu.memory_space<vmem>>, vector<1x64xf32>
    %167 = arith.truncf %164 : vector<8x32xf32> to vector<8x32xbf16>
    %cst_68 = arith.constant dense<0.000000e+00> : vector<8x64xf32>
    %168 = tpu.matmul %167, %165, %cst_68 {dimension_numbers = #tpu.dot_dimension_numbers<[1], [0], [0], [1], [0, 0, 1, 1], [], []>} : vector<8x32xbf16>, vector<32x64xbf16>, vector<8x64xf32> -> vector<8x64xf32>
    %169 = vector.broadcast %166 : vector<1x64xf32> to vector<8x64xf32>
    %170 = arith.addf %168, %169 : vector<8x64xf32>
    %cst_69 = arith.constant 0.000000e+00 : f32
    %171 = vector.broadcast %cst_69 : f32 to vector<8x64xf32>
    %172 = arith.maximumf %170, %171 : vector<8x64xf32>
    %c0_70 = arith.constant 0 : index
    %c0_71 = arith.constant 0 : index
    %173 = vector.load %arg11[%c0_70, %c0_71] : memref<64x32xbf16, #tpu.memory_space<vmem>>, vector<64x32xbf16>
    %c6 = arith.constant 6 : index
    %c0_72 = arith.constant 0 : index
    %174 = vector.load %arg12[%c6, %c0_72] : memref<13x96xf32, #tpu.memory_space<vmem>>, vector<1x32xf32>
    %175 = arith.truncf %172 : vector<8x64xf32> to vector<8x64xbf16>
    %cst_73 = arith.constant dense<0.000000e+00> : vector<8x32xf32>
    %176 = tpu.matmul %175, %173, %cst_73 {dimension_numbers = #tpu.dot_dimension_numbers<[1], [0], [0], [1], [0, 0, 1, 1], [], []>} : vector<8x64xbf16>, vector<64x32xbf16>, vector<8x32xf32> -> vector<8x32xf32>
    %177 = vector.broadcast %174 : vector<1x32xf32> to vector<8x32xf32>
    %178 = arith.addf %176, %177 : vector<8x32xf32>
    %179 = arith.addf %164, %178 : vector<8x32xf32>
    %c11 = arith.constant 11 : index
    %c0_74 = arith.constant 0 : index
    %180 = vector.load %arg12[%c11, %c0_74] : memref<13x96xf32, #tpu.memory_space<vmem>>, vector<1x32xf32>
    %c12 = arith.constant 12 : index
    %c0_75 = arith.constant 0 : index
    %181 = vector.load %arg12[%c12, %c0_75] : memref<13x96xf32, #tpu.memory_space<vmem>>, vector<1x32xf32>
    %cst_76 = arith.constant dense<0.000000e+00> : vector<8xf32>
    %182 = vector.multi_reduction <add>, %179, %cst_76 [1] : vector<8x32xf32> to vector<8xf32>
    %183 = vector.shape_cast %182 : vector<8xf32> to vector<8x1xf32>
    %cst_77 = arith.constant 3.200000e+01 : f32
    %184 = vector.broadcast %cst_77 : f32 to vector<8x1xf32>
    %185 = arith.divf %183, %184 : vector<8x1xf32>
    %186 = vector.broadcast %185 : vector<8x1xf32> to vector<8x32xf32>
    %187 = arith.subf %179, %186 : vector<8x32xf32>
    %188 = arith.mulf %187, %187 : vector<8x32xf32>
    %cst_78 = arith.constant dense<0.000000e+00> : vector<8xf32>
    %189 = vector.multi_reduction <add>, %188, %cst_78 [1] : vector<8x32xf32> to vector<8xf32>
    %190 = vector.shape_cast %189 : vector<8xf32> to vector<8x1xf32>
    %cst_79 = arith.constant 3.200000e+01 : f32
    %191 = vector.broadcast %cst_79 : f32 to vector<8x1xf32>
    %192 = arith.divf %190, %191 : vector<8x1xf32>
    %193 = vector.broadcast %185 : vector<8x1xf32> to vector<8x32xf32>
    %194 = arith.subf %179, %193 : vector<8x32xf32>
    %cst_80 = arith.constant 9.99999974E-6 : f32
    %195 = vector.broadcast %cst_80 : f32 to vector<8x1xf32>
    %196 = arith.addf %192, %195 : vector<8x1xf32>
    %197 = math.rsqrt %196 : vector<8x1xf32>
    %198 = vector.broadcast %197 : vector<8x1xf32> to vector<8x32xf32>
    %199 = arith.mulf %194, %198 : vector<8x32xf32>
    %200 = vector.broadcast %180 : vector<1x32xf32> to vector<8x32xf32>
    %201 = arith.mulf %199, %200 : vector<8x32xf32>
    %202 = vector.broadcast %181 : vector<1x32xf32> to vector<8x32xf32>
    %203 = arith.addf %201, %202 : vector<8x32xf32>
    %c0_81 = arith.constant 0 : index
    %c0_82 = arith.constant 0 : index
    %c0_83 = arith.constant 0 : index
    %204 = vector.load %arg13[%c0_81, %c0_82, %c0_83] : memref<1x8x32xf32, #tpu.memory_space<vmem>>, vector<1x8x32xf32>
    %205 = vector.shape_cast %204 : vector<1x8x32xf32> to vector<8x32xf32>
    %206 = vector.shape_cast %203 : vector<8x32xf32> to vector<1x8x32xf32>
    tpu.vector_store %arg13[%c0_81, %c0_82, %c0_83], %206 {strides = array<i32>} : memref<1x8x32xf32, #tpu.memory_space<vmem>>, vector<1x8x32xf32>,
    return
  }
  func.func @transform_0(%arg0: i32) -> (i32, i32, i32) {
    %c0_i32 = arith.constant 0 : i32
    %c0_i32_0 = arith.constant 0 : i32
    %c0_i32_1 = arith.constant 0 : i32
    return %arg0, %c0_i32, %c0_i32_0 : i32, i32, i32
  }
  func.func @transform_1(%arg0: i32) -> (i32, i32, i32) {
    %c0_i32 = arith.constant 0 : i32
    %c0_i32_0 = arith.constant 0 : i32
    %c0_i32_1 = arith.constant 0 : i32
    return %arg0, %c0_i32, %c0_i32_0 : i32, i32, i32
  }
  func.func @transform_2(%arg0: i32) -> (i32, i32, i32) {
    %c0_i32 = arith.constant 0 : i32
    %c0_i32_0 = arith.constant 0 : i32
    %c0_i32_1 = arith.constant 0 : i32
    return %arg0, %c0_i32, %c0_i32_0 : i32, i32, i32
  }
  func.func @transform_3(%arg0: i32) -> (i32, i32, i32) {
    %c0_i32 = arith.constant 0 : i32
    %c0_i32_0 = arith.constant 0 : i32
    %c0_i32_1 = arith.constant 0 : i32
    return %arg0, %c0_i32, %c0_i32_0 : i32, i32, i32
  }
  func.func @transform_4(%arg0: i32) -> (i32, i32) {
    %c0_i32 = arith.constant 0 : i32
    %c0_i32_0 = arith.constant 0 : i32
    %c0_i32_1 = arith.constant 0 : i32
    return %c0_i32, %c0_i32_0 : i32, i32
  }
  func.func @transform_5(%arg0: i32) -> (i32, i32) {
    %c0_i32 = arith.constant 0 : i32
    %c0_i32_0 = arith.constant 0 : i32
    %c0_i32_1 = arith.constant 0 : i32
    return %c0_i32, %c0_i32_0 : i32, i32
  }
  func.func @transform_6(%arg0: i32) -> (i32, i32) {
    %c0_i32 = arith.constant 0 : i32
    %c0_i32_0 = arith.constant 0 : i32
    %c0_i32_1 = arith.constant 0 : i32
    return %c0_i32, %c0_i32_0 : i32, i32
  }
  func.func @transform_7(%arg0: i32) -> (i32, i32) {
    %c0_i32 = arith.constant 0 : i32
    %c0_i32_0 = arith.constant 0 : i32
    %c0_i32_1 = arith.constant 0 : i32
    return %c0_i32, %c0_i32_0 : i32, i32
  }
  func.func @transform_8(%arg0: i32) -> (i32, i32) {
    %c0_i32 = arith.constant 0 : i32
    %c0_i32_0 = arith.constant 0 : i32
    %c0_i32_1 = arith.constant 0 : i32
    return %c0_i32, %c0_i32_0 : i32, i32
  }
  func.func @transform_9(%arg0: i32) -> (i32, i32) {
    %c0_i32 = arith.constant 0 : i32
    %c0_i32_0 = arith.constant 0 : i32
    %c0_i32_1 = arith.constant 0 : i32
    return %c0_i32, %c0_i32_0 : i32, i32
  }
  func.func @transform_10(%arg0: i32) -> (i32, i32) {
    %c0_i32 = arith.constant 0 : i32
    %c0_i32_0 = arith.constant 0 : i32
    %c0_i32_1 = arith.constant 0 : i32
    return %c0_i32, %c0_i32_0 : i32, i32
  }
  func.func @transform_11(%arg0: i32) -> (i32, i32) {
    %c0_i32 = arith.constant 0 : i32
    %c0_i32_0 = arith.constant 0 : i32
    %c0_i32_1 = arith.constant 0 : i32
    return %c0_i32, %c0_i32_0 : i32, i32
  }
  func.func @transform_12(%arg0: i32) -> (i32, i32, i32) {
    %c0_i32 = arith.constant 0 : i32
    %c0_i32_0 = arith.constant 0 : i32
    %c0_i32_1 = arith.constant 0 : i32
    return %arg0, %c0_i32, %c0_i32_0 : i32, i32, i32
  }
  func.func @transform_13(%arg0: i32) -> (i32, i32, i32) {
    %c0_i32 = arith.constant 0 : i32
    %c0_i32_0 = arith.constant 0 : i32
    %c0_i32_1 = arith.constant 0 : i32
    return %arg0, %c0_i32, %c0_i32_0 : i32, i32, i32
  }
  func.func @transform_14(%arg0: i32) -> (i32, i32, i32) {
    %c0_i32 = arith.constant 0 : i32
    %c0_i32_0 = arith.constant 0 : i32
    %c0_i32_1 = arith.constant 0 : i32
    return %arg0, %c0_i32, %c0_i32_0 : i32, i32, i32
  }
}

</mosaic_0001>

<llo_original>
// kernel: tpu_custom_call.1
$region0: #{tpu_custom_call.1}
  #allocation0 [shape = 'u32[]', space=smem, size = 0x4, offset = 0x4, fixed_abs, tag = 'smem constant byte address 0x4 - core index']
  #allocation1 [shape = 'u32[144,128]{1,0:T(1,128)}', space=vmem, size = 0x12000, scoped, tag = 'internal scratch']
  %s0 = inlined_call_operand.vmem [shape: f32[2,8,32], index: 0, kind: input, shape index: {}]
  %s1 = inlined_call_operand.vmem [shape: f32[2,12,32], index: 1, kind: input, shape index: {}]
  %s2 = inlined_call_operand.vmem [shape: f32[2,8,8], index: 2, kind: input, shape index: {}]
  %s3 = inlined_call_operand.hbm [shape: f32[2,1,12], index: 3, kind: input, shape index: {}]
  %s4 = inlined_call_operand.vmem [shape: bf16[32,96], index: 4, kind: input, shape index: {}]
  %s5 = inlined_call_operand.vmem [shape: bf16[32,32], index: 5, kind: input, shape index: {}]
  %s6 = inlined_call_operand.vmem [shape: bf16[32,32], index: 6, kind: input, shape index: {}]
  %s7 = inlined_call_operand.vmem [shape: bf16[32,64], index: 7, kind: input, shape index: {}]
  %s8 = inlined_call_operand.hbm [shape: bf16[32,32], index: 8, kind: input, shape index: {}]
  %s9 = inlined_call_operand.hbm [shape: bf16[32,64], index: 9, kind: input, shape index: {}]
  %s10 = inlined_call_operand.vmem [shape: bf16[64,32], index: 10, kind: input, shape index: {}]
  %s11 = inlined_call_operand.hbm [shape: f32[13,96], index: 11, kind: input, shape index: {}]
  %s12 = inlined_call_operand.hbm [shape: f32[2,8,32], index: 12, kind: output, shape index: {0}]
  %s13 = inlined_call_operand.hbm [shape: f32[2,8,32], index: 13, kind: output, shape index: {1}]
  %s14 = inlined_call_operand.hbm [shape: f32[2,8,48], index: 14, kind: output, shape index: {2}]
  %15 = xla_tuple %s12, %s13, %s14
  %s16 = sld [smem:[#allocation0]]
  $region113: #{tpu_custom_call.1} parent=0
    _
  %s18 = ssub.s32 1, %s16
  %s19 = scalar_select 0, %s18, %s16
  $region1: #{tpu_custom_call.1} parent=0
    #allocation2 [shape = 'u8[1024]{0}', space=vmem, size = 0x400, scoped, tag = 'input window, operand 3']
    #allocation3 [shape = 's32[2]{0}', space=sflag, size = 0x8, scoped, tag = 'scoped memory for tpu_custom_call.1']
    #allocation4 [shape = 's32[2]{0}', space=sflag, size = 0x8, scoped, tag = 'scoped memory for tpu_custom_call.1']
    #allocation5 [shape = 'u8[8192]{0}', space=vmem, size = 0x2000, scoped, tag = 'input window, operand 8, single buffered']
    #allocation6 [shape = 's32[1]{0}', space=sflag, size = 0x4, scoped, tag = 'scoped memory for tpu_custom_call.1']
    #allocation7 [shape = 'u8[8192]{0}', space=vmem, size = 0x2000, scoped, tag = 'input window, operand 9, single buffered']
    #allocation8 [shape = 'u8[8192]{0}', space=vmem, size = 0x2000, scoped, tag = 'input window, operand 11, single buffered']
    #allocation9 [shape = 's32[1]{0}', space=sflag, size = 0x4, scoped, tag = 'scoped memory for tpu_custom_call.1']
    #allocation10 [shape = 'u8[8192]{0}', space=vmem, size = 0x2000, scoped, tag = 'output window, operand 0']
    #allocation11 [shape = 'u8[8192]{0}', space=vmem, size = 0x2000, scoped, tag = 'output window, operand 1']
    #allocation12 [shape = 's32[2]{0}', space=sflag, size = 0x8, scoped, tag = 'scoped memory for tpu_custom_call.1']
    #allocation13 [shape = 'u8[8192]{0}', space=vmem, size = 0x2000, scoped, tag = 'output window, operand 2']
    %20 = vsyncpa [#allocation3], 0
    %s21 = scalar_lea.sflag [#allocation3], 1
    %22 = vsyncpa %s21, 0
    %23 = vsyncpa [#allocation6], 0
    %24 = vsyncpa [#allocation9], 0
    %25 = vsyncpa [#allocation4], 0
    %s26 = scalar_lea.sflag [#allocation4], 1
    %27 = vsyncpa %s26, 0
    %28 = vsyncpa [#allocation12], 0
    %s29 = scalar_lea.sflag [#allocation12], 1
    %30 = vsyncpa %s29, 0
    loop: start=0, step=1, limit=4
    $region2: #{tpu_custom_call.1} parent=1 // loop_pre_header
      _
    $region3: #{tpu_custom_call.1} parent=1 // loop_header
      %s32 = sphi 0, %s36
      %p33 = scmp.ge.s32.totalorder %s32, 4
      %s42 = sphi 0, %s44
      %s45 = sphi 0, %s42
      %s46 = sphi 0, %s45
      %s62 = sphi 0, %s46
      %s68 = sphi 0, %s70
      %s71 = sphi 0, %s68
      %s72 = sphi 0, %s71
      %s88 = sphi 0, %s72
      %s94 = sphi 0, %s96
      %s97 = sphi 0, %s94
      %s98 = sphi 0, %s97
      %s114 = sphi 0, %s98
      %s120 = sphi 0, %s122
      %s123 = sphi 0, %s120
      %s124 = sphi 0, %s123
      %s140 = sphi 0, %s124
      %s144 = sphi 0, %s144
      %s146 = sphi 0, %s144
      %s147 = sphi 0, %s146
      %s161 = sphi 0, %s147
      %s165 = sphi 0, %s165
      %s167 = sphi 0, %s165
      %s168 = sphi 0, %s167
      %s182 = sphi 0, %s168
      %s186 = sphi 0, %s186
      %s188 = sphi 0, %s186
      %s189 = sphi 0, %s188
      %s203 = sphi 0, %s189
      %s207 = sphi 0, %s207
      %s209 = sphi 0, %s207
      %s210 = sphi 0, %s209
      %s224 = sphi 0, %s210
      %s228 = sphi 0, %s228
      %s230 = sphi 0, %s228
      %s231 = sphi 0, %s230
      %s245 = sphi 0, %s231
      %s249 = sphi 0, %s249
      %s251 = sphi 0, %s249
      %s252 = sphi 0, %s251
      %s266 = sphi 0, %s252
      %s270 = sphi 0, %s270
      %s272 = sphi 0, %s270
      %s273 = sphi 0, %s272
      %s287 = sphi 0, %s273
      %s291 = sphi 0, %s291
      %s293 = sphi 0, %s291
      %s294 = sphi 0, %s293
      %s308 = sphi 0, %s294
      %s314 = sphi 0, %s316
      %s317 = sphi 0, %s314
      %s318 = sphi 0, %s317
      %s334 = sphi 0, %s318
      %s340 = sphi 0, %s342
      %s343 = sphi 0, %s340
      %s344 = sphi 0, %s343
      %s360 = sphi 0, %s344
      %s366 = sphi 0, %s368
      %s369 = sphi 0, %s366
      %s370 = sphi 0, %s369
      %s386 = sphi 0, %s370
    $region4: #{tpu_custom_call.1} parent=1 // loop_header_branch
      %35 = sbr.rel (%p33) target = $region8
    $region5: #{tpu_custom_call.1} parent=1 // loop_body
      %s37 = ssub.s32 %s32, 1
      %s38 = ssub.s32 %s32, 2
      %s39 = sadd.s32 %s32, 1
      %s40 = ssub.s32 %s32, %s39
      %p41 = scmp.eq.s32.totalorder %s40, 0
      %s43 = sadd.s32 %s42, 1
      %s44 = scalar_select %p41, %s42, %s43
      %p47 = pneg %p41
      %p48 = scmp.eq.s32.totalorder %s32, 1
      %p49 = por %p47, %p48
      %p50 = scmp.ne.s32.totalorder %s42, %s45
      %p51 = scmp.eq.s32.totalorder %s32, 0
      %p52 = por %p50, %p51
      %p53 = scmp.ne.s32.totalorder %s42, %s45
      %p54 = scmp.eq.s32.totalorder %s37, 1
      %p55 = por %p53, %p54
      %p56 = scmp.ne.s32.totalorder %s45, %s46
      %p57 = scmp.eq.s32.totalorder %s37, 0
      %p58 = por %p56, %p57
      %p59 = scmp.ne.s32.totalorder %s45, %s46
      %p60 = scmp.eq.s32.totalorder %s38, 1
      %p61 = por %p59, %p60
      %p63 = scmp.ne.s32.totalorder %s46, %s62
      %p64 = scmp.eq.s32.totalorder %s38, 0
      %p65 = por %p63, %p64
      %s66 = ssub.s32 %s32, %s39
      %p67 = scmp.eq.s32.totalorder %s66, 0
      %s69 = sadd.s32 %s68, 1
      %s70 = scalar_select %p67, %s68, %s69
      %p73 = pneg %p67
      %p74 = scmp.eq.s32.totalorder %s32, 1
      %p75 = por %p73, %p74
      %p76 = scmp.ne.s32.totalorder %s68, %s71
      %p77 = scmp.eq.s32.totalorder %s32, 0
      %p78 = por %p76, %p77
      %p79 = scmp.ne.s32.totalorder %s68, %s71
      %p80 = scmp.eq.s32.totalorder %s37, 1
      %p81 = por %p79, %p80
      %p82 = scmp.ne.s32.totalorder %s71, %s72
      %p83 = scmp.eq.s32.totalorder %s37, 0
      %p84 = por %p82, %p83
      %p85 = scmp.ne.s32.totalorder %s71, %s72
      %p86 = scmp.eq.s32.totalorder %s38, 1
      %p87 = por %p85, %p86
      %p89 = scmp.ne.s32.totalorder %s72, %s88
      %p90 = scmp.eq.s32.totalorder %s38, 0
      %p91 = por %p89, %p90
      %s92 = ssub.s32 %s32, %s39
      %p93 = scmp.eq.s32.totalorder %s92, 0
      %s95 = sadd.s32 %s94, 1
      %s96 = scalar_select %p93, %s94, %s95
      %p99 = pneg %p93
      %p100 = scmp.eq.s32.totalorder %s32, 1
      %p101 = por %p99, %p100
      %p102 = scmp.ne.s32.totalorder %s94, %s97
      %p103 = scmp.eq.s32.totalorder %s32, 0
      %p104 = por %p102, %p103
      %p105 = scmp.ne.s32.totalorder %s94, %s97
      %p106 = scmp.eq.s32.totalorder %s37, 1
      %p107 = por %p105, %p106
      %p108 = scmp.ne.s32.totalorder %s97, %s98
      %p109 = scmp.eq.s32.totalorder %s37, 0
      %p110 = por %p108, %p109
      %p111 = scmp.ne.s32.totalorder %s97, %s98
      %p112 = scmp.eq.s32.totalorder %s38, 1
      %p113 = por %p111, %p112
      %p115 = scmp.ne.s32.totalorder %s98, %s114
      %p116 = scmp.eq.s32.totalorder %s38, 0
      %p117 = por %p115, %p116
      %s118 = ssub.s32 %s32, %s39
      %p119 = scmp.eq.s32.totalorder %s118, 0
      %s121 = sadd.s32 %s120, 1
      %s122 = scalar_select %p119, %s120, %s121
      %p125 = pneg %p119
      %p126 = scmp.eq.s32.totalorder %s32, 1
      %p127 = por %p125, %p126
      %p128 = scmp.ne.s32.totalorder %s120, %s123
      %p129 = scmp.eq.s32.totalorder %s32, 0
      %p130 = por %p128, %p129
      %p131 = scmp.ne.s32.totalorder %s120, %s123
      %p132 = scmp.eq.s32.totalorder %s37, 1
      %p133 = por %p131, %p132
      %p134 = scmp.ne.s32.totalorder %s123, %s124
      %p135 = scmp.eq.s32.totalorder %s37, 0
      %p136 = por %p134, %p135
      %p137 = scmp.ne.s32.totalorder %s123, %s124
      %p138 = scmp.eq.s32.totalorder %s38, 1
      %p139 = por %p137, %p138
      %p141 = scmp.ne.s32.totalorder %s124, %s140
      %p142 = scmp.eq.s32.totalorder %s38, 0
      %p143 = por %p141, %p142
      %s145 = sadd.s32 %s144, 1
      %p148 = scmp.eq.s32.totalorder %s32, 1
      %p149 = scmp.ne.s32.totalorder %s144, %s146
      %p150 = scmp.eq.s32.totalorder %s32, 0
      %p151 = por %p149, %p150
      %p152 = scmp.ne.s32.totalorder %s144, %s146
      %p153 = scmp.eq.s32.totalorder %s37, 1
      %p154 = por %p152, %p153
      %p155 = scmp.ne.s32.totalorder %s146, %s147
      %p156 = scmp.eq.s32.totalorder %s37, 0
      %p157 = por %p155, %p156
      %p158 = scmp.ne.s32.totalorder %s146, %s147
      %p159 = scmp.eq.s32.totalorder %s38, 1
      %p160 = por %p158, %p159
      %p162 = scmp.ne.s32.totalorder %s147, %s161
      %p163 = scmp.eq.s32.totalorder %s38, 0
      %p164 = por %p162, %p163
      %s166 = sadd.s32 %s165, 1
      %p169 = scmp.eq.s32.totalorder %s32, 1
      %p170 = scmp.ne.s32.totalorder %s165, %s167
      %p171 = scmp.eq.s32.totalorder %s32, 0
      %p172 = por %p170, %p171
      %p173 = scmp.ne.s32.totalorder %s165, %s167
      %p174 = scmp.eq.s32.totalorder %s37, 1
      %p175 = por %p173, %p174
      %p176 = scmp.ne.s32.totalorder %s167, %s168
      %p177 = scmp.eq.s32.totalorder %s37, 0
      %p178 = por %p176, %p177
      %p179 = scmp.ne.s32.totalorder %s167, %s168
      %p180 = scmp.eq.s32.totalorder %s38, 1
      %p181 = por %p179, %p180
      %p183 = scmp.ne.s32.totalorder %s168, %s182
      %p184 = scmp.eq.s32.totalorder %s38, 0
      %p185 = por %p183, %p184
      %s187 = sadd.s32 %s186, 1
      %p190 = scmp.eq.s32.totalorder %s32, 1
      %p191 = scmp.ne.s32.totalorder %s186, %s188
      %p192 = scmp.eq.s32.totalorder %s32, 0
      %p193 = por %p191, %p192
      %p194 = scmp.ne.s32.totalorder %s186, %s188
      %p195 = scmp.eq.s32.totalorder %s37, 1
      %p196 = por %p194, %p195
      %p197 = scmp.ne.s32.totalorder %s188, %s189
      %p198 = scmp.eq.s32.totalorder %s37, 0
      %p199 = por %p197, %p198
      %p200 = scmp.ne.s32.totalorder %s188, %s189
      %p201 = scmp.eq.s32.totalorder %s38, 1
      %p202 = por %p200, %p201
      %p204 = scmp.ne.s32.totalorder %s189, %s203
      %p205 = scmp.eq.s32.totalorder %s38, 0
      %p206 = por %p204, %p205
      %s208 = sadd.s32 %s207, 1
      %p211 = scmp.eq.s32.totalorder %s32, 1
      %p212 = scmp.ne.s32.totalorder %s207, %s209
      %p213 = scmp.eq.s32.totalorder %s32, 0
      %p214 = por %p212, %p213
      %p215 = scmp.ne.s32.totalorder %s207, %s209
      %p216 = scmp.eq.s32.totalorder %s37, 1
      %p217 = por %p215, %p216
      %p218 = scmp.ne.s32.totalorder %s209, %s210
      %p219 = scmp.eq.s32.totalorder %s37, 0
      %p220 = por %p218, %p219
      %p221 = scmp.ne.s32.totalorder %s209, %s210
      %p222 = scmp.eq.s32.totalorder %s38, 1
      %p223 = por %p221, %p222
      %p225 = scmp.ne.s32.totalorder %s210, %s224
      %p226 = scmp.eq.s32.totalorder %s38, 0
      %p227 = por %p225, %p226
      %s229 = sadd.s32 %s228, 1
      %p232 = scmp.eq.s32.totalorder %s32, 1
      %p233 = scmp.ne.s32.totalorder %s228, %s230
      %p234 = scmp.eq.s32.totalorder %s32, 0
      %p235 = por %p233, %p234
      %p236 = scmp.ne.s32.totalorder %s228, %s230
      %p237 = scmp.eq.s32.totalorder %s37, 1
      %p238 = por %p236, %p237
      %p239 = scmp.ne.s32.totalorder %s230, %s231
      %p240 = scmp.eq.s32.totalorder %s37, 0
      %p241 = por %p239, %p240
      %p242 = scmp.ne.s32.totalorder %s230, %s231
      %p243 = scmp.eq.s32.totalorder %s38, 1
      %p244 = por %p242, %p243
      %p246 = scmp.ne.s32.totalorder %s231, %s245
      %p247 = scmp.eq.s32.totalorder %s38, 0
      %p248 = por %p246, %p247
      %s250 = sadd.s32 %s249, 1
      %p253 = scmp.eq.s32.totalorder %s32, 1
      %p254 = scmp.ne.s32.totalorder %s249, %s251
      %p255 = scmp.eq.s32.totalorder %s32, 0
      %p256 = por %p254, %p255
      %p257 = scmp.ne.s32.totalorder %s249, %s251
      %p258 = scmp.eq.s32.totalorder %s37, 1
      %p259 = por %p257, %p258
      %p260 = scmp.ne.s32.totalorder %s251, %s252
      %p261 = scmp.eq.s32.totalorder %s37, 0
      %p262 = por %p260, %p261
      %p263 = scmp.ne.s32.totalorder %s251, %s252
      %p264 = scmp.eq.s32.totalorder %s38, 1
      %p265 = por %p263, %p264
      %p267 = scmp.ne.s32.totalorder %s252, %s266
      %p268 = scmp.eq.s32.totalorder %s38, 0
      %p269 = por %p267, %p268
      %s271 = sadd.s32 %s270, 1
      %p274 = scmp.eq.s32.totalorder %s32, 1
      %p275 = scmp.ne.s32.totalorder %s270, %s272
      %p276 = scmp.eq.s32.totalorder %s32, 0
      %p277 = por %p275, %p276
      %p278 = scmp.ne.s32.totalorder %s270, %s272
      %p279 = scmp.eq.s32.totalorder %s37, 1
      %p280 = por %p278, %p279
      %p281 = scmp.ne.s32.totalorder %s272, %s273
      %p282 = scmp.eq.s32.totalorder %s37, 0
      %p283 = por %p281, %p282
      %p284 = scmp.ne.s32.totalorder %s272, %s273
      %p285 = scmp.eq.s32.totalorder %s38, 1
      %p286 = por %p284, %p285
      %p288 = scmp.ne.s32.totalorder %s273, %s287
      %p289 = scmp.eq.s32.totalorder %s38, 0
      %p290 = por %p288, %p289
      %s292 = sadd.s32 %s291, 1
      %p295 = scmp.eq.s32.totalorder %s32, 1
      %p296 = scmp.ne.s32.totalorder %s291, %s293
      %p297 = scmp.eq.s32.totalorder %s32, 0
      %p298 = por %p296, %p297
      %p299 = scmp.ne.s32.totalorder %s291, %s293
      %p300 = scmp.eq.s32.totalorder %s37, 1
      %p301 = por %p299, %p300
      %p302 = scmp.ne.s32.totalorder %s293, %s294
      %p303 = scmp.eq.s32.totalorder %s37, 0
      %p304 = por %p302, %p303
      %p305 = scmp.ne.s32.totalorder %s293, %s294
      %p306 = scmp.eq.s32.totalorder %s38, 1
      %p307 = por %p305, %p306
      %p309 = scmp.ne.s32.totalorder %s294, %s308
      %p310 = scmp.eq.s32.totalorder %s38, 0
      %p311 = por %p309, %p310
      %s312 = ssub.s32 %s32, %s39
      %p313 = scmp.eq.s32.totalorder %s312, 0
      %s315 = sadd.s32 %s314, 1
      %s316 = scalar_select %p313, %s314, %s315
      %p319 = pneg %p313
      %p320 = scmp.eq.s32.totalorder %s32, 1
      %p321 = por %p319, %p320
      %p322 = scmp.ne.s32.totalorder %s314, %s317
      %p323 = scmp.eq.s32.totalorder %s32, 0
      %p324 = por %p322, %p323
      %p325 = scmp.ne.s32.totalorder %s314, %s317
      %p326 = scmp.eq.s32.totalorder %s37, 1
      %p327 = por %p325, %p326
      %p328 = scmp.ne.s32.totalorder %s317, %s318
      %p329 = scmp.eq.s32.totalorder %s37, 0
      %p330 = por %p328, %p329
      %p331 = scmp.ne.s32.totalorder %s317, %s318
      %p332 = scmp.eq.s32.totalorder %s38, 1
      %p333 = por %p331, %p332
      %p335 = scmp.ne.s32.totalorder %s318, %s334
      %p336 = scmp.eq.s32.totalorder %s38, 0
      %p337 = por %p335, %p336
      %s338 = ssub.s32 %s32, %s39
      %p339 = scmp.eq.s32.totalorder %s338, 0
      %s341 = sadd.s32 %s340, 1
      %s342 = scalar_select %p339, %s340, %s341
      %p345 = pneg %p339
      %p346 = scmp.eq.s32.totalorder %s32, 1
      %p347 = por %p345, %p346
      %p348 = scmp.ne.s32.totalorder %s340, %s343
      %p349 = scmp.eq.s32.totalorder %s32, 0
      %p350 = por %p348, %p349
      %p351 = scmp.ne.s32.totalorder %s340, %s343
      %p352 = scmp.eq.s32.totalorder %s37, 1
      %p353 = por %p351, %p352
      %p354 = scmp.ne.s32.totalorder %s343, %s344
      %p355 = scmp.eq.s32.totalorder %s37, 0
      %p356 = por %p354, %p355
      %p357 = scmp.ne.s32.totalorder %s343, %s344
      %p358 = scmp.eq.s32.totalorder %s38, 1
      %p359 = por %p357, %p358
      %p361 = scmp.ne.s32.totalorder %s344, %s360
      %p362 = scmp.eq.s32.totalorder %s38, 0
      %p363 = por %p361, %p362
      %s364 = ssub.s32 %s32, %s39
      %p365 = scmp.eq.s32.totalorder %s364, 0
      %s367 = sadd.s32 %s366, 1
      %s368 = scalar_select %p365, %s366, %s367
      %p371 = pneg %p365
      %p372 = scmp.eq.s32.totalorder %s32, 1
      %p373 = por %p371, %p372
      %p374 = scmp.ne.s32.totalorder %s366, %s369
      %p375 = scmp.eq.s32.totalorder %s32, 0
      %p376 = por %p374, %p375
      %p377 = scmp.ne.s32.totalorder %s366, %s369
      %p378 = scmp.eq.s32.totalorder %s37, 1
      %p379 = por %p377, %p378
      %p380 = scmp.ne.s32.totalorder %s369, %s370
      %p381 = scmp.eq.s32.totalorder %s37, 0
      %p382 = por %p380, %p381
      %p383 = scmp.ne.s32.totalorder %s369, %s370
      %p384 = scmp.eq.s32.totalorder %s38, 1
      %p385 = por %p383, %p384
      %p387 = scmp.ne.s32.totalorder %s370, %s386
      %p388 = scmp.eq.s32.totalorder %s38, 0
      %p389 = por %p387, %p388
      %p390 = scmp.le.s32.totalorder 1, %s32
      %p391 = scmp.lt.s32.totalorder %s32, 3
      %p392 = pnand %p390, %p391
      %p393 = pneg %p392
      // Predicated region
      $region9: #{tpu_custom_call.1} parent=5 // pred_check
        _
      $region10: #{tpu_custom_call.1} parent=5 // pred_check_branch
        %395 = sbr.rel (%p392) target = $region12
      $region11: #{tpu_custom_call.1} parent=5 // pred_region
        %s396 = ssub.s32 %s32, 1
        // Predicated region
        $region13: #{tpu_custom_call.1} parent=11 // pred_check
          %p397 = pneg %p157
        $region14: #{tpu_custom_call.1} parent=11 // pred_check_branch
          %399 = sbr.rel (%p397) target = $region16
        $region15: #{tpu_custom_call.1} parent=11 // pred_region
          _
        $region16: #{tpu_custom_call.1} parent=11 // pred_fallthru
          _
        // Predicated region
        $region17: #{tpu_custom_call.1} parent=11 // pred_check
          %p400 = pneg %p178
        $region18: #{tpu_custom_call.1} parent=11 // pred_check_branch
          %402 = sbr.rel (%p400) target = $region20
        $region19: #{tpu_custom_call.1} parent=11 // pred_region
          _
        $region20: #{tpu_custom_call.1} parent=11 // pred_fallthru
          _
        // Predicated region
        $region21: #{tpu_custom_call.1} parent=11 // pred_check
          %p403 = pneg %p199
        $region22: #{tpu_custom_call.1} parent=11 // pred_check_branch
          %405 = sbr.rel (%p403) target = $region24
        $region23: #{tpu_custom_call.1} parent=11 // pred_region
          _
        $region24: #{tpu_custom_call.1} parent=11 // pred_fallthru
          _
        // Predicated region
        $region25: #{tpu_custom_call.1} parent=11 // pred_check
          %p406 = pneg %p220
        $region26: #{tpu_custom_call.1} parent=11 // pred_check_branch
          %408 = sbr.rel (%p406) target = $region28
        $region27: #{tpu_custom_call.1} parent=11 // pred_region
          _
        $region28: #{tpu_custom_call.1} parent=11 // pred_fallthru
          _
        // Predicated region
        $region29: #{tpu_custom_call.1} parent=11 // pred_check
          %p409 = pneg %p241
        $region30: #{tpu_custom_call.1} parent=11 // pred_check_branch
          %411 = sbr.rel (%p409) target = $region32
        $region31: #{tpu_custom_call.1} parent=11 // pred_region
          %s413 = ssub.s32 256, 256
          %414 = vsyncadd [#allocation6], %s413
          %s415 = sshll.u32 [#allocation5], 4
          %s416 = int_to_ptr.vmem [resolvable:$true] %s415
          %421 = dma.hbm_to_vmem [thread:$0]  %s8, 256, %s416, [#allocation6], 64, 64, 4
        $region32: #{tpu_custom_call.1} parent=11 // pred_fallthru
          _
        // Predicated region
        $region33: #{tpu_custom_call.1} parent=11 // pred_check
          %p422 = pneg %p262
        $region34: #{tpu_custom_call.1} parent=11 // pred_check_branch
          %424 = sbr.rel (%p422) target = $region36
        $region35: #{tpu_custom_call.1} parent=11 // pred_region
          %s426 = ssub.s32 256, 256
          %427 = vsyncadd [#allocation6], %s426
          %s428 = sshll.u32 [#allocation7], 4
          %s429 = int_to_ptr.vmem [resolvable:$true] %s428
          %434 = dma.hbm_to_vmem [thread:$0]  %s9, 256, %s429, [#allocation6], 64, 64, 4
        $region36: #{tpu_custom_call.1} parent=11 // pred_fallthru
          _
        // Predicated region
        $region37: #{tpu_custom_call.1} parent=11 // pred_check
          %p435 = pneg %p283
        $region38: #{tpu_custom_call.1} parent=11 // pred_check_branch
          %437 = sbr.rel (%p435) target = $region40
        $region39: #{tpu_custom_call.1} parent=11 // pred_region
          _
        $region40: #{tpu_custom_call.1} parent=11 // pred_fallthru
          _
        // Predicated region
        $region41: #{tpu_custom_call.1} parent=11 // pred_check
          %p438 = pneg %p304
        $region42: #{tpu_custom_call.1} parent=11 // pred_check_branch
          %440 = sbr.rel (%p438) target = $region44
        $region43: #{tpu_custom_call.1} parent=11 // pred_region
          %s442 = ssub.s32 256, 256
          %443 = vsyncadd [#allocation9], %s442
          %s444 = sshll.u32 [#allocation8], 4
          %s445 = int_to_ptr.vmem [resolvable:$true] %s444
          %450 = dma.hbm_to_vmem [thread:$0]  %s11, 256, %s445, [#allocation9], 128, 128, 8
        $region44: #{tpu_custom_call.1} parent=11 // pred_fallthru
          _
      $region12: #{tpu_custom_call.1} parent=5 // pred_fallthru
        _
      %p451 = scmp.lt.s32.totalorder %s32, 2
      // Predicated region
      $region45: #{tpu_custom_call.1} parent=5 // pred_check
        %p452 = pneg %p451
      $region46: #{tpu_custom_call.1} parent=5 // pred_check_branch
        %454 = sbr.rel (%p452) target = $region48
      $region47: #{tpu_custom_call.1} parent=5 // pred_region
        // Predicated region
        $region49: #{tpu_custom_call.1} parent=47 // pred_check
          %p455 = pneg %p52
        $region50: #{tpu_custom_call.1} parent=47 // pred_check_branch
          %457 = sbr.rel (%p455) target = $region52
        $region51: #{tpu_custom_call.1} parent=47 // pred_region
          %p458 = scmp.lt.s32.totalorder %s32, 1
          %s459 = scalar_select %p458, %s32, 1
          %s460 = smul.addr %s459, 8
          %s461 = scalar_lea.vmem %s0, %s460
        $region52: #{tpu_custom_call.1} parent=47 // pred_fallthru
          _
        // Predicated region
        $region53: #{tpu_custom_call.1} parent=47 // pred_check
          %p462 = pneg %p78
        $region54: #{tpu_custom_call.1} parent=47 // pred_check_branch
          %464 = sbr.rel (%p462) target = $region56
        $region55: #{tpu_custom_call.1} parent=47 // pred_region
          %p465 = scmp.lt.s32.totalorder %s32, 1
          %s466 = scalar_select %p465, %s32, 1
          %s467 = smul.addr %s466, 2
          %s468 = smul.addr %s467, 8
          %s469 = scalar_lea.vmem %s1, %s468
        $region56: #{tpu_custom_call.1} parent=47 // pred_fallthru
          _
        // Predicated region
        $region57: #{tpu_custom_call.1} parent=47 // pred_check
          %p470 = pneg %p104
        $region58: #{tpu_custom_call.1} parent=47 // pred_check_branch
          %472 = sbr.rel (%p470) target = $region60
        $region59: #{tpu_custom_call.1} parent=47 // pred_region
          %p473 = scmp.lt.s32.totalorder %s32, 1
          %s474 = scalar_select %p473, %s32, 1
          %s475 = smul.addr %s474, 8
          %s476 = scalar_lea.vmem %s2, %s475
        $region60: #{tpu_custom_call.1} parent=47 // pred_fallthru
          _
        // Predicated region
        $region61: #{tpu_custom_call.1} parent=47 // pred_check
          %p477 = pneg %p130
        $region62: #{tpu_custom_call.1} parent=47 // pred_check_branch
          %479 = sbr.rel (%p477) target = $region64
        $region63: #{tpu_custom_call.1} parent=47 // pred_region
          %s480 = sand.u32 %s120, 1
          %s481 = scalar_lea.sflag [#allocation3], %s480
          %s482 = sand.u32 %s120, 1
          %s483 = scalar_lea.vmem [#allocation2], %s482
          %s485 = ssub.s32 16, 16
          %486 = vsyncadd %s481, %s485
          %s487 = smul.addr %s32, 16
          %s488 = scalar_lea.hbm %s3, %s487
          %s490 = sshll.u32 %s483, 4
          %s491 = int_to_ptr.vmem [resolvable:$true] %s490
          %493 = dma.hbm_to_vmem [thread:$0]  %s488, 16, %s491, %s481
        $region64: #{tpu_custom_call.1} parent=47 // pred_fallthru
          _
      $region48: #{tpu_custom_call.1} parent=5 // pred_fallthru
        _
      %p494 = scmp.le.s32.totalorder 1, %s32
      %p495 = scmp.lt.s32.totalorder %s32, 3
      %p496 = pnand %p494, %p495
      %p497 = pneg %p496
      // Predicated region
      $region65: #{tpu_custom_call.1} parent=5 // pred_check
        _
      $region66: #{tpu_custom_call.1} parent=5 // pred_check_branch
        %499 = sbr.rel (%p496) target = $region68
      $region67: #{tpu_custom_call.1} parent=5 // pred_region
        %s500 = ssub.s32 %s32, 1
        %s501 = sand.u32 %s123, 1
        %s502 = scalar_lea.sflag [#allocation3], %s501
        %s503 = sand.u32 %s123, 1
        %s504 = scalar_lea.vmem [#allocation2], %s503
        // Predicated region
        $region69: #{tpu_custom_call.1} parent=67 // pred_check
          %p505 = pneg %p136
        $region70: #{tpu_custom_call.1} parent=67 // pred_check_branch
          %507 = sbr.rel (%p505) target = $region72
        $region71: #{tpu_custom_call.1} parent=67 // pred_region
          %508 = dma.done %s502, 16
        $region72: #{tpu_custom_call.1} parent=67 // pred_fallthru
          _
        // Predicated region
        $region73: #{tpu_custom_call.1} parent=67 // pred_check
          %p509 = pneg %p241
        $region74: #{tpu_custom_call.1} parent=67 // pred_check_branch
          %511 = sbr.rel (%p509) target = $region76
        $region75: #{tpu_custom_call.1} parent=67 // pred_region
          %512 = dma.done [#allocation6], 256
        $region76: #{tpu_custom_call.1} parent=67 // pred_fallthru
          _
        // Predicated region
        $region77: #{tpu_custom_call.1} parent=67 // pred_check
          %p513 = pneg %p262
        $region78: #{tpu_custom_call.1} parent=67 // pred_check_branch
          %515 = sbr.rel (%p513) target = $region80
        $region79: #{tpu_custom_call.1} parent=67 // pred_region
          %516 = dma.done [#allocation6], 256
        $region80: #{tpu_custom_call.1} parent=67 // pred_fallthru
          _
        // Predicated region
        $region81: #{tpu_custom_call.1} parent=67 // pred_check
          %p517 = pneg %p304
        $region82: #{tpu_custom_call.1} parent=67 // pred_check_branch
          %519 = sbr.rel (%p517) target = $region84
        $region83: #{tpu_custom_call.1} parent=67 // pred_region
          %520 = dma.done [#allocation9], 256
        $region84: #{tpu_custom_call.1} parent=67 // pred_fallthru
          _
        %p521 = scmp.lt.s32.totalorder %s37, 1
        %s522 = scalar_select %p521, %s37, 1
        %s523 = smul.addr %s522, 8
        %s524 = scalar_lea.vmem %s0, %s523
        %p525 = pneg %p58
        %p526 = pneg %p55
        %p527 = scmp.lt.s32.totalorder %s37, 1
        %s528 = scalar_select %p527, %s37, 1
        %s529 = smul.addr %s528, 2
        %s530 = smul.addr %s529, 8
        %s531 = scalar_lea.vmem %s1, %s530
        %p532 = pneg %p84
        %p533 = pneg %p81
        %p534 = scmp.lt.s32.totalorder %s37, 1
        %s535 = scalar_select %p534, %s37, 1
        %s536 = smul.addr %s535, 8
        %s537 = scalar_lea.vmem %s2, %s536
        %p538 = pneg %p110
        %p539 = pneg %p107
        %s540 = sand.u32 %s123, 1
        %s541 = scalar_lea.sflag [#allocation3], %s540
        %s542 = sand.u32 %s123, 1
        %s543 = scalar_lea.vmem [#allocation2], %s542
        %p544 = pneg %p136
        %p545 = pneg %p133
        %p546 = pneg %p157
        %p547 = pneg %p154
        %p548 = pneg %p178
        %p549 = pneg %p175
        %p550 = pneg %p199
        %p551 = pneg %p196
        %p552 = pneg %p220
        %p553 = pneg %p217
        %p554 = pneg %p241
        %p555 = pneg %p238
        %p556 = pneg %p262
        %p557 = pneg %p259
        %p558 = pneg %p283
        %p559 = pneg %p280
        %p560 = pneg %p304
        %p561 = pneg %p301
        %p562 = pneg %p330
        %p563 = pneg %p327
        %s564 = sand.u32 %s317, 1
        %s565 = scalar_lea.sflag [#allocation4], %s564
        %s566 = sand.u32 %s317, 1
        %s567 = smul.addr %s566, 8
        %s568 = scalar_lea.vmem [#allocation10], %s567
        %p569 = pneg %p356
        %p570 = pneg %p353
        %s571 = sand.u32 %s37, 1
        %s572 = scalar_lea.sflag [#allocation12], %s571
        %s573 = sand.u32 %s343, 1
        %s574 = smul.addr %s573, 8
        %s575 = scalar_lea.vmem [#allocation11], %s574
        %p576 = pneg %p382
        %p577 = pneg %p379
        %s578 = sand.u32 %s37, 1
        %s579 = scalar_lea.sflag [#allocation12], %s578
        %s580 = sand.u32 %s369, 1
        %s581 = smul.addr %s580, 8
        %s582 = scalar_lea.vmem [#allocation13], %s581
        %p583 = scmp.lt.s32.totalorder %s37, 1
        %s584 = scalar_select %p583, %s37, 1
        %s585 = smul.addr %s584, 8
        %s586 = scalar_lea.vmem %s0, %s585
        %p587 = scmp.lt.s32.totalorder %s37, 1
        %s588 = scalar_select %p587, %s37, 1
        %s589 = smul.addr %s588, 2
        %s590 = smul.addr %s589, 8
        %s591 = scalar_lea.vmem %s1, %s590
        %p592 = scmp.lt.s32.totalorder %s37, 1
        %s593 = scalar_select %p592, %s37, 1
        %s594 = smul.addr %s593, 8
        %s595 = scalar_lea.vmem %s2, %s594
        %v597 = vld [vmem:[%s586] sm:$0xff]
        %v598 = vld [vmem:[%s591] sm:$0xff]
        %v599 = vld [vmem:[%s591 + $0x8] sm:$0xf]
        %v600 = vld [vmem:[%s595] sm:$0xff]
        %v601 = vld [vmem:[%s504] sm:$0x1]
        %v602 = vld [vmem:[%s4] sm:$0xf]
        %v603 = vld [vmem:[%s4 + $0x4] sm:$0xf]
        %v604 = vld [vmem:[%s4 + $0x8] sm:$0xf]
        %v605 = vld [vmem:[%s4 + $0xc] sm:$0xf]
        %v606 = vld [vmem:[#allocation8] sm:$0x1]
        %v607 = vpack.c.bf16 %v597, %v597
        %v608 = vlaneseq
        %v609 = vshrl.u32 %v608, 7
        %v610 = vsub.s32 0, %v609
        %v611 = vrot.slane %v606, %v610
        %v616 = vunpack.c.l.b16 %v602
        %v617 = vunpack.c.l.b16 %v603
        %v618 = vunpack.c.l.b16 %v604
        %v619 = vunpack.c.l.b16 %v605
        %v620 = vpack.c.b16 %v617, %v616
        %v621 = vpack.c.b16 %v619, %v618
        %vm624 = vcmask 261120
        %v626 = vsel %vm624, %v607, 0
        %628 = vmatprep.subr.bf16.mxu0 0
        %629 = vmatpush1.bf16.msra.mxu0 0
        %630 = vmatprep.subr.bf16.mxu0 0
        %631 = vmatpush1.bf16.msra.mxu0 0
        %632 = vmatprep.subr.bf16.mxu0 0
        %633 = vmatpush1.bf16.msra.mxu0 0
        %634 = vmatprep.subr.bf16.mxu0 0
        %635 = vmatpush1.bf16.msra.mxu0 0
        %636 = vmatprep.subr.bf16.mxu0 0
        %637 = vmatpush1.bf16.msra.mxu0 0
        %638 = vmatprep.subr.bf16.mxu0 0
        %639 = vmatpush1.bf16.msra.mxu0 0
        %640 = vmatprep.subr.bf16.mxu0 0
        %641 = vmatpush1.bf16.msra.mxu0 %v621
        %642 = vmatprep.subr.bf16.mxu0 0
        %643 = vmatpush1.bf16.msra.mxu0 %v620
        %644 = vmatprep.subr.bf16.mxu0 0
        %645 = vmatpush2.bf16.msra.mxu0 0
        %646 = vmatprep.subr.bf16.mxu0 0
        %647 = vmatpush2.bf16.msra.mxu0 0
        %648 = vmatprep.subr.bf16.mxu0 0
        %649 = vmatpush2.bf16.msra.mxu0 0
        %650 = vmatprep.subr.bf16.mxu0 0
        %651 = vmatpush2.bf16.msra.mxu0 0
        %652 = vmatprep.subr.bf16.mxu0 0
        %653 = vmatpush2.bf16.msra.mxu0 0
        %654 = vmatprep.subr.bf16.mxu0 0
        %655 = vmatpush2.bf16.msra.mxu0 0
        %656 = vmatprep.subr.bf16.mxu0 0
        %657 = vmatpush2.bf16.msra.mxu0 0
        %658 = vmatprep.subr.bf16.mxu0 0
        %659 = vmatpush2.bf16.msra.mxu0 0
        %660 = vmatprep.mubr.bf16.mxu0 0
        %661 = vmatmul.mubr.bf16.gmra.mxu0 %v626
        %v662 = vpop.f32.mrf.mxu0
        %v663 = vadd.f32 %v611, %v662
        %v664 = vpop.f32.mrf.mxu0
        %v665 = vpop.f32.mrf.mxu0
        %v666 = vpop.f32.mrf.mxu0
        %667 = vdwg.mxu0
        %v668 = vpack.c.bf16 %v663, %v663
        %670 = vrot.lane.b32.xlu0 %v668, 120
        %v671 = vpop.permute.xlu0 %670
        %672 = vrot.lane.b32.xlu0 %v668, 112
        %v673 = vpop.permute.xlu0 %672
        %674 = vrot.lane.b32.xlu0 %v668, 104
        %v675 = vpop.permute.xlu0 %674
        %v677 = vunpack.c.l.s4 1983009808
        %v678 = vunpack.c.0.s8 %v677
        %v679 = vlaneseq
        %v680 = vshrl.u32 %v679, 7
        %v681 = vsub.s32 %v678, %v680
        %v682 = vrot.slane %v668, %v681
        %v685 = vunpack.c.l.s4 1983009808
        %v686 = vunpack.c.0.s8 %v685
        %v687 = vlaneseq
        %v688 = vshrl.u32 %v687, 7
        %v689 = vsub.s32 %v686, %v688
        %v690 = vrot.slane %v673, %v689
        %v691 = vcombine.low %v682, %v690
        %v692 = vcombine.high %v682, %v690
        %v694 = vunpack.c.l.s4 1934713408
        %v695 = vunpack.c.0.s8 %v694
        %v696 = vlaneseq
        %v697 = vshrl.u32 %v696, 7
        %v698 = vsub.s32 %v695, %v697
        %v699 = vrot.slane %v691, %v698
        %v701 = vunpack.c.l.s4 1934713408
        %v702 = vunpack.c.0.s8 %v701
        %v703 = vlaneseq
        %v704 = vshrl.u32 %v703, 7
        %v705 = vsub.s32 %v702, %v704
        %v706 = vrot.slane %v692, %v705
        %v707 = vcombine.high %v699, 0
        %v708 = vcombine.high %v706, 0
        %v711 = vunpack.c.l.s4 1983009808
        %v712 = vunpack.c.0.s8 %v711
        %v713 = vlaneseq
        %v714 = vshrl.u32 %v713, 7
        %v715 = vsub.s32 %v712, %v714
        %v716 = vrot.slane %v671, %v715
        %v719 = vunpack.c.l.s4 1983009808
        %v720 = vunpack.c.0.s8 %v719
        %v721 = vlaneseq
        %v722 = vshrl.u32 %v721, 7
        %v723 = vsub.s32 %v720, %v722
        %v724 = vrot.slane %v675, %v723
        %v725 = vcombine.low %v716, %v724
        %v726 = vcombine.high %v716, %v724
        %v728 = vunpack.c.l.s4 1934713408
        %v729 = vunpack.c.0.s8 %v728
        %v730 = vlaneseq
        %v731 = vshrl.u32 %v730, 7
        %v732 = vsub.s32 %v729, %v731
        %v733 = vrot.slane %v725, %v732
        %v735 = vunpack.c.l.s4 1934713408
        %v736 = vunpack.c.0.s8 %v735
        %v737 = vlaneseq
        %v738 = vshrl.u32 %v737, 7
        %v739 = vsub.s32 %v736, %v738
        %v740 = vrot.slane %v726, %v739
        %v741 = vcombine.high %v733, 0
        %v742 = vcombine.high %v740, 0
        %v745 = vpack.i.b16 %v733, %v699
        %v747 = vshrl.u32 %v699, 16
        %v748 = vshrl.u32 %v733, 16
        %v749 = vpack.i.b16 %v748, %v747
        %v753 = vpack.i.b16 %v741, %v707
        %v755 = vshrl.u32 %v707, 16
        %v756 = vshrl.u32 %v741, 16
        %v757 = vpack.i.b16 %v756, %v755
        %v761 = vpack.i.b16 %v740, %v706
        %v763 = vshrl.u32 %v706, 16
        %v764 = vshrl.u32 %v740, 16
        %v765 = vpack.i.b16 %v764, %v763
        %v769 = vpack.i.b16 %v742, %v708
        %v771 = vshrl.u32 %v708, 16
        %v772 = vshrl.u32 %v742, 16
        %v773 = vpack.i.b16 %v772, %v771
        %v775 = vcombine.low %v745, %v761
        %v777 = vunpack.c.l.s4 1983009808
        %v778 = vunpack.c.0.s8 %v777
        %v779 = vlaneseq
        %v780 = vshrl.u32 %v779, 7
        %v781 = vsub.s32 %v778, %v780
        %v782 = vrot.slane %v775, %v781
        %v783 = vcombine.low %v753, %v769
        %v785 = vunpack.c.l.s4 1983009808
        %v786 = vunpack.c.0.s8 %v785
        %v787 = vlaneseq
        %v788 = vshrl.u32 %v787, 7
        %v789 = vsub.s32 %v786, %v788
        %v790 = vrot.slane %v783, %v789
        %v791 = vcombine.low %v782, %v790
        %v793 = vunpack.c.l.s4 1934713408
        %v794 = vunpack.c.0.s8 %v793
        %v795 = vlaneseq
        %v796 = vshrl.u32 %v795, 7
        %v797 = vsub.s32 %v794, %v796
        %v798 = vrot.slane %v791, %v797
        %v799 = vcombine.high %v798, 0
        %v800 = vcombine.low %v749, %v765
        %v802 = vunpack.c.l.s4 1983009808
        %v803 = vunpack.c.0.s8 %v802
        %v804 = vlaneseq
        %v805 = vshrl.u32 %v804, 7
        %v806 = vsub.s32 %v803, %v805
        %v807 = vrot.slane %v800, %v806
        %v808 = vcombine.low %v757, %v773
        %v810 = vunpack.c.l.s4 1983009808
        %v811 = vunpack.c.0.s8 %v810
        %v812 = vlaneseq
        %v813 = vshrl.u32 %v812, 7
        %v814 = vsub.s32 %v811, %v813
        %v815 = vrot.slane %v808, %v814
        %v816 = vcombine.low %v807, %v815
        %v818 = vunpack.c.l.s4 1934713408
        %v819 = vunpack.c.0.s8 %v818
        %v820 = vlaneseq
        %v821 = vshrl.u32 %v820, 7
        %v822 = vsub.s32 %v819, %v821
        %v823 = vrot.slane %v816, %v822
        %v824 = vcombine.high %v823, 0
        %v827 = vpack.i.b16 %v823, %v798
        %v828 = vshrl.u32 %v798, 16
        %v829 = vshrl.u32 %v823, 16
        %v830 = vpack.i.b16 %v829, %v828
        %v833 = vpack.i.b16 %v824, %v799
        %v834 = vshrl.u32 %v799, 16
        %v835 = vshrl.u32 %v824, 16
        %v836 = vpack.i.b16 %v835, %v834
        %837 = vrot.lane.b32.xlu0 %v668, 96
        %v838 = vpop.permute.xlu0 %837
        %839 = vrot.lane.b32.xlu0 %v671, 96
        %v840 = vpop.permute.xlu0 %839
        %841 = vrot.lane.b32.xlu0 %v673, 96
        %v842 = vpop.permute.xlu0 %841
        %843 = vrot.lane.b32.xlu0 %v675, 96
        %v844 = vpop.permute.xlu0 %843
        %v847 = vunpack.c.l.s4 1983009808
        %v848 = vunpack.c.0.s8 %v847
        %v849 = vlaneseq
        %v850 = vshrl.u32 %v849, 7
        %v851 = vsub.s32 %v848, %v850
        %v852 = vrot.slane %v838, %v851
        %v855 = vunpack.c.l.s4 1983009808
        %v856 = vunpack.c.0.s8 %v855
        %v857 = vlaneseq
        %v858 = vshrl.u32 %v857, 7
        %v859 = vsub.s32 %v856, %v858
        %v860 = vrot.slane %v842, %v859
        %v861 = vcombine.low %v852, %v860
        %v862 = vcombine.high %v852, %v860
        %v864 = vunpack.c.l.s4 1934713408
        %v865 = vunpack.c.0.s8 %v864
        %v866 = vlaneseq
        %v867 = vshrl.u32 %v866, 7
        %v868 = vsub.s32 %v865, %v867
        %v869 = vrot.slane %v861, %v868
        %v871 = vunpack.c.l.s4 1934713408
        %v872 = vunpack.c.0.s8 %v871
        %v873 = vlaneseq
        %v874 = vshrl.u32 %v873, 7
        %v875 = vsub.s32 %v872, %v874
        %v876 = vrot.slane %v862, %v875
        %v877 = vcombine.high %v869, 0
        %v878 = vcombine.high %v876, 0
        %v881 = vunpack.c.l.s4 1983009808
        %v882 = vunpack.c.0.s8 %v881
        %v883 = vlaneseq
        %v884 = vshrl.u32 %v883, 7
        %v885 = vsub.s32 %v882, %v884
        %v886 = vrot.slane %v840, %v885
        %v889 = vunpack.c.l.s4 1983009808
        %v890 = vunpack.c.0.s8 %v889
        %v891 = vlaneseq
        %v892 = vshrl.u32 %v891, 7
        %v893 = vsub.s32 %v890, %v892
        %v894 = vrot.slane %v844, %v893
        %v895 = vcombine.low %v886, %v894
        %v896 = vcombine.high %v886, %v894
        %v898 = vunpack.c.l.s4 1934713408
        %v899 = vunpack.c.0.s8 %v898
        %v900 = vlaneseq
        %v901 = vshrl.u32 %v900, 7
        %v902 = vsub.s32 %v899, %v901
        %v903 = vrot.slane %v895, %v902
        %v905 = vunpack.c.l.s4 1934713408
        %v906 = vunpack.c.0.s8 %v905
        %v907 = vlaneseq
        %v908 = vshrl.u32 %v907, 7
        %v909 = vsub.s32 %v906, %v908
        %v910 = vrot.slane %v896, %v909
        %v911 = vcombine.high %v903, 0
        %v912 = vcombine.high %v910, 0
        %v915 = vpack.i.b16 %v903, %v869
        %v917 = vshrl.u32 %v869, 16
        %v918 = vshrl.u32 %v903, 16
        %v919 = vpack.i.b16 %v918, %v917
        %v923 = vpack.i.b16 %v911, %v877
        %v925 = vshrl.u32 %v877, 16
        %v926 = vshrl.u32 %v911, 16
        %v927 = vpack.i.b16 %v926, %v925
        %v931 = vpack.i.b16 %v910, %v876
        %v933 = vshrl.u32 %v876, 16
        %v934 = vshrl.u32 %v910, 16
        %v935 = vpack.i.b16 %v934, %v933
        %v939 = vpack.i.b16 %v912, %v878
        %v941 = vshrl.u32 %v878, 16
        %v942 = vshrl.u32 %v912, 16
        %v943 = vpack.i.b16 %v942, %v941
        %v945 = vcombine.low %v915, %v931
        %v947 = vunpack.c.l.s4 1983009808
        %v948 = vunpack.c.0.s8 %v947
        %v949 = vlaneseq
        %v950 = vshrl.u32 %v949, 7
        %v951 = vsub.s32 %v948, %v950
        %v952 = vrot.slane %v945, %v951
        %v953 = vcombine.low %v923, %v939
        %v955 = vunpack.c.l.s4 1983009808
        %v956 = vunpack.c.0.s8 %v955
        %v957 = vlaneseq
        %v958 = vshrl.u32 %v957, 7
        %v959 = vsub.s32 %v956, %v958
        %v960 = vrot.slane %v953, %v959
        %v961 = vcombine.low %v952, %v960
        %v963 = vunpack.c.l.s4 1934713408
        %v964 = vunpack.c.0.s8 %v963
        %v965 = vlaneseq
        %v966 = vshrl.u32 %v965, 7
        %v967 = vsub.s32 %v964, %v966
        %v968 = vrot.slane %v961, %v967
        %v969 = vcombine.high %v968, 0
        %v970 = vcombine.low %v919, %v935
        %v972 = vunpack.c.l.s4 1983009808
        %v973 = vunpack.c.0.s8 %v972
        %v974 = vlaneseq
        %v975 = vshrl.u32 %v974, 7
        %v976 = vsub.s32 %v973, %v975
        %v977 = vrot.slane %v970, %v976
        %v978 = vcombine.low %v927, %v943
        %v980 = vunpack.c.l.s4 1983009808
        %v981 = vunpack.c.0.s8 %v980
        %v982 = vlaneseq
        %v983 = vshrl.u32 %v982, 7
        %v984 = vsub.s32 %v981, %v983
        %v985 = vrot.slane %v978, %v984
        %v986 = vcombine.low %v977, %v985
        %v988 = vunpack.c.l.s4 1934713408
        %v989 = vunpack.c.0.s8 %v988
        %v990 = vlaneseq
        %v991 = vshrl.u32 %v990, 7
        %v992 = vsub.s32 %v989, %v991
        %v993 = vrot.slane %v986, %v992
        %v994 = vcombine.high %v993, 0
        %v997 = vpack.i.b16 %v993, %v968
        %v998 = vshrl.u32 %v968, 16
        %v999 = vshrl.u32 %v993, 16
        %v1000 = vpack.i.b16 %v999, %v998
        %v1003 = vpack.i.b16 %v994, %v969
        %v1004 = vshrl.u32 %v969, 16
        %v1005 = vshrl.u32 %v994, 16
        %v1006 = vpack.i.b16 %v1005, %v1004
        %1007 = vrot.lane.b32.xlu0 %v668, 64
        %v1008 = vpop.permute.xlu0 %1007
        %1009 = vrot.lane.b32.xlu0 %v671, 64
        %v1010 = vpop.permute.xlu0 %1009
        %1011 = vrot.lane.b32.xlu0 %v673, 64
        %v1012 = vpop.permute.xlu0 %1011
        %1013 = vrot.lane.b32.xlu0 %v675, 64
        %v1014 = vpop.permute.xlu0 %1013
        %v1017 = vunpack.c.l.s4 1983009808
        %v1018 = vunpack.c.0.s8 %v1017
        %v1019 = vlaneseq
        %v1020 = vshrl.u32 %v1019, 7
        %v1021 = vsub.s32 %v1018, %v1020
        %v1022 = vrot.slane %v1008, %v1021
        %v1025 = vunpack.c.l.s4 1983009808
        %v1026 = vunpack.c.0.s8 %v1025
        %v1027 = vlaneseq
        %v1028 = vshrl.u32 %v1027, 7
        %v1029 = vsub.s32 %v1026, %v1028
        %v1030 = vrot.slane %v1012, %v1029
        %v1031 = vcombine.low %v1022, %v1030
        %v1032 = vcombine.high %v1022, %v1030
        %v1034 = vunpack.c.l.s4 1934713408
        %v1035 = vunpack.c.0.s8 %v1034
        %v1036 = vlaneseq
        %v1037 = vshrl.u32 %v1036, 7
        %v1038 = vsub.s32 %v1035, %v1037
        %v1039 = vrot.slane %v1031, %v1038
        %v1041 = vunpack.c.l.s4 1934713408
        %v1042 = vunpack.c.0.s8 %v1041
        %v1043 = vlaneseq
        %v1044 = vshrl.u32 %v1043, 7
        %v1045 = vsub.s32 %v1042, %v1044
        %v1046 = vrot.slane %v1032, %v1045
        %v1047 = vcombine.high %v1039, 0
        %v1048 = vcombine.high %v1046, 0
        %v1051 = vunpack.c.l.s4 1983009808
        %v1052 = vunpack.c.0.s8 %v1051
        %v1053 = vlaneseq
        %v1054 = vshrl.u32 %v1053, 7
        %v1055 = vsub.s32 %v1052, %v1054
        %v1056 = vrot.slane %v1010, %v1055
        %v1059 = vunpack.c.l.s4 1983009808
        %v1060 = vunpack.c.0.s8 %v1059
        %v1061 = vlaneseq
        %v1062 = vshrl.u32 %v1061, 7
        %v1063 = vsub.s32 %v1060, %v1062
        %v1064 = vrot.slane %v1014, %v1063
        %v1065 = vcombine.low %v1056, %v1064
        %v1066 = vcombine.high %v1056, %v1064
        %v1068 = vunpack.c.l.s4 1934713408
        %v1069 = vunpack.c.0.s8 %v1068
        %v1070 = vlaneseq
        %v1071 = vshrl.u32 %v1070, 7
        %v1072 = vsub.s32 %v1069, %v1071
        %v1073 = vrot.slane %v1065, %v1072
        %v1075 = vunpack.c.l.s4 1934713408
        %v1076 = vunpack.c.0.s8 %v1075
        %v1077 = vlaneseq
        %v1078 = vshrl.u32 %v1077, 7
        %v1079 = vsub.s32 %v1076, %v1078
        %v1080 = vrot.slane %v1066, %v1079
        %v1081 = vcombine.high %v1073, 0
        %v1082 = vcombine.high %v1080, 0
        %v1085 = vpack.i.b16 %v1073, %v1039
        %v1087 = vshrl.u32 %v1039, 16
        %v1088 = vshrl.u32 %v1073, 16
        %v1089 = vpack.i.b16 %v1088, %v1087
        %v1093 = vpack.i.b16 %v1081, %v1047
        %v1095 = vshrl.u32 %v1047, 16
        %v1096 = vshrl.u32 %v1081, 16
        %v1097 = vpack.i.b16 %v1096, %v1095
        %v1101 = vpack.i.b16 %v1080, %v1046
        %v1103 = vshrl.u32 %v1046, 16
        %v1104 = vshrl.u32 %v1080, 16
        %v1105 = vpack.i.b16 %v1104, %v1103
        %v1109 = vpack.i.b16 %v1082, %v1048
        %v1111 = vshrl.u32 %v1048, 16
        %v1112 = vshrl.u32 %v1082, 16
        %v1113 = vpack.i.b16 %v1112, %v1111
        %v1115 = vcombine.low %v1085, %v1101
        %v1117 = vunpack.c.l.s4 1983009808
        %v1118 = vunpack.c.0.s8 %v1117
        %v1119 = vlaneseq
        %v1120 = vshrl.u32 %v1119, 7
        %v1121 = vsub.s32 %v1118, %v1120
        %v1122 = vrot.slane %v1115, %v1121
        %v1123 = vcombine.low %v1093, %v1109
        %v1125 = vunpack.c.l.s4 1983009808
        %v1126 = vunpack.c.0.s8 %v1125
        %v1127 = vlaneseq
        %v1128 = vshrl.u32 %v1127, 7
        %v1129 = vsub.s32 %v1126, %v1128
        %v1130 = vrot.slane %v1123, %v1129
        %v1131 = vcombine.low %v1122, %v1130
        %v1133 = vunpack.c.l.s4 1934713408
        %v1134 = vunpack.c.0.s8 %v1133
        %v1135 = vlaneseq
        %v1136 = vshrl.u32 %v1135, 7
        %v1137 = vsub.s32 %v1134, %v1136
        %v1138 = vrot.slane %v1131, %v1137
        %v1139 = vcombine.high %v1138, 0
        %v1140 = vcombine.low %v1089, %v1105
        %v1142 = vunpack.c.l.s4 1983009808
        %v1143 = vunpack.c.0.s8 %v1142
        %v1144 = vlaneseq
        %v1145 = vshrl.u32 %v1144, 7
        %v1146 = vsub.s32 %v1143, %v1145
        %v1147 = vrot.slane %v1140, %v1146
        %v1148 = vcombine.low %v1097, %v1113
        %v1150 = vunpack.c.l.s4 1983009808
        %v1151 = vunpack.c.0.s8 %v1150
        %v1152 = vlaneseq
        %v1153 = vshrl.u32 %v1152, 7
        %v1154 = vsub.s32 %v1151, %v1153
        %v1155 = vrot.slane %v1148, %v1154
        %v1156 = vcombine.low %v1147, %v1155
        %v1158 = vunpack.c.l.s4 1934713408
        %v1159 = vunpack.c.0.s8 %v1158
        %v1160 = vlaneseq
        %v1161 = vshrl.u32 %v1160, 7
        %v1162 = vsub.s32 %v1159, %v1161
        %v1163 = vrot.slane %v1156, %v1162
        %v1164 = vcombine.high %v1163, 0
        %v1167 = vpack.i.b16 %v1163, %v1138
        %v1168 = vshrl.u32 %v1138, 16
        %v1169 = vshrl.u32 %v1163, 16
        %v1170 = vpack.i.b16 %v1169, %v1168
        %v1173 = vpack.i.b16 %v1164, %v1139
        %v1174 = vshrl.u32 %v1139, 16
        %v1175 = vshrl.u32 %v1164, 16
        %v1176 = vpack.i.b16 %v1175, %v1174
        %vm1177 = vcmask 64512
        %v1179 = vsel %vm1177, %v827, 0
        %v1182 = vsel %vm1177, %v997, 0
        %1184 = vmatprep.subr.bf16.mxu0 0
        %1185 = vmatpush1.bf16.xpose.msra.mxu0 0
        %1186 = vmatprep.subr.bf16.mxu0 0
        %1187 = vmatpush1.bf16.xpose.msra.mxu0 0
        %1188 = vmatprep.subr.bf16.mxu0 0
        %1189 = vmatpush1.bf16.xpose.msra.mxu0 0
        %1190 = vmatprep.subr.bf16.mxu0 0
        %1191 = vmatpush1.bf16.xpose.msra.mxu0 0
        %1192 = vmatprep.subr.bf16.mxu0 0
        %1193 = vmatpush1.bf16.xpose.msra.mxu0 0
        %1194 = vmatprep.subr.bf16.mxu0 0
        %1195 = vmatpush1.bf16.xpose.msra.mxu0 0
        %1196 = vmatprep.subr.bf16.mxu0 0
        %1197 = vmatpush1.bf16.xpose.msra.mxu0 0
        %1198 = vmatprep.subr.bf16.mxu0 0
        %1199 = vmatpush1.bf16.xpose.msra.mxu0 %v1182
        %1200 = vmatprep.subr.bf16.mxu0 0
        %1201 = vmatpush2.bf16.xpose.msra.mxu0 0
        %1202 = vmatprep.subr.bf16.mxu0 0
        %1203 = vmatpush2.bf16.xpose.msra.mxu0 0
        %1204 = vmatprep.subr.bf16.mxu0 0
        %1205 = vmatpush2.bf16.xpose.msra.mxu0 0
        %1206 = vmatprep.subr.bf16.mxu0 0
        %1207 = vmatpush2.bf16.xpose.msra.mxu0 0
        %1208 = vmatprep.subr.bf16.mxu0 0
        %1209 = vmatpush2.bf16.xpose.msra.mxu0 0
        %1210 = vmatprep.subr.bf16.mxu0 0
        %1211 = vmatpush2.bf16.xpose.msra.mxu0 0
        %1212 = vmatprep.subr.bf16.mxu0 0
        %1213 = vmatpush2.bf16.xpose.msra.mxu0 0
        %1214 = vmatprep.subr.bf16.mxu0 0
        %1215 = vmatpush2.bf16.xpose.msra.mxu0 0
        %1216 = vmatprep.mubr.bf16.mxu0 0
        %1217 = vmatmul.mubr.bf16.gmra.mxu0 %v1179
        %v1218 = vpop.f32.mrf.mxu0
        %v1219 = vadd.f32 0.0, %v1218
        %v1220 = vpop.f32.mrf.mxu0
        %v1221 = vpop.f32.mrf.mxu0
        %v1222 = vpop.f32.mrf.mxu0
        %1223 = vdwg.mxu0
        %v1225 = vsel %vm1177, %v830, 0
        %v1228 = vsel %vm1177, %v1000, 0
        %1230 = vmatprep.subr.bf16.mxu0 0
        %1231 = vmatpush1.bf16.xpose.msra.mxu0 0
        %1232 = vmatprep.subr.bf16.mxu0 0
        %1233 = vmatpush1.bf16.xpose.msra.mxu0 0
        %1234 = vmatprep.subr.bf16.mxu0 0
        %1235 = vmatpush1.bf16.xpose.msra.mxu0 0
        %1236 = vmatprep.subr.bf16.mxu0 0
        %1237 = vmatpush1.bf16.xpose.msra.mxu0 0
        %1238 = vmatprep.subr.bf16.mxu0 0
        %1239 = vmatpush1.bf16.xpose.msra.mxu0 0
        %1240 = vmatprep.subr.bf16.mxu0 0
        %1241 = vmatpush1.bf16.xpose.msra.mxu0 0
        %1242 = vmatprep.subr.bf16.mxu0 0
        %1243 = vmatpush1.bf16.xpose.msra.mxu0 0
        %1244 = vmatprep.subr.bf16.mxu0 0
        %1245 = vmatpush1.bf16.xpose.msra.mxu0 %v1228
        %1246 = vmatprep.subr.bf16.mxu0 0
        %1247 = vmatpush2.bf16.xpose.msra.mxu0 0
        %1248 = vmatprep.subr.bf16.mxu0 0
        %1249 = vmatpush2.bf16.xpose.msra.mxu0 0
        %1250 = vmatprep.subr.bf16.mxu0 0
        %1251 = vmatpush2.bf16.xpose.msra.mxu0 0
        %1252 = vmatprep.subr.bf16.mxu0 0
        %1253 = vmatpush2.bf16.xpose.msra.mxu0 0
        %1254 = vmatprep.subr.bf16.mxu0 0
        %1255 = vmatpush2.bf16.xpose.msra.mxu0 0
        %1256 = vmatprep.subr.bf16.mxu0 0
        %1257 = vmatpush2.bf16.xpose.msra.mxu0 0
        %1258 = vmatprep.subr.bf16.mxu0 0
        %1259 = vmatpush2.bf16.xpose.msra.mxu0 0
        %1260 = vmatprep.subr.bf16.mxu0 0
        %1261 = vmatpush2.bf16.xpose.msra.mxu0 0
        %1262 = vmatprep.mubr.bf16.mxu0 0
        %1263 = vmatmul.mubr.bf16.gmra.mxu0 %v1225
        %v1264 = vpop.f32.mrf.mxu0
        %v1265 = vadd.f32 0.0, %v1264
        %v1266 = vpop.f32.mrf.mxu0
        %v1267 = vpop.f32.mrf.mxu0
        %v1268 = vpop.f32.mrf.mxu0
        %1269 = vdwg.mxu0
        %v1271 = vsel %vm1177, %v833, 0
        %v1274 = vsel %vm1177, %v1003, 0
        %1276 = vmatprep.subr.bf16.mxu0 0
        %1277 = vmatpush1.bf16.xpose.msra.mxu0 0
        %1278 = vmatprep.subr.bf16.mxu0 0
        %1279 = vmatpush1.bf16.xpose.msra.mxu0 0
        %1280 = vmatprep.subr.bf16.mxu0 0
        %1281 = vmatpush1.bf16.xpose.msra.mxu0 0
        %1282 = vmatprep.subr.bf16.mxu0 0
        %1283 = vmatpush1.bf16.xpose.msra.mxu0 0
        %1284 = vmatprep.subr.bf16.mxu0 0
        %1285 = vmatpush1.bf16.xpose.msra.mxu0 0
        %1286 = vmatprep.subr.bf16.mxu0 0
        %1287 = vmatpush1.bf16.xpose.msra.mxu0 0
        %1288 = vmatprep.subr.bf16.mxu0 0
        %1289 = vmatpush1.bf16.xpose.msra.mxu0 0
        %1290 = vmatprep.subr.bf16.mxu0 0
        %1291 = vmatpush1.bf16.xpose.msra.mxu0 %v1274
        %1292 = vmatprep.subr.bf16.mxu0 0
        %1293 = vmatpush2.bf16.xpose.msra.mxu0 0
        %1294 = vmatprep.subr.bf16.mxu0 0
        %1295 = vmatpush2.bf16.xpose.msra.mxu0 0
        %1296 = vmatprep.subr.bf16.mxu0 0
        %1297 = vmatpush2.bf16.xpose.msra.mxu0 0
        %1298 = vmatprep.subr.bf16.mxu0 0
        %1299 = vmatpush2.bf16.xpose.msra.mxu0 0
        %1300 = vmatprep.subr.bf16.mxu0 0
        %1301 = vmatpush2.bf16.xpose.msra.mxu0 0
        %1302 = vmatprep.subr.bf16.mxu0 0
        %1303 = vmatpush2.bf16.xpose.msra.mxu0 0
        %1304 = vmatprep.subr.bf16.mxu0 0
        %1305 = vmatpush2.bf16.xpose.msra.mxu0 0
        %1306 = vmatprep.subr.bf16.mxu0 0
        %1307 = vmatpush2.bf16.xpose.msra.mxu0 0
        %1308 = vmatprep.mubr.bf16.mxu0 0
        %1309 = vmatmul.mubr.bf16.gmra.mxu0 %v1271
        %v1310 = vpop.f32.mrf.mxu0
        %v1311 = vadd.f32 0.0, %v1310
        %v1312 = vpop.f32.mrf.mxu0
        %v1313 = vpop.f32.mrf.mxu0
        %v1314 = vpop.f32.mrf.mxu0
        %1315 = vdwg.mxu0
        %v1317 = vsel %vm1177, %v836, 0
        %v1320 = vsel %vm1177, %v1006, 0
        %1322 = vmatprep.subr.bf16.mxu0 0
        %1323 = vmatpush1.bf16.xpose.msra.mxu0 0
        %1324 = vmatprep.subr.bf16.mxu0 0
        %1325 = vmatpush1.bf16.xpose.msra.mxu0 0
        %1326 = vmatprep.subr.bf16.mxu0 0
        %1327 = vmatpush1.bf16.xpose.msra.mxu0 0
        %1328 = vmatprep.subr.bf16.mxu0 0
        %1329 = vmatpush1.bf16.xpose.msra.mxu0 0
        %1330 = vmatprep.subr.bf16.mxu0 0
        %1331 = vmatpush1.bf16.xpose.msra.mxu0 0
        %1332 = vmatprep.subr.bf16.mxu0 0
        %1333 = vmatpush1.bf16.xpose.msra.mxu0 0
        %1334 = vmatprep.subr.bf16.mxu0 0
        %1335 = vmatpush1.bf16.xpose.msra.mxu0 0
        %1336 = vmatprep.subr.bf16.mxu0 0
        %1337 = vmatpush1.bf16.xpose.msra.mxu0 %v1320
        %1338 = vmatprep.subr.bf16.mxu0 0
        %1339 = vmatpush2.bf16.xpose.msra.mxu0 0
        %1340 = vmatprep.subr.bf16.mxu0 0
        %1341 = vmatpush2.bf16.xpose.msra.mxu0 0
        %1342 = vmatprep.subr.bf16.mxu0 0
        %1343 = vmatpush2.bf16.xpose.msra.mxu0 0
        %1344 = vmatprep.subr.bf16.mxu0 0
        %1345 = vmatpush2.bf16.xpose.msra.mxu0 0
        %1346 = vmatprep.subr.bf16.mxu0 0
        %1347 = vmatpush2.bf16.xpose.msra.mxu0 0
        %1348 = vmatprep.subr.bf16.mxu0 0
        %1349 = vmatpush2.bf16.xpose.msra.mxu0 0
        %1350 = vmatprep.subr.bf16.mxu0 0
        %1351 = vmatpush2.bf16.xpose.msra.mxu0 0
        %1352 = vmatprep.subr.bf16.mxu0 0
        %1353 = vmatpush2.bf16.xpose.msra.mxu0 0
        %1354 = vmatprep.mubr.bf16.mxu0 0
        %1355 = vmatmul.mubr.bf16.gmra.mxu0 %v1317
        %v1356 = vpop.f32.mrf.mxu0
        %v1357 = vadd.f32 0.0, %v1356
        %v1358 = vpop.f32.mrf.mxu0
        %v1359 = vpop.f32.mrf.mxu0
        %v1360 = vpop.f32.mrf.mxu0
        %1361 = vdwg.mxu0
        %v1362 = vmul.f32 %v1219, 0.35355338
        %v1363 = vmul.f32 %v1265, 0.35355338
        %v1364 = vmul.f32 %v1311, 0.35355338
        %v1365 = vmul.f32 %v1357, 0.35355338
        %vm1366 = vcmp.eq.f32.partialorder %v600, 0.0
        %v1367 = vsel %vm1366, 1, 0
        %vm1368 = vcmp.eq.s32.totalorder %v1367, 1
        %v1369 = vsel %vm1368, -10000.0, %v1362
        %v1370 = vsel %vm1368, -10000.0, %v1363
        %v1371 = vsel %vm1368, -10000.0, %v1364
        %v1372 = vsel %vm1368, -10000.0, %v1365
        %v1373 = vsel %vm1177, %v1369, -inf
        %1374 = vmax.xlane.f32.xlu0 %v1373
        %v1375 = vpop.xlane.xlu0 %1374
        %v1376 = vsel %vm1177, %v1370, -inf
        %1377 = vmax.xlane.f32.xlu0 %v1376
        %v1378 = vpop.xlane.xlu0 %1377
        %v1379 = vsel %vm1177, %v1371, -inf
        %1380 = vmax.xlane.f32.xlu0 %v1379
        %v1381 = vpop.xlane.xlu0 %1380
        %v1382 = vsel %vm1177, %v1372, -inf
        %1383 = vmax.xlane.f32.xlu0 %v1382
        %v1384 = vpop.xlane.xlu0 %1383
        %v1385 = vsub.f32 %v1369, %v1375
        %v1386 = vsub.f32 %v1370, %v1378
        %v1387 = vsub.f32 %v1371, %v1381
        %v1388 = vsub.f32 %v1372, %v1384
        %v1389 = vmul.f32 %v1385, 1.442695
        %v1390 = vpow.pop %v1389
        %v1391 = vmul.f32 %v1386, 1.442695
        %v1392 = vpow.pop %v1391
        %v1393 = vmul.f32 %v1387, 1.442695
        %v1394 = vpow.pop %v1393
        %v1395 = vmul.f32 %v1388, 1.442695
        %v1396 = vpow.pop %v1395
        %v1397 = vsel %vm1177, %v1390, 0.0
        %1398 = vadd.xlane.f32.xlu0 %v1397
        %v1399 = vpop.xlane.xlu0 %1398
        %v1400 = vsel %vm1177, %v1392, 0.0
        %1401 = vadd.xlane.f32.xlu0 %v1400
        %v1402 = vpop.xlane.xlu0 %1401
        %v1403 = vsel %vm1177, %v1394, 0.0
        %1404 = vadd.xlane.f32.xlu0 %v1403
        %v1405 = vpop.xlane.xlu0 %1404
        %v1406 = vsel %vm1177, %v1396, 0.0
        %1407 = vadd.xlane.f32.xlu0 %v1406
        %v1408 = vpop.xlane.xlu0 %1407
        %v1409 = vrcp.pop %v1399
        %v1410 = vmul.f32 %v1390, %v1409
        %v1411 = vrcp.pop %v1402
        %v1412 = vmul.f32 %v1392, %v1411
        %v1413 = vrcp.pop %v1405
        %v1414 = vmul.f32 %v1394, %v1413
        %v1415 = vrcp.pop %v1408
        %v1416 = vmul.f32 %v1396, %v1415
        %v1417 = vcombine.low %v1410, %v1414
        %v1418 = vcombine.high %v1410, %v1414
        %v1420 = vunpack.c.l.s4 1983009808
        %v1421 = vunpack.c.0.s8 %v1420
        %v1422 = vlaneseq
        %v1423 = vshrl.u32 %v1422, 7
        %v1424 = vsub.s32 %v1421, %v1423
        %v1425 = vrot.slane %v1417, %v1424
        %v1427 = vunpack.c.l.s4 1983009808
        %v1428 = vunpack.c.0.s8 %v1427
        %v1429 = vlaneseq
        %v1430 = vshrl.u32 %v1429, 7
        %v1431 = vsub.s32 %v1428, %v1430
        %v1432 = vrot.slane %v1418, %v1431
        %v1433 = vcombine.low %v1412, %v1416
        %v1434 = vcombine.high %v1412, %v1416
        %v1436 = vunpack.c.l.s4 1983009808
        %v1437 = vunpack.c.0.s8 %v1436
        %v1438 = vlaneseq
        %v1439 = vshrl.u32 %v1438, 7
        %v1440 = vsub.s32 %v1437, %v1439
        %v1441 = vrot.slane %v1433, %v1440
        %v1443 = vunpack.c.l.s4 1983009808
        %v1444 = vunpack.c.0.s8 %v1443
        %v1445 = vlaneseq
        %v1446 = vshrl.u32 %v1445, 7
        %v1447 = vsub.s32 %v1444, %v1446
        %v1448 = vrot.slane %v1434, %v1447
        %v1449 = vcombine.low %v1425, %v1441
        %v1450 = vcombine.high %v1425, %v1441
        %v1452 = vunpack.c.l.s4 1934713408
        %v1453 = vunpack.c.0.s8 %v1452
        %v1454 = vlaneseq
        %v1455 = vshrl.u32 %v1454, 7
        %v1456 = vsub.s32 %v1453, %v1455
        %v1457 = vrot.slane %v1449, %v1456
        %v1459 = vunpack.c.l.s4 1934713408
        %v1460 = vunpack.c.0.s8 %v1459
        %v1461 = vlaneseq
        %v1462 = vshrl.u32 %v1461, 7
        %v1463 = vsub.s32 %v1460, %v1462
        %v1464 = vrot.slane %v1450, %v1463
        %v1465 = vcombine.low %v1432, %v1448
        %v1466 = vcombine.high %v1432, %v1448
        %v1468 = vunpack.c.l.s4 1934713408
        %v1469 = vunpack.c.0.s8 %v1468
        %v1470 = vlaneseq
        %v1471 = vshrl.u32 %v1470, 7
        %v1472 = vsub.s32 %v1469, %v1471
        %v1473 = vrot.slane %v1465, %v1472
        %v1475 = vunpack.c.l.s4 1934713408
        %v1476 = vunpack.c.0.s8 %v1475
        %v1477 = vlaneseq
        %v1478 = vshrl.u32 %v1477, 7
        %v1479 = vsub.s32 %v1476, %v1478
        %v1480 = vrot.slane %v1466, %v1479
        %v1481 = vcombine.high %v1457, 0.0
        %v1482 = vcombine.high %v1464, 0.0
        %v1483 = vcombine.high %v1473, 0.0
        %v1484 = vcombine.high %v1480, 0.0
        %v1485 = vcombine.low %v1457, %v1464
        %v1487 = vunpack.c.l.s4 1983009808
        %v1488 = vunpack.c.0.s8 %v1487
        %v1489 = vlaneseq
        %v1490 = vshrl.u32 %v1489, 7
        %v1491 = vsub.s32 %v1488, %v1490
        %v1492 = vrot.slane %v1485, %v1491
        %v1493 = vcombine.low %v1481, %v1482
        %v1495 = vunpack.c.l.s4 1983009808
        %v1496 = vunpack.c.0.s8 %v1495
        %v1497 = vlaneseq
        %v1498 = vshrl.u32 %v1497, 7
        %v1499 = vsub.s32 %v1496, %v1498
        %v1500 = vrot.slane %v1493, %v1499
        %v1501 = vcombine.low %v1473, %v1480
        %v1503 = vunpack.c.l.s4 1983009808
        %v1504 = vunpack.c.0.s8 %v1503
        %v1505 = vlaneseq
        %v1506 = vshrl.u32 %v1505, 7
        %v1507 = vsub.s32 %v1504, %v1506
        %v1508 = vrot.slane %v1501, %v1507
        %v1509 = vcombine.low %v1483, %v1484
        %v1511 = vunpack.c.l.s4 1983009808
        %v1512 = vunpack.c.0.s8 %v1511
        %v1513 = vlaneseq
        %v1514 = vshrl.u32 %v1513, 7
        %v1515 = vsub.s32 %v1512, %v1514
        %v1516 = vrot.slane %v1509, %v1515
        %v1517 = vcombine.low %v1492, %v1500
        %v1518 = vcombine.high %v1492, %v1500
        %v1520 = vunpack.c.l.s4 1934713408
        %v1521 = vunpack.c.0.s8 %v1520
        %v1522 = vlaneseq
        %v1523 = vshrl.u32 %v1522, 7
        %v1524 = vsub.s32 %v1521, %v1523
        %v1525 = vrot.slane %v1517, %v1524
        %v1527 = vunpack.c.l.s4 1934713408
        %v1528 = vunpack.c.0.s8 %v1527
        %v1529 = vlaneseq
        %v1530 = vshrl.u32 %v1529, 7
        %v1531 = vsub.s32 %v1528, %v1530
        %v1532 = vrot.slane %v1518, %v1531
        %v1533 = vcombine.low %v1508, %v1516
        %v1534 = vcombine.high %v1508, %v1516
        %v1536 = vunpack.c.l.s4 1934713408
        %v1537 = vunpack.c.0.s8 %v1536
        %v1538 = vlaneseq
        %v1539 = vshrl.u32 %v1538, 7
        %v1540 = vsub.s32 %v1537, %v1539
        %v1541 = vrot.slane %v1533, %v1540
        %v1543 = vunpack.c.l.s4 1934713408
        %v1544 = vunpack.c.0.s8 %v1543
        %v1545 = vlaneseq
        %v1546 = vshrl.u32 %v1545, 7
        %v1547 = vsub.s32 %v1544, %v1546
        %v1548 = vrot.slane %v1534, %v1547
        %v1549 = vcombine.low %v1525, %v1541
        %v1550 = vcombine.high %v1525, %v1541
        %v1551 = vcombine.low %v1532, %v1548
        %v1552 = vcombine.high %v1532, %v1548
        %1554 = vrot.lane.b32.xlu0 %v1550, 8
        %v1555 = vpop.permute.xlu0 %1554
        %1558 = vrot.lane.b32.xlu0 %v1551, 16
        %v1559 = vpop.permute.xlu0 %1558
        %1562 = vrot.lane.b32.xlu0 %v1552, 24
        %v1563 = vpop.permute.xlu0 %1562
        %v1565 = vsel %vm1177, %v1549, %v1555
        %vm1566 = vcmask 130048
        %v1567 = vsel %vm1566, %v1565, %v1559
        %vm1568 = vcmask 195584
        %v1569 = vsel %vm1568, %v1567, %v1563
        %1570 = vst.msk [vmem:[%s575] sm:$0xff] %vm624, %v1569
        %v1571 = vpack.c.bf16 %v1410, %v1410
        %v1572 = vpack.c.bf16 %v1412, %v1412
        %v1573 = vpack.c.bf16 %v1414, %v1414
        %v1574 = vpack.c.bf16 %v1416, %v1416
        %v1576 = vsel %vm1177, %v1571, 0
        %vm1578 = vcmask 1043456
        %v1580 = vsel %vm1578, %v1167, 0
        %1582 = vmatprep.subr.bf16.mxu0 0
        %1583 = vmatpush1.bf16.msra.mxu0 0
        %1584 = vmatprep.subr.bf16.mxu0 0
        %1585 = vmatpush1.bf16.msra.mxu0 0
        %1586 = vmatprep.subr.bf16.mxu0 0
        %1587 = vmatpush1.bf16.msra.mxu0 0
        %1588 = vmatprep.subr.bf16.mxu0 0
        %1589 = vmatpush1.bf16.msra.mxu0 0
        %1590 = vmatprep.subr.bf16.mxu0 0
        %1591 = vmatpush1.bf16.msra.mxu0 0
        %1592 = vmatprep.subr.bf16.mxu0 0
        %1593 = vmatpush1.bf16.msra.mxu0 0
        %1594 = vmatprep.subr.bf16.mxu0 0
        %1595 = vmatpush1.bf16.msra.mxu0 0
        %1596 = vmatprep.subr.bf16.mxu0 0
        %1597 = vmatpush1.bf16.msra.mxu0 %v1580
        %1598 = vmatprep.subr.bf16.mxu0 0
        %1599 = vmatpush2.bf16.msra.mxu0 0
        %1600 = vmatprep.subr.bf16.mxu0 0
        %1601 = vmatpush2.bf16.msra.mxu0 0
        %1602 = vmatprep.subr.bf16.mxu0 0
        %1603 = vmatpush2.bf16.msra.mxu0 0
        %1604 = vmatprep.subr.bf16.mxu0 0
        %1605 = vmatpush2.bf16.msra.mxu0 0
        %1606 = vmatprep.subr.bf16.mxu0 0
        %1607 = vmatpush2.bf16.msra.mxu0 0
        %1608 = vmatprep.subr.bf16.mxu0 0
        %1609 = vmatpush2.bf16.msra.mxu0 0
        %1610 = vmatprep.subr.bf16.mxu0 0
        %1611 = vmatpush2.bf16.msra.mxu0 0
        %1612 = vmatprep.subr.bf16.mxu0 0
        %1613 = vmatpush2.bf16.msra.mxu0 0
        %1614 = vmatprep.mubr.bf16.mxu0 0
        %1615 = vmatmul.mubr.bf16.gmra.mxu0 %v1576
        %v1616 = vpop.f32.mrf.mxu0
        %v1617 = vadd.f32 0.0, %v1616
        %v1618 = vpop.f32.mrf.mxu0
        %v1619 = vpop.f32.mrf.mxu0
        %v1620 = vpop.f32.mrf.mxu0
        %1621 = vdwg.mxu0
        %v1623 = vsel %vm1177, %v1572, 0
        %v1626 = vsel %vm1578, %v1170, 0
        %1628 = vmatprep.subr.bf16.mxu0 0
        %1629 = vmatpush1.bf16.msra.mxu0 0
        %1630 = vmatprep.subr.bf16.mxu0 0
        %1631 = vmatpush1.bf16.msra.mxu0 0
        %1632 = vmatprep.subr.bf16.mxu0 0
        %1633 = vmatpush1.bf16.msra.mxu0 0
        %1634 = vmatprep.subr.bf16.mxu0 0
        %1635 = vmatpush1.bf16.msra.mxu0 0
        %1636 = vmatprep.subr.bf16.mxu0 0
        %1637 = vmatpush1.bf16.msra.mxu0 0
        %1638 = vmatprep.subr.bf16.mxu0 0
        %1639 = vmatpush1.bf16.msra.mxu0 0
        %1640 = vmatprep.subr.bf16.mxu0 0
        %1641 = vmatpush1.bf16.msra.mxu0 0
        %1642 = vmatprep.subr.bf16.mxu0 0
        %1643 = vmatpush1.bf16.msra.mxu0 %v1626
        %1644 = vmatprep.subr.bf16.mxu0 0
        %1645 = vmatpush2.bf16.msra.mxu0 0
        %1646 = vmatprep.subr.bf16.mxu0 0
        %1647 = vmatpush2.bf16.msra.mxu0 0
        %1648 = vmatprep.subr.bf16.mxu0 0
        %1649 = vmatpush2.bf16.msra.mxu0 0
        %1650 = vmatprep.subr.bf16.mxu0 0
        %1651 = vmatpush2.bf16.msra.mxu0 0
        %1652 = vmatprep.subr.bf16.mxu0 0
        %1653 = vmatpush2.bf16.msra.mxu0 0
        %1654 = vmatprep.subr.bf16.mxu0 0
        %1655 = vmatpush2.bf16.msra.mxu0 0
        %1656 = vmatprep.subr.bf16.mxu0 0
        %1657 = vmatpush2.bf16.msra.mxu0 0
        %1658 = vmatprep.subr.bf16.mxu0 0
        %1659 = vmatpush2.bf16.msra.mxu0 0
        %1660 = vmatprep.mubr.bf16.mxu0 0
        %1661 = vmatmul.mubr.bf16.gmra.mxu0 %v1623
        %v1662 = vpop.f32.mrf.mxu0
        %v1663 = vadd.f32 0.0, %v1662
        %v1664 = vpop.f32.mrf.mxu0
        %v1665 = vpop.f32.mrf.mxu0
        %v1666 = vpop.f32.mrf.mxu0
        %1667 = vdwg.mxu0
        %v1669 = vsel %vm1177, %v1573, 0
        %v1672 = vsel %vm1578, %v1173, 0
        %1674 = vmatprep.subr.bf16.mxu0 0
        %1675 = vmatpush1.bf16.msra.mxu0 0
        %1676 = vmatprep.subr.bf16.mxu0 0
        %1677 = vmatpush1.bf16.msra.mxu0 0
        %1678 = vmatprep.subr.bf16.mxu0 0
        %1679 = vmatpush1.bf16.msra.mxu0 0
        %1680 = vmatprep.subr.bf16.mxu0 0
        %1681 = vmatpush1.bf16.msra.mxu0 0
        %1682 = vmatprep.subr.bf16.mxu0 0
        %1683 = vmatpush1.bf16.msra.mxu0 0
        %1684 = vmatprep.subr.bf16.mxu0 0
        %1685 = vmatpush1.bf16.msra.mxu0 0
        %1686 = vmatprep.subr.bf16.mxu0 0
        %1687 = vmatpush1.bf16.msra.mxu0 0
        %1688 = vmatprep.subr.bf16.mxu0 0
        %1689 = vmatpush1.bf16.msra.mxu0 %v1672
        %1690 = vmatprep.subr.bf16.mxu0 0
        %1691 = vmatpush2.bf16.msra.mxu0 0
        %1692 = vmatprep.subr.bf16.mxu0 0
        %1693 = vmatpush2.bf16.msra.mxu0 0
        %1694 = vmatprep.subr.bf16.mxu0 0
        %1695 = vmatpush2.bf16.msra.mxu0 0
        %1696 = vmatprep.subr.bf16.mxu0 0
        %1697 = vmatpush2.bf16.msra.mxu0 0
        %1698 = vmatprep.subr.bf16.mxu0 0
        %1699 = vmatpush2.bf16.msra.mxu0 0
        %1700 = vmatprep.subr.bf16.mxu0 0
        %1701 = vmatpush2.bf16.msra.mxu0 0
        %1702 = vmatprep.subr.bf16.mxu0 0
        %1703 = vmatpush2.bf16.msra.mxu0 0
        %1704 = vmatprep.subr.bf16.mxu0 0
        %1705 = vmatpush2.bf16.msra.mxu0 0
        %1706 = vmatprep.mubr.bf16.mxu0 0
        %1707 = vmatmul.mubr.bf16.gmra.mxu0 %v1669
        %v1708 = vpop.f32.mrf.mxu0
        %v1709 = vadd.f32 0.0, %v1708
        %v1710 = vpop.f32.mrf.mxu0
        %v1711 = vpop.f32.mrf.mxu0
        %v1712 = vpop.f32.mrf.mxu0
        %1713 = vdwg.mxu0
        %v1715 = vsel %vm1177, %v1574, 0
        %v1718 = vsel %vm1578, %v1176, 0
        %1720 = vmatprep.subr.bf16.mxu0 0
        %1721 = vmatpush1.bf16.msra.mxu0 0
        %1722 = vmatprep.subr.bf16.mxu0 0
        %1723 = vmatpush1.bf16.msra.mxu0 0
        %1724 = vmatprep.subr.bf16.mxu0 0
        %1725 = vmatpush1.bf16.msra.mxu0 0
        %1726 = vmatprep.subr.bf16.mxu0 0
        %1727 = vmatpush1.bf16.msra.mxu0 0
        %1728 = vmatprep.subr.bf16.mxu0 0
        %1729 = vmatpush1.bf16.msra.mxu0 0
        %1730 = vmatprep.subr.bf16.mxu0 0
        %1731 = vmatpush1.bf16.msra.mxu0 0
        %1732 = vmatprep.subr.bf16.mxu0 0
        %1733 = vmatpush1.bf16.msra.mxu0 0
        %1734 = vmatprep.subr.bf16.mxu0 0
        %1735 = vmatpush1.bf16.msra.mxu0 %v1718
        %1736 = vmatprep.subr.bf16.mxu0 0
        %1737 = vmatpush2.bf16.msra.mxu0 0
        %1738 = vmatprep.subr.bf16.mxu0 0
        %1739 = vmatpush2.bf16.msra.mxu0 0
        %1740 = vmatprep.subr.bf16.mxu0 0
        %1741 = vmatpush2.bf16.msra.mxu0 0
        %1742 = vmatprep.subr.bf16.mxu0 0
        %1743 = vmatpush2.bf16.msra.mxu0 0
        %1744 = vmatprep.subr.bf16.mxu0 0
        %1745 = vmatpush2.bf16.msra.mxu0 0
        %1746 = vmatprep.subr.bf16.mxu0 0
        %1747 = vmatpush2.bf16.msra.mxu0 0
        %1748 = vmatprep.subr.bf16.mxu0 0
        %1749 = vmatpush2.bf16.msra.mxu0 0
        %1750 = vmatprep.subr.bf16.mxu0 0
        %1751 = vmatpush2.bf16.msra.mxu0 0
        %1752 = vmatprep.mubr.bf16.mxu0 0
        %1753 = vmatmul.mubr.bf16.gmra.mxu0 %v1715
        %v1754 = vpop.f32.mrf.mxu0
        %v1755 = vadd.f32 0.0, %v1754
        %v1756 = vpop.f32.mrf.mxu0
        %v1757 = vpop.f32.mrf.mxu0
        %v1758 = vpop.f32.mrf.mxu0
        %1759 = vdwg.mxu0
        %v1760 = vcombine.low %v1617, %v1709
        %v1761 = vcombine.high %v1617, %v1709
        %v1763 = vunpack.c.l.s4 1983009808
        %v1764 = vunpack.c.0.s8 %v1763
        %v1765 = vlaneseq
        %v1766 = vshrl.u32 %v1765, 7
        %v1767 = vsub.s32 %v1764, %v1766
        %v1768 = vrot.slane %v1760, %v1767
        %v1770 = vunpack.c.l.s4 1983009808
        %v1771 = vunpack.c.0.s8 %v1770
        %v1772 = vlaneseq
        %v1773 = vshrl.u32 %v1772, 7
        %v1774 = vsub.s32 %v1771, %v1773
        %v1775 = vrot.slane %v1761, %v1774
        %v1776 = vcombine.low %v1663, %v1755
        %v1777 = vcombine.high %v1663, %v1755
        %v1779 = vunpack.c.l.s4 1983009808
        %v1780 = vunpack.c.0.s8 %v1779
        %v1781 = vlaneseq
        %v1782 = vshrl.u32 %v1781, 7
        %v1783 = vsub.s32 %v1780, %v1782
        %v1784 = vrot.slane %v1776, %v1783
        %v1786 = vunpack.c.l.s4 1983009808
        %v1787 = vunpack.c.0.s8 %v1786
        %v1788 = vlaneseq
        %v1789 = vshrl.u32 %v1788, 7
        %v1790 = vsub.s32 %v1787, %v1789
        %v1791 = vrot.slane %v1777, %v1790
        %v1792 = vcombine.low %v1768, %v1784
        %v1793 = vcombine.high %v1768, %v1784
        %v1795 = vunpack.c.l.s4 1934713408
        %v1796 = vunpack.c.0.s8 %v1795
        %v1797 = vlaneseq
        %v1798 = vshrl.u32 %v1797, 7
        %v1799 = vsub.s32 %v1796, %v1798
        %v1800 = vrot.slane %v1792, %v1799
        %v1802 = vunpack.c.l.s4 1934713408
        %v1803 = vunpack.c.0.s8 %v1802
        %v1804 = vlaneseq
        %v1805 = vshrl.u32 %v1804, 7
        %v1806 = vsub.s32 %v1803, %v1805
        %v1807 = vrot.slane %v1793, %v1806
        %v1808 = vcombine.low %v1775, %v1791
        %v1809 = vcombine.high %v1775, %v1791
        %v1811 = vunpack.c.l.s4 1934713408
        %v1812 = vunpack.c.0.s8 %v1811
        %v1813 = vlaneseq
        %v1814 = vshrl.u32 %v1813, 7
        %v1815 = vsub.s32 %v1812, %v1814
        %v1816 = vrot.slane %v1808, %v1815
        %v1818 = vunpack.c.l.s4 1934713408
        %v1819 = vunpack.c.0.s8 %v1818
        %v1820 = vlaneseq
        %v1821 = vshrl.u32 %v1820, 7
        %v1822 = vsub.s32 %v1819, %v1821
        %v1823 = vrot.slane %v1809, %v1822
        %v1824 = vcombine.high %v1800, 0.0
        %v1825 = vcombine.high %v1807, 0.0
        %v1826 = vcombine.high %v1816, 0.0
        %v1827 = vcombine.high %v1823, 0.0
        %v1828 = vcombine.low %v1800, %v1807
        %v1830 = vunpack.c.l.s4 1983009808
        %v1831 = vunpack.c.0.s8 %v1830
        %v1832 = vlaneseq
        %v1833 = vshrl.u32 %v1832, 7
        %v1834 = vsub.s32 %v1831, %v1833
        %v1835 = vrot.slane %v1828, %v1834
        %v1836 = vcombine.low %v1824, %v1825
        %v1838 = vunpack.c.l.s4 1983009808
        %v1839 = vunpack.c.0.s8 %v1838
        %v1840 = vlaneseq
        %v1841 = vshrl.u32 %v1840, 7
        %v1842 = vsub.s32 %v1839, %v1841
        %v1843 = vrot.slane %v1836, %v1842
        %v1844 = vcombine.low %v1816, %v1823
        %v1846 = vunpack.c.l.s4 1983009808
        %v1847 = vunpack.c.0.s8 %v1846
        %v1848 = vlaneseq
        %v1849 = vshrl.u32 %v1848, 7
        %v1850 = vsub.s32 %v1847, %v1849
        %v1851 = vrot.slane %v1844, %v1850
        %v1852 = vcombine.low %v1826, %v1827
        %v1854 = vunpack.c.l.s4 1983009808
        %v1855 = vunpack.c.0.s8 %v1854
        %v1856 = vlaneseq
        %v1857 = vshrl.u32 %v1856, 7
        %v1858 = vsub.s32 %v1855, %v1857
        %v1859 = vrot.slane %v1852, %v1858
        %v1860 = vcombine.low %v1835, %v1843
        %v1861 = vcombine.high %v1835, %v1843
        %v1863 = vunpack.c.l.s4 1934713408
        %v1864 = vunpack.c.0.s8 %v1863
        %v1865 = vlaneseq
        %v1866 = vshrl.u32 %v1865, 7
        %v1867 = vsub.s32 %v1864, %v1866
        %v1868 = vrot.slane %v1860, %v1867
        %v1870 = vunpack.c.l.s4 1934713408
        %v1871 = vunpack.c.0.s8 %v1870
        %v1872 = vlaneseq
        %v1873 = vshrl.u32 %v1872, 7
        %v1874 = vsub.s32 %v1871, %v1873
        %v1875 = vrot.slane %v1861, %v1874
        %v1876 = vcombine.low %v1851, %v1859
        %v1877 = vcombine.high %v1851, %v1859
        %v1879 = vunpack.c.l.s4 1934713408
        %v1880 = vunpack.c.0.s8 %v1879
        %v1881 = vlaneseq
        %v1882 = vshrl.u32 %v1881, 7
        %v1883 = vsub.s32 %v1880, %v1882
        %v1884 = vrot.slane %v1876, %v1883
        %v1886 = vunpack.c.l.s4 1934713408
        %v1887 = vunpack.c.0.s8 %v1886
        %v1888 = vlaneseq
        %v1889 = vshrl.u32 %v1888, 7
        %v1890 = vsub.s32 %v1887, %v1889
        %v1891 = vrot.slane %v1877, %v1890
        %v1892 = vcombine.low %v1868, %v1884
        %v1893 = vcombine.high %v1868, %v1884
        %v1894 = vcombine.low %v1875, %v1891
        %v1895 = vcombine.high %v1875, %v1891
        %1897 = vrot.lane.b32.xlu0 %v1893, 8
        %v1898 = vpop.permute.xlu0 %1897
        %1901 = vrot.lane.b32.xlu0 %v1894, 16
        %v1902 = vpop.permute.xlu0 %1901
        %1905 = vrot.lane.b32.xlu0 %v1895, 24
        %v1906 = vpop.permute.xlu0 %1905
        %v1908 = vsel %vm1177, %v1892, %v1898
        %v1909 = vsel %vm1566, %v1908, %v1902
        %v1910 = vsel %vm1568, %v1909, %v1906
        %v1911 = vld [vmem:[%s5] sm:$0xf]
        %v1912 = vld [vmem:[%s5 + $0x4] sm:$0xf]
        %v1913 = vld [vmem:[%s5 + $0x8] sm:$0xf]
        %v1914 = vld [vmem:[%s5 + $0xc] sm:$0xf]
        %v1915 = vld [vmem:[#allocation8 + $0x3] sm:$0x1]
        %v1916 = vpack.c.bf16 %v1910, %v1910
        %v1917 = vlaneseq
        %v1918 = vshrl.u32 %v1917, 7
        %v1919 = vsub.s32 0, %v1918
        %v1920 = vrot.slane %v1915, %v1919
        %v1925 = vunpack.c.l.b16 %v1911
        %v1926 = vunpack.c.l.b16 %v1912
        %v1927 = vunpack.c.l.b16 %v1913
        %v1928 = vunpack.c.l.b16 %v1914
        %v1929 = vpack.c.b16 %v1926, %v1925
        %v1930 = vpack.c.b16 %v1928, %v1927
        %v1934 = vsel %vm624, %v1916, 0
        %1936 = vmatprep.subr.bf16.mxu0 0
        %1937 = vmatpush1.bf16.msra.mxu0 0
        %1938 = vmatprep.subr.bf16.mxu0 0
        %1939 = vmatpush1.bf16.msra.mxu0 0
        %1940 = vmatprep.subr.bf16.mxu0 0
        %1941 = vmatpush1.bf16.msra.mxu0 0
        %1942 = vmatprep.subr.bf16.mxu0 0
        %1943 = vmatpush1.bf16.msra.mxu0 0
        %1944 = vmatprep.subr.bf16.mxu0 0
        %1945 = vmatpush1.bf16.msra.mxu0 0
        %1946 = vmatprep.subr.bf16.mxu0 0
        %1947 = vmatpush1.bf16.msra.mxu0 0
        %1948 = vmatprep.subr.bf16.mxu0 0
        %1949 = vmatpush1.bf16.msra.mxu0 %v1930
        %1950 = vmatprep.subr.bf16.mxu0 0
        %1951 = vmatpush1.bf16.msra.mxu0 %v1929
        %1952 = vmatprep.subr.bf16.mxu0 0
        %1953 = vmatpush2.bf16.msra.mxu0 0
        %1954 = vmatprep.subr.bf16.mxu0 0
        %1955 = vmatpush2.bf16.msra.mxu0 0
        %1956 = vmatprep.subr.bf16.mxu0 0
        %1957 = vmatpush2.bf16.msra.mxu0 0
        %1958 = vmatprep.subr.bf16.mxu0 0
        %1959 = vmatpush2.bf16.msra.mxu0 0
        %1960 = vmatprep.subr.bf16.mxu0 0
        %1961 = vmatpush2.bf16.msra.mxu0 0
        %1962 = vmatprep.subr.bf16.mxu0 0
        %1963 = vmatpush2.bf16.msra.mxu0 0
        %1964 = vmatprep.subr.bf16.mxu0 0
        %1965 = vmatpush2.bf16.msra.mxu0 0
        %1966 = vmatprep.subr.bf16.mxu0 0
        %1967 = vmatpush2.bf16.msra.mxu0 0
        %1968 = vmatprep.mubr.bf16.mxu0 0
        %1969 = vmatmul.mubr.bf16.gmra.mxu0 %v1934
        %v1970 = vpop.f32.mrf.mxu0
        %v1971 = vadd.f32 %v1920, %v1970
        %v1972 = vpop.f32.mrf.mxu0
        %v1973 = vpop.f32.mrf.mxu0
        %v1974 = vpop.f32.mrf.mxu0
        %1975 = vdwg.mxu0
        %v1976 = vadd.f32 %v597, %v1971
        %v1977 = vld [vmem:[#allocation8 + $0x7] sm:$0x1]
        %v1978 = vld [vmem:[#allocation8 + $0x8] sm:$0x1]
        %v1979 = vsel %vm624, %v1976, 0.0
        %1980 = vadd.xlane.f32.xlu0 %v1979
        %v1981 = vpop.xlane.xlu0 %1980
        %v1982 = vrcp.pop 32.0
        %v1983 = vmul.f32 %v1981, %v1982
        %v1984 = vsub.f32 %v1976, %v1983
        %v1985 = vmul.f32 %v1984, %v1984
        %v1986 = vsel %vm624, %v1985, 0.0
        %1987 = vadd.xlane.f32.xlu0 %v1986
        %v1988 = vpop.xlane.xlu0 %1987
        %v1989 = vmul.f32 %v1988, %v1982
        %v1990 = vadd.f32 %v1989, 1e-05
        %v1991 = vrsqrt.pop %v1990
        %v1992 = vmul.f32 %v1984, %v1991
        %v1993 = vlaneseq
        %v1994 = vshrl.u32 %v1993, 7
        %v1995 = vsub.s32 0, %v1994
        %v1996 = vrot.slane %v1977, %v1995
        %v1997 = vmul.f32 %v1992, %v1996
        %v1998 = vlaneseq
        %v1999 = vshrl.u32 %v1998, 7
        %v2000 = vsub.s32 0, %v1999
        %v2001 = vrot.slane %v1978, %v2000
        %v2002 = vadd.f32 %v1997, %v2001
        %v2003 = vld [vmem:[%s6] sm:$0xf]
        %v2004 = vld [vmem:[%s6 + $0x4] sm:$0xf]
        %v2005 = vld [vmem:[%s6 + $0x8] sm:$0xf]
        %v2006 = vld [vmem:[%s6 + $0xc] sm:$0xf]
        %v2007 = vld [vmem:[#allocation8 + $0x1] sm:$0x1]
        %v2008 = vpack.c.bf16 %v2002, %v2002
        %v2009 = vlaneseq
        %v2010 = vshrl.u32 %v2009, 7
        %v2011 = vsub.s32 0, %v2010
        %v2012 = vrot.slane %v2007, %v2011
        %v2017 = vunpack.c.l.b16 %v2003
        %v2018 = vunpack.c.l.b16 %v2004
        %v2019 = vunpack.c.l.b16 %v2005
        %v2020 = vunpack.c.l.b16 %v2006
        %v2021 = vpack.c.b16 %v2018, %v2017
        %v2022 = vpack.c.b16 %v2020, %v2019
        %v2026 = vsel %vm624, %v2008, 0
        %2028 = vmatprep.subr.bf16.mxu0 0
        %2029 = vmatpush1.bf16.msra.mxu0 0
        %2030 = vmatprep.subr.bf16.mxu0 0
        %2031 = vmatpush1.bf16.msra.mxu0 0
        %2032 = vmatprep.subr.bf16.mxu0 0
        %2033 = vmatpush1.bf16.msra.mxu0 0
        %2034 = vmatprep.subr.bf16.mxu0 0
        %2035 = vmatpush1.bf16.msra.mxu0 0
        %2036 = vmatprep.subr.bf16.mxu0 0
        %2037 = vmatpush1.bf16.msra.mxu0 0
        %2038 = vmatprep.subr.bf16.mxu0 0
        %2039 = vmatpush1.bf16.msra.mxu0 0
        %2040 = vmatprep.subr.bf16.mxu0 0
        %2041 = vmatpush1.bf16.msra.mxu0 %v2022
        %2042 = vmatprep.subr.bf16.mxu0 0
        %2043 = vmatpush1.bf16.msra.mxu0 %v2021
        %2044 = vmatprep.subr.bf16.mxu0 0
        %2045 = vmatpush2.bf16.msra.mxu0 0
        %2046 = vmatprep.subr.bf16.mxu0 0
        %2047 = vmatpush2.bf16.msra.mxu0 0
        %2048 = vmatprep.subr.bf16.mxu0 0
        %2049 = vmatpush2.bf16.msra.mxu0 0
        %2050 = vmatprep.subr.bf16.mxu0 0
        %2051 = vmatpush2.bf16.msra.mxu0 0
        %2052 = vmatprep.subr.bf16.mxu0 0
        %2053 = vmatpush2.bf16.msra.mxu0 0
        %2054 = vmatprep.subr.bf16.mxu0 0
        %2055 = vmatpush2.bf16.msra.mxu0 0
        %2056 = vmatprep.subr.bf16.mxu0 0
        %2057 = vmatpush2.bf16.msra.mxu0 0
        %2058 = vmatprep.subr.bf16.mxu0 0
        %2059 = vmatpush2.bf16.msra.mxu0 0
        %2060 = vmatprep.mubr.bf16.mxu0 0
        %2061 = vmatmul.mubr.bf16.gmra.mxu0 %v2026
        %v2062 = vpop.f32.mrf.mxu0
        %v2063 = vadd.f32 %v2012, %v2062
        %v2064 = vpop.f32.mrf.mxu0
        %v2065 = vpop.f32.mrf.mxu0
        %v2066 = vpop.f32.mrf.mxu0
        %2067 = vdwg.mxu0
        %v2068 = vld [vmem:[%s7] sm:$0xf]
        %v2069 = vld [vmem:[%s7 + $0x4] sm:$0xf]
        %v2070 = vld [vmem:[%s7 + $0x8] sm:$0xf]
        %v2071 = vld [vmem:[%s7 + $0xc] sm:$0xf]
        %v2072 = vld [vmem:[#allocation8 + $0x2] sm:$0x1]
        %v2073 = vpack.c.bf16 %v599, %v598
        %v2074 = vlaneseq
        %v2075 = vshrl.u32 %v2074, 7
        %v2076 = vsub.s32 0, %v2075
        %v2077 = vrot.slane %v2072, %v2076
        %v2082 = vunpack.c.l.b16 %v2068
        %v2083 = vunpack.c.l.b16 %v2069
        %v2084 = vunpack.c.l.b16 %v2070
        %v2085 = vunpack.c.l.b16 %v2071
        %v2086 = vpack.c.b16 %v2083, %v2082
        %v2087 = vpack.c.b16 %v2085, %v2084
        %v2091 = vsel %vm624, %v2073, 0
        %2093 = vmatprep.subr.bf16.mxu0 0
        %2094 = vmatpush1.bf16.msra.mxu0 0
        %2095 = vmatprep.subr.bf16.mxu0 0
        %2096 = vmatpush1.bf16.msra.mxu0 0
        %2097 = vmatprep.subr.bf16.mxu0 0
        %2098 = vmatpush1.bf16.msra.mxu0 0
        %2099 = vmatprep.subr.bf16.mxu0 0
        %2100 = vmatpush1.bf16.msra.mxu0 0
        %2101 = vmatprep.subr.bf16.mxu0 0
        %2102 = vmatpush1.bf16.msra.mxu0 0
        %2103 = vmatprep.subr.bf16.mxu0 0
        %2104 = vmatpush1.bf16.msra.mxu0 0
        %2105 = vmatprep.subr.bf16.mxu0 0
        %2106 = vmatpush1.bf16.msra.mxu0 %v2087
        %2107 = vmatprep.subr.bf16.mxu0 0
        %2108 = vmatpush1.bf16.msra.mxu0 %v2086
        %2109 = vmatprep.subr.bf16.mxu0 0
        %2110 = vmatpush2.bf16.msra.mxu0 0
        %2111 = vmatprep.subr.bf16.mxu0 0
        %2112 = vmatpush2.bf16.msra.mxu0 0
        %2113 = vmatprep.subr.bf16.mxu0 0
        %2114 = vmatpush2.bf16.msra.mxu0 0
        %2115 = vmatprep.subr.bf16.mxu0 0
        %2116 = vmatpush2.bf16.msra.mxu0 0
        %2117 = vmatprep.subr.bf16.mxu0 0
        %2118 = vmatpush2.bf16.msra.mxu0 0
        %2119 = vmatprep.subr.bf16.mxu0 0
        %2120 = vmatpush2.bf16.msra.mxu0 0
        %2121 = vmatprep.subr.bf16.mxu0 0
        %2122 = vmatpush2.bf16.msra.mxu0 0
        %2123 = vmatprep.subr.bf16.mxu0 0
        %2124 = vmatpush2.bf16.msra.mxu0 0
        %2125 = vmatprep.mubr.bf16.mxu0 0
        %2126 = vmatmul.mubr.bf16.gmra.mxu0 %v2091
        %v2127 = vpop.f32.mrf.mxu0
        %v2128 = vadd.f32 %v2077, %v2127
        %v2129 = vpop.f32.mrf.mxu0
        %v2130 = vpop.f32.mrf.mxu0
        %v2131 = vadd.f32 %v2077, %v2130
        %v2132 = vpop.f32.mrf.mxu0
        %2133 = vdwg.mxu0
        %v2134 = vpack.c.bf16 %v2063, %v2063
        %2136 = vrot.lane.b32.xlu0 %v2134, 120
        %v2137 = vpop.permute.xlu0 %2136
        %2138 = vrot.lane.b32.xlu0 %v2134, 112
        %v2139 = vpop.permute.xlu0 %2138
        %2140 = vrot.lane.b32.xlu0 %v2134, 104
        %v2141 = vpop.permute.xlu0 %2140
        %v2143 = vunpack.c.l.s4 1983009808
        %v2144 = vunpack.c.0.s8 %v2143
        %v2145 = vlaneseq
        %v2146 = vshrl.u32 %v2145, 7
        %v2147 = vsub.s32 %v2144, %v2146
        %v2148 = vrot.slane %v2134, %v2147
        %v2151 = vunpack.c.l.s4 1983009808
        %v2152 = vunpack.c.0.s8 %v2151
        %v2153 = vlaneseq
        %v2154 = vshrl.u32 %v2153, 7
        %v2155 = vsub.s32 %v2152, %v2154
        %v2156 = vrot.slane %v2139, %v2155
        %v2157 = vcombine.low %v2148, %v2156
        %v2158 = vcombine.high %v2148, %v2156
        %v2160 = vunpack.c.l.s4 1934713408
        %v2161 = vunpack.c.0.s8 %v2160
        %v2162 = vlaneseq
        %v2163 = vshrl.u32 %v2162, 7
        %v2164 = vsub.s32 %v2161, %v2163
        %v2165 = vrot.slane %v2157, %v2164
        %v2167 = vunpack.c.l.s4 1934713408
        %v2168 = vunpack.c.0.s8 %v2167
        %v2169 = vlaneseq
        %v2170 = vshrl.u32 %v2169, 7
        %v2171 = vsub.s32 %v2168, %v2170
        %v2172 = vrot.slane %v2158, %v2171
        %v2173 = vcombine.high %v2165, 0
        %v2174 = vcombine.high %v2172, 0
        %v2177 = vunpack.c.l.s4 1983009808
        %v2178 = vunpack.c.0.s8 %v2177
        %v2179 = vlaneseq
        %v2180 = vshrl.u32 %v2179, 7
        %v2181 = vsub.s32 %v2178, %v2180
        %v2182 = vrot.slane %v2137, %v2181
        %v2185 = vunpack.c.l.s4 1983009808
        %v2186 = vunpack.c.0.s8 %v2185
        %v2187 = vlaneseq
        %v2188 = vshrl.u32 %v2187, 7
        %v2189 = vsub.s32 %v2186, %v2188
        %v2190 = vrot.slane %v2141, %v2189
        %v2191 = vcombine.low %v2182, %v2190
        %v2192 = vcombine.high %v2182, %v2190
        %v2194 = vunpack.c.l.s4 1934713408
        %v2195 = vunpack.c.0.s8 %v2194
        %v2196 = vlaneseq
        %v2197 = vshrl.u32 %v2196, 7
        %v2198 = vsub.s32 %v2195, %v2197
        %v2199 = vrot.slane %v2191, %v2198
        %v2201 = vunpack.c.l.s4 1934713408
        %v2202 = vunpack.c.0.s8 %v2201
        %v2203 = vlaneseq
        %v2204 = vshrl.u32 %v2203, 7
        %v2205 = vsub.s32 %v2202, %v2204
        %v2206 = vrot.slane %v2192, %v2205
        %v2207 = vcombine.high %v2199, 0
        %v2208 = vcombine.high %v2206, 0
        %v2211 = vpack.i.b16 %v2199, %v2165
        %v2213 = vshrl.u32 %v2165, 16
        %v2214 = vshrl.u32 %v2199, 16
        %v2215 = vpack.i.b16 %v2214, %v2213
        %v2219 = vpack.i.b16 %v2207, %v2173
        %v2221 = vshrl.u32 %v2173, 16
        %v2222 = vshrl.u32 %v2207, 16
        %v2223 = vpack.i.b16 %v2222, %v2221
        %v2227 = vpack.i.b16 %v2206, %v2172
        %v2229 = vshrl.u32 %v2172, 16
        %v2230 = vshrl.u32 %v2206, 16
        %v2231 = vpack.i.b16 %v2230, %v2229
        %v2235 = vpack.i.b16 %v2208, %v2174
        %v2237 = vshrl.u32 %v2174, 16
        %v2238 = vshrl.u32 %v2208, 16
        %v2239 = vpack.i.b16 %v2238, %v2237
        %v2241 = vcombine.low %v2211, %v2227
        %v2243 = vunpack.c.l.s4 1983009808
        %v2244 = vunpack.c.0.s8 %v2243
        %v2245 = vlaneseq
        %v2246 = vshrl.u32 %v2245, 7
        %v2247 = vsub.s32 %v2244, %v2246
        %v2248 = vrot.slane %v2241, %v2247
        %v2249 = vcombine.low %v2219, %v2235
        %v2251 = vunpack.c.l.s4 1983009808
        %v2252 = vunpack.c.0.s8 %v2251
        %v2253 = vlaneseq
        %v2254 = vshrl.u32 %v2253, 7
        %v2255 = vsub.s32 %v2252, %v2254
        %v2256 = vrot.slane %v2249, %v2255
        %v2257 = vcombine.low %v2248, %v2256
        %v2259 = vunpack.c.l.s4 1934713408
        %v2260 = vunpack.c.0.s8 %v2259
        %v2261 = vlaneseq
        %v2262 = vshrl.u32 %v2261, 7
        %v2263 = vsub.s32 %v2260, %v2262
        %v2264 = vrot.slane %v2257, %v2263
        %v2265 = vcombine.high %v2264, 0
        %v2266 = vcombine.low %v2215, %v2231
        %v2268 = vunpack.c.l.s4 1983009808
        %v2269 = vunpack.c.0.s8 %v2268
        %v2270 = vlaneseq
        %v2271 = vshrl.u32 %v2270, 7
        %v2272 = vsub.s32 %v2269, %v2271
        %v2273 = vrot.slane %v2266, %v2272
        %v2274 = vcombine.low %v2223, %v2239
        %v2276 = vunpack.c.l.s4 1983009808
        %v2277 = vunpack.c.0.s8 %v2276
        %v2278 = vlaneseq
        %v2279 = vshrl.u32 %v2278, 7
        %v2280 = vsub.s32 %v2277, %v2279
        %v2281 = vrot.slane %v2274, %v2280
        %v2282 = vcombine.low %v2273, %v2281
        %v2284 = vunpack.c.l.s4 1934713408
        %v2285 = vunpack.c.0.s8 %v2284
        %v2286 = vlaneseq
        %v2287 = vshrl.u32 %v2286, 7
        %v2288 = vsub.s32 %v2285, %v2287
        %v2289 = vrot.slane %v2282, %v2288
        %v2290 = vcombine.high %v2289, 0
        %v2293 = vpack.i.b16 %v2289, %v2264
        %v2294 = vshrl.u32 %v2264, 16
        %v2295 = vshrl.u32 %v2289, 16
        %v2296 = vpack.i.b16 %v2295, %v2294
        %v2299 = vpack.i.b16 %v2290, %v2265
        %v2300 = vshrl.u32 %v2265, 16
        %v2301 = vshrl.u32 %v2290, 16
        %v2302 = vpack.i.b16 %v2301, %v2300
        %v2303 = vpack.c.bf16 %v2131, %v2128
        %2305 = vrot.lane.b32.xlu0 %v2303, 120
        %v2306 = vpop.permute.xlu0 %2305
        %2308 = vrot.lane.b32.xlu0 %v2303, 112
        %v2309 = vpop.permute.xlu0 %2308
        %2311 = vrot.lane.b32.xlu0 %v2303, 104
        %v2312 = vpop.permute.xlu0 %2311
        %v2315 = vunpack.c.l.s4 1983009808
        %v2316 = vunpack.c.0.s8 %v2315
        %v2317 = vlaneseq
        %v2318 = vshrl.u32 %v2317, 7
        %v2319 = vsub.s32 %v2316, %v2318
        %v2320 = vrot.slane %v2303, %v2319
        %v2321 = vcombine.high %v2303, 0
        %v2323 = vunpack.c.l.s4 1983009808
        %v2324 = vunpack.c.0.s8 %v2323
        %v2325 = vlaneseq
        %v2326 = vshrl.u32 %v2325, 7
        %v2327 = vsub.s32 %v2324, %v2326
        %v2328 = vrot.slane %v2309, %v2327
        %v2329 = vcombine.high %v2309, 0
        %v2330 = vcombine.low %v2320, %v2328
        %v2331 = vcombine.high %v2320, %v2328
        %v2333 = vunpack.c.l.s4 1934713408
        %v2334 = vunpack.c.0.s8 %v2333
        %v2335 = vlaneseq
        %v2336 = vshrl.u32 %v2335, 7
        %v2337 = vsub.s32 %v2334, %v2336
        %v2338 = vrot.slane %v2330, %v2337
        %v2340 = vunpack.c.l.s4 1934713408
        %v2341 = vunpack.c.0.s8 %v2340
        %v2342 = vlaneseq
        %v2343 = vshrl.u32 %v2342, 7
        %v2344 = vsub.s32 %v2341, %v2343
        %v2345 = vrot.slane %v2331, %v2344
        %v2346 = vcombine.low %v2321, %v2329
        %v2348 = vunpack.c.l.s4 1934713408
        %v2349 = vunpack.c.0.s8 %v2348
        %v2350 = vlaneseq
        %v2351 = vshrl.u32 %v2350, 7
        %v2352 = vsub.s32 %v2349, %v2351
        %v2353 = vrot.slane %v2346, %v2352
        %v2354 = vcombine.high %v2338, 0
        %v2355 = vcombine.high %v2345, 0
        %v2356 = vcombine.high %v2353, 0
        %v2358 = vunpack.c.l.s4 1983009808
        %v2359 = vunpack.c.0.s8 %v2358
        %v2360 = vlaneseq
        %v2361 = vshrl.u32 %v2360, 7
        %v2362 = vsub.s32 %v2359, %v2361
        %v2363 = vrot.slane %v2306, %v2362
        %v2364 = vcombine.high %v2306, 0
        %v2366 = vunpack.c.l.s4 1983009808
        %v2367 = vunpack.c.0.s8 %v2366
        %v2368 = vlaneseq
        %v2369 = vshrl.u32 %v2368, 7
        %v2370 = vsub.s32 %v2367, %v2369
        %v2371 = vrot.slane %v2312, %v2370
        %v2372 = vcombine.high %v2312, 0
        %v2373 = vcombine.low %v2363, %v2371
        %v2374 = vcombine.high %v2363, %v2371
        %v2376 = vunpack.c.l.s4 1934713408
        %v2377 = vunpack.c.0.s8 %v2376
        %v2378 = vlaneseq
        %v2379 = vshrl.u32 %v2378, 7
        %v2380 = vsub.s32 %v2377, %v2379
        %v2381 = vrot.slane %v2373, %v2380
        %v2383 = vunpack.c.l.s4 1934713408
        %v2384 = vunpack.c.0.s8 %v2383
        %v2385 = vlaneseq
        %v2386 = vshrl.u32 %v2385, 7
        %v2387 = vsub.s32 %v2384, %v2386
        %v2388 = vrot.slane %v2374, %v2387
        %v2389 = vcombine.low %v2364, %v2372
        %v2391 = vunpack.c.l.s4 1934713408
        %v2392 = vunpack.c.0.s8 %v2391
        %v2393 = vlaneseq
        %v2394 = vshrl.u32 %v2393, 7
        %v2395 = vsub.s32 %v2392, %v2394
        %v2396 = vrot.slane %v2389, %v2395
        %v2397 = vcombine.high %v2381, 0
        %v2398 = vcombine.high %v2388, 0
        %v2399 = vcombine.high %v2396, 0
        %v2402 = vpack.i.b16 %v2381, %v2338
        %v2404 = vshrl.u32 %v2338, 16
        %v2405 = vshrl.u32 %v2381, 16
        %v2406 = vpack.i.b16 %v2405, %v2404
        %v2410 = vpack.i.b16 %v2397, %v2354
        %v2412 = vshrl.u32 %v2354, 16
        %v2413 = vshrl.u32 %v2397, 16
        %v2414 = vpack.i.b16 %v2413, %v2412
        %v2418 = vpack.i.b16 %v2388, %v2345
        %v2420 = vshrl.u32 %v2345, 16
        %v2421 = vshrl.u32 %v2388, 16
        %v2422 = vpack.i.b16 %v2421, %v2420
        %v2426 = vpack.i.b16 %v2398, %v2355
        %v2428 = vshrl.u32 %v2355, 16
        %v2429 = vshrl.u32 %v2398, 16
        %v2430 = vpack.i.b16 %v2429, %v2428
        %v2434 = vpack.i.b16 %v2396, %v2353
        %v2435 = vshrl.u32 %v2353, 16
        %v2436 = vshrl.u32 %v2396, 16
        %v2437 = vpack.i.b16 %v2436, %v2435
        %v2440 = vpack.i.b16 %v2399, %v2356
        %v2441 = vshrl.u32 %v2356, 16
        %v2442 = vshrl.u32 %v2399, 16
        %v2443 = vpack.i.b16 %v2442, %v2441
        %v2444 = vcombine.low %v2402, %v2418
        %v2446 = vunpack.c.l.s4 1983009808
        %v2447 = vunpack.c.0.s8 %v2446
        %v2448 = vlaneseq
        %v2449 = vshrl.u32 %v2448, 7
        %v2450 = vsub.s32 %v2447, %v2449
        %v2451 = vrot.slane %v2444, %v2450
        %v2452 = vcombine.low %v2410, %v2426
        %v2454 = vunpack.c.l.s4 1983009808
        %v2455 = vunpack.c.0.s8 %v2454
        %v2456 = vlaneseq
        %v2457 = vshrl.u32 %v2456, 7
        %v2458 = vsub.s32 %v2455, %v2457
        %v2459 = vrot.slane %v2452, %v2458
        %v2462 = vcombine.low %v2451, %v2459
        %v2464 = vunpack.c.l.s4 1934713408
        %v2465 = vunpack.c.0.s8 %v2464
        %v2466 = vlaneseq
        %v2467 = vshrl.u32 %v2466, 7
        %v2468 = vsub.s32 %v2465, %v2467
        %v2469 = vrot.slane %v2462, %v2468
        %v2470 = vcombine.low %v2434, %v2440
        %v2472 = vunpack.c.l.s4 1934713408
        %v2473 = vunpack.c.0.s8 %v2472
        %v2474 = vlaneseq
        %v2475 = vshrl.u32 %v2474, 7
        %v2476 = vsub.s32 %v2473, %v2475
        %v2477 = vrot.slane %v2470, %v2476
        %v2478 = vcombine.low %v2469, %v2477
        %v2479 = vcombine.high %v2469, %v2477
        %v2480 = vcombine.low %v2406, %v2422
        %v2482 = vunpack.c.l.s4 1983009808
        %v2483 = vunpack.c.0.s8 %v2482
        %v2484 = vlaneseq
        %v2485 = vshrl.u32 %v2484, 7
        %v2486 = vsub.s32 %v2483, %v2485
        %v2487 = vrot.slane %v2480, %v2486
        %v2488 = vcombine.low %v2414, %v2430
        %v2490 = vunpack.c.l.s4 1983009808
        %v2491 = vunpack.c.0.s8 %v2490
        %v2492 = vlaneseq
        %v2493 = vshrl.u32 %v2492, 7
        %v2494 = vsub.s32 %v2491, %v2493
        %v2495 = vrot.slane %v2488, %v2494
        %v2498 = vcombine.low %v2487, %v2495
        %v2500 = vunpack.c.l.s4 1934713408
        %v2501 = vunpack.c.0.s8 %v2500
        %v2502 = vlaneseq
        %v2503 = vshrl.u32 %v2502, 7
        %v2504 = vsub.s32 %v2501, %v2503
        %v2505 = vrot.slane %v2498, %v2504
        %v2506 = vcombine.low %v2437, %v2443
        %v2508 = vunpack.c.l.s4 1934713408
        %v2509 = vunpack.c.0.s8 %v2508
        %v2510 = vlaneseq
        %v2511 = vshrl.u32 %v2510, 7
        %v2512 = vsub.s32 %v2509, %v2511
        %v2513 = vrot.slane %v2506, %v2512
        %v2514 = vcombine.low %v2505, %v2513
        %v2515 = vcombine.high %v2505, %v2513
        %v2518 = vpack.i.b16 %v2514, %v2478
        %v2519 = vshrl.u32 %v2478, 16
        %v2520 = vshrl.u32 %v2514, 16
        %v2521 = vpack.i.b16 %v2520, %v2519
        %v2524 = vpack.i.b16 %v2515, %v2479
        %v2525 = vshrl.u32 %v2479, 16
        %v2526 = vshrl.u32 %v2515, 16
        %v2527 = vpack.i.b16 %v2526, %v2525
        %2528 = vrot.lane.b32.xlu0 %v2303, 96
        %v2529 = vpop.permute.xlu0 %2528
        %2530 = vrot.lane.b32.xlu0 %v2306, 96
        %v2531 = vpop.permute.xlu0 %2530
        %2532 = vrot.lane.b32.xlu0 %v2309, 96
        %v2533 = vpop.permute.xlu0 %2532
        %2534 = vrot.lane.b32.xlu0 %v2312, 96
        %v2535 = vpop.permute.xlu0 %2534
        %v2541 = vunpack.c.l.s4 1983009808
        %v2542 = vunpack.c.0.s8 %v2541
        %v2543 = vlaneseq
        %v2544 = vshrl.u32 %v2543, 7
        %v2545 = vsub.s32 %v2542, %v2544
        %v2546 = vrot.slane %v2529, %v2545
        %v2547 = vcombine.high %v2529, 0
        %v2549 = vunpack.c.l.s4 1983009808
        %v2550 = vunpack.c.0.s8 %v2549
        %v2551 = vlaneseq
        %v2552 = vshrl.u32 %v2551, 7
        %v2553 = vsub.s32 %v2550, %v2552
        %v2554 = vrot.slane %v2533, %v2553
        %v2555 = vcombine.high %v2533, 0
        %v2556 = vcombine.low %v2546, %v2554
        %v2557 = vcombine.high %v2546, %v2554
        %v2559 = vunpack.c.l.s4 1934713408
        %v2560 = vunpack.c.0.s8 %v2559
        %v2561 = vlaneseq
        %v2562 = vshrl.u32 %v2561, 7
        %v2563 = vsub.s32 %v2560, %v2562
        %v2564 = vrot.slane %v2556, %v2563
        %v2566 = vunpack.c.l.s4 1934713408
        %v2567 = vunpack.c.0.s8 %v2566
        %v2568 = vlaneseq
        %v2569 = vshrl.u32 %v2568, 7
        %v2570 = vsub.s32 %v2567, %v2569
        %v2571 = vrot.slane %v2557, %v2570
        %v2572 = vcombine.low %v2547, %v2555
        %v2574 = vunpack.c.l.s4 1934713408
        %v2575 = vunpack.c.0.s8 %v2574
        %v2576 = vlaneseq
        %v2577 = vshrl.u32 %v2576, 7
        %v2578 = vsub.s32 %v2575, %v2577
        %v2579 = vrot.slane %v2572, %v2578
        %v2580 = vcombine.high %v2564, 0
        %v2581 = vcombine.high %v2571, 0
        %v2582 = vcombine.high %v2579, 0
        %v2584 = vunpack.c.l.s4 1983009808
        %v2585 = vunpack.c.0.s8 %v2584
        %v2586 = vlaneseq
        %v2587 = vshrl.u32 %v2586, 7
        %v2588 = vsub.s32 %v2585, %v2587
        %v2589 = vrot.slane %v2531, %v2588
        %v2590 = vcombine.high %v2531, 0
        %v2592 = vunpack.c.l.s4 1983009808
        %v2593 = vunpack.c.0.s8 %v2592
        %v2594 = vlaneseq
        %v2595 = vshrl.u32 %v2594, 7
        %v2596 = vsub.s32 %v2593, %v2595
        %v2597 = vrot.slane %v2535, %v2596
        %v2598 = vcombine.high %v2535, 0
        %v2599 = vcombine.low %v2589, %v2597
        %v2600 = vcombine.high %v2589, %v2597
        %v2602 = vunpack.c.l.s4 1934713408
        %v2603 = vunpack.c.0.s8 %v2602
        %v2604 = vlaneseq
        %v2605 = vshrl.u32 %v2604, 7
        %v2606 = vsub.s32 %v2603, %v2605
        %v2607 = vrot.slane %v2599, %v2606
        %v2609 = vunpack.c.l.s4 1934713408
        %v2610 = vunpack.c.0.s8 %v2609
        %v2611 = vlaneseq
        %v2612 = vshrl.u32 %v2611, 7
        %v2613 = vsub.s32 %v2610, %v2612
        %v2614 = vrot.slane %v2600, %v2613
        %v2615 = vcombine.low %v2590, %v2598
        %v2617 = vunpack.c.l.s4 1934713408
        %v2618 = vunpack.c.0.s8 %v2617
        %v2619 = vlaneseq
        %v2620 = vshrl.u32 %v2619, 7
        %v2621 = vsub.s32 %v2618, %v2620
        %v2622 = vrot.slane %v2615, %v2621
        %v2623 = vcombine.high %v2607, 0
        %v2624 = vcombine.high %v2614, 0
        %v2625 = vcombine.high %v2622, 0
        %v2628 = vpack.i.b16 %v2607, %v2564
        %v2630 = vshrl.u32 %v2564, 16
        %v2631 = vshrl.u32 %v2607, 16
        %v2632 = vpack.i.b16 %v2631, %v2630
        %v2636 = vpack.i.b16 %v2623, %v2580
        %v2638 = vshrl.u32 %v2580, 16
        %v2639 = vshrl.u32 %v2623, 16
        %v2640 = vpack.i.b16 %v2639, %v2638
        %v2644 = vpack.i.b16 %v2614, %v2571
        %v2646 = vshrl.u32 %v2571, 16
        %v2647 = vshrl.u32 %v2614, 16
        %v2648 = vpack.i.b16 %v2647, %v2646
        %v2652 = vpack.i.b16 %v2624, %v2581
        %v2654 = vshrl.u32 %v2581, 16
        %v2655 = vshrl.u32 %v2624, 16
        %v2656 = vpack.i.b16 %v2655, %v2654
        %v2660 = vpack.i.b16 %v2622, %v2579
        %v2661 = vshrl.u32 %v2579, 16
        %v2662 = vshrl.u32 %v2622, 16
        %v2663 = vpack.i.b16 %v2662, %v2661
        %v2666 = vpack.i.b16 %v2625, %v2582
        %v2667 = vshrl.u32 %v2582, 16
        %v2668 = vshrl.u32 %v2625, 16
        %v2669 = vpack.i.b16 %v2668, %v2667
        %v2670 = vcombine.low %v2628, %v2644
        %v2672 = vunpack.c.l.s4 1983009808
        %v2673 = vunpack.c.0.s8 %v2672
        %v2674 = vlaneseq
        %v2675 = vshrl.u32 %v2674, 7
        %v2676 = vsub.s32 %v2673, %v2675
        %v2677 = vrot.slane %v2670, %v2676
        %v2678 = vcombine.low %v2636, %v2652
        %v2680 = vunpack.c.l.s4 1983009808
        %v2681 = vunpack.c.0.s8 %v2680
        %v2682 = vlaneseq
        %v2683 = vshrl.u32 %v2682, 7
        %v2684 = vsub.s32 %v2681, %v2683
        %v2685 = vrot.slane %v2678, %v2684
        %v2688 = vcombine.low %v2677, %v2685
        %v2690 = vunpack.c.l.s4 1934713408
        %v2691 = vunpack.c.0.s8 %v2690
        %v2692 = vlaneseq
        %v2693 = vshrl.u32 %v2692, 7
        %v2694 = vsub.s32 %v2691, %v2693
        %v2695 = vrot.slane %v2688, %v2694
        %v2696 = vcombine.low %v2660, %v2666
        %v2698 = vunpack.c.l.s4 1934713408
        %v2699 = vunpack.c.0.s8 %v2698
        %v2700 = vlaneseq
        %v2701 = vshrl.u32 %v2700, 7
        %v2702 = vsub.s32 %v2699, %v2701
        %v2703 = vrot.slane %v2696, %v2702
        %v2704 = vcombine.low %v2695, %v2703
        %v2705 = vcombine.high %v2695, %v2703
        %v2706 = vcombine.low %v2632, %v2648
        %v2708 = vunpack.c.l.s4 1983009808
        %v2709 = vunpack.c.0.s8 %v2708
        %v2710 = vlaneseq
        %v2711 = vshrl.u32 %v2710, 7
        %v2712 = vsub.s32 %v2709, %v2711
        %v2713 = vrot.slane %v2706, %v2712
        %v2714 = vcombine.low %v2640, %v2656
        %v2716 = vunpack.c.l.s4 1983009808
        %v2717 = vunpack.c.0.s8 %v2716
        %v2718 = vlaneseq
        %v2719 = vshrl.u32 %v2718, 7
        %v2720 = vsub.s32 %v2717, %v2719
        %v2721 = vrot.slane %v2714, %v2720
        %v2724 = vcombine.low %v2713, %v2721
        %v2726 = vunpack.c.l.s4 1934713408
        %v2727 = vunpack.c.0.s8 %v2726
        %v2728 = vlaneseq
        %v2729 = vshrl.u32 %v2728, 7
        %v2730 = vsub.s32 %v2727, %v2729
        %v2731 = vrot.slane %v2724, %v2730
        %v2732 = vcombine.low %v2663, %v2669
        %v2734 = vunpack.c.l.s4 1934713408
        %v2735 = vunpack.c.0.s8 %v2734
        %v2736 = vlaneseq
        %v2737 = vshrl.u32 %v2736, 7
        %v2738 = vsub.s32 %v2735, %v2737
        %v2739 = vrot.slane %v2732, %v2738
        %v2740 = vcombine.low %v2731, %v2739
        %v2741 = vcombine.high %v2731, %v2739
        %v2744 = vpack.i.b16 %v2740, %v2704
        %v2745 = vshrl.u32 %v2704, 16
        %v2746 = vshrl.u32 %v2740, 16
        %v2747 = vpack.i.b16 %v2746, %v2745
        %v2750 = vpack.i.b16 %v2741, %v2705
        %v2751 = vshrl.u32 %v2705, 16
        %v2752 = vshrl.u32 %v2741, 16
        %v2753 = vpack.i.b16 %v2752, %v2751
        %v2755 = vsel %vm1177, %v2293, 0
        %v2758 = vsel %vm1177, %v2518, 0
        %2760 = vmatprep.subr.bf16.mxu0 0
        %2761 = vmatpush1.bf16.xpose.msra.mxu0 0
        %2762 = vmatprep.subr.bf16.mxu0 0
        %2763 = vmatpush1.bf16.xpose.msra.mxu0 0
        %2764 = vmatprep.subr.bf16.mxu0 0
        %2765 = vmatpush1.bf16.xpose.msra.mxu0 0
        %2766 = vmatprep.subr.bf16.mxu0 0
        %2767 = vmatpush1.bf16.xpose.msra.mxu0 0
        %2768 = vmatprep.subr.bf16.mxu0 0
        %2769 = vmatpush1.bf16.xpose.msra.mxu0 0
        %2770 = vmatprep.subr.bf16.mxu0 0
        %2771 = vmatpush1.bf16.xpose.msra.mxu0 0
        %2772 = vmatprep.subr.bf16.mxu0 0
        %2773 = vmatpush1.bf16.xpose.msra.mxu0 0
        %2774 = vmatprep.subr.bf16.mxu0 0
        %2775 = vmatpush1.bf16.xpose.msra.mxu0 %v2758
        %2776 = vmatprep.subr.bf16.mxu0 0
        %2777 = vmatpush2.bf16.xpose.msra.mxu0 0
        %2778 = vmatprep.subr.bf16.mxu0 0
        %2779 = vmatpush2.bf16.xpose.msra.mxu0 0
        %2780 = vmatprep.subr.bf16.mxu0 0
        %2781 = vmatpush2.bf16.xpose.msra.mxu0 0
        %2782 = vmatprep.subr.bf16.mxu0 0
        %2783 = vmatpush2.bf16.xpose.msra.mxu0 0
        %2784 = vmatprep.subr.bf16.mxu0 0
        %2785 = vmatpush2.bf16.xpose.msra.mxu0 0
        %2786 = vmatprep.subr.bf16.mxu0 0
        %2787 = vmatpush2.bf16.xpose.msra.mxu0 0
        %2788 = vmatprep.subr.bf16.mxu0 0
        %2789 = vmatpush2.bf16.xpose.msra.mxu0 0
        %2790 = vmatprep.subr.bf16.mxu0 0
        %2791 = vmatpush2.bf16.xpose.msra.mxu0 0
        %2792 = vmatprep.mubr.bf16.mxu0 0
        %2793 = vmatmul.mubr.bf16.gmra.mxu0 %v2755
        %v2794 = vpop.f32.mrf.mxu0
        %v2795 = vadd.f32 0.0, %v2794
        %v2796 = vpop.f32.mrf.mxu0
        %v2797 = vpop.f32.mrf.mxu0
        %v2798 = vpop.f32.mrf.mxu0
        %2799 = vdwg.mxu0
        %v2801 = vsel %vm1177, %v2296, 0
        %v2804 = vsel %vm1177, %v2521, 0
        %2806 = vmatprep.subr.bf16.mxu0 0
        %2807 = vmatpush1.bf16.xpose.msra.mxu0 0
        %2808 = vmatprep.subr.bf16.mxu0 0
        %2809 = vmatpush1.bf16.xpose.msra.mxu0 0
        %2810 = vmatprep.subr.bf16.mxu0 0
        %2811 = vmatpush1.bf16.xpose.msra.mxu0 0
        %2812 = vmatprep.subr.bf16.mxu0 0
        %2813 = vmatpush1.bf16.xpose.msra.mxu0 0
        %2814 = vmatprep.subr.bf16.mxu0 0
        %2815 = vmatpush1.bf16.xpose.msra.mxu0 0
        %2816 = vmatprep.subr.bf16.mxu0 0
        %2817 = vmatpush1.bf16.xpose.msra.mxu0 0
        %2818 = vmatprep.subr.bf16.mxu0 0
        %2819 = vmatpush1.bf16.xpose.msra.mxu0 0
        %2820 = vmatprep.subr.bf16.mxu0 0
        %2821 = vmatpush1.bf16.xpose.msra.mxu0 %v2804
        %2822 = vmatprep.subr.bf16.mxu0 0
        %2823 = vmatpush2.bf16.xpose.msra.mxu0 0
        %2824 = vmatprep.subr.bf16.mxu0 0
        %2825 = vmatpush2.bf16.xpose.msra.mxu0 0
        %2826 = vmatprep.subr.bf16.mxu0 0
        %2827 = vmatpush2.bf16.xpose.msra.mxu0 0
        %2828 = vmatprep.subr.bf16.mxu0 0
        %2829 = vmatpush2.bf16.xpose.msra.mxu0 0
        %2830 = vmatprep.subr.bf16.mxu0 0
        %2831 = vmatpush2.bf16.xpose.msra.mxu0 0
        %2832 = vmatprep.subr.bf16.mxu0 0
        %2833 = vmatpush2.bf16.xpose.msra.mxu0 0
        %2834 = vmatprep.subr.bf16.mxu0 0
        %2835 = vmatpush2.bf16.xpose.msra.mxu0 0
        %2836 = vmatprep.subr.bf16.mxu0 0
        %2837 = vmatpush2.bf16.xpose.msra.mxu0 0
        %2838 = vmatprep.mubr.bf16.mxu0 0
        %2839 = vmatmul.mubr.bf16.gmra.mxu0 %v2801
        %v2840 = vpop.f32.mrf.mxu0
        %v2841 = vadd.f32 0.0, %v2840
        %v2842 = vpop.f32.mrf.mxu0
        %v2843 = vpop.f32.mrf.mxu0
        %v2844 = vpop.f32.mrf.mxu0
        %2845 = vdwg.mxu0
        %v2847 = vsel %vm1177, %v2299, 0
        %v2850 = vsel %vm1177, %v2524, 0
        %2852 = vmatprep.subr.bf16.mxu0 0
        %2853 = vmatpush1.bf16.xpose.msra.mxu0 0
        %2854 = vmatprep.subr.bf16.mxu0 0
        %2855 = vmatpush1.bf16.xpose.msra.mxu0 0
        %2856 = vmatprep.subr.bf16.mxu0 0
        %2857 = vmatpush1.bf16.xpose.msra.mxu0 0
        %2858 = vmatprep.subr.bf16.mxu0 0
        %2859 = vmatpush1.bf16.xpose.msra.mxu0 0
        %2860 = vmatprep.subr.bf16.mxu0 0
        %2861 = vmatpush1.bf16.xpose.msra.mxu0 0
        %2862 = vmatprep.subr.bf16.mxu0 0
        %2863 = vmatpush1.bf16.xpose.msra.mxu0 0
        %2864 = vmatprep.subr.bf16.mxu0 0
        %2865 = vmatpush1.bf16.xpose.msra.mxu0 0
        %2866 = vmatprep.subr.bf16.mxu0 0
        %2867 = vmatpush1.bf16.xpose.msra.mxu0 %v2850
        %2868 = vmatprep.subr.bf16.mxu0 0
        %2869 = vmatpush2.bf16.xpose.msra.mxu0 0
        %2870 = vmatprep.subr.bf16.mxu0 0
        %2871 = vmatpush2.bf16.xpose.msra.mxu0 0
        %2872 = vmatprep.subr.bf16.mxu0 0
        %2873 = vmatpush2.bf16.xpose.msra.mxu0 0
        %2874 = vmatprep.subr.bf16.mxu0 0
        %2875 = vmatpush2.bf16.xpose.msra.mxu0 0
        %2876 = vmatprep.subr.bf16.mxu0 0
        %2877 = vmatpush2.bf16.xpose.msra.mxu0 0
        %2878 = vmatprep.subr.bf16.mxu0 0
        %2879 = vmatpush2.bf16.xpose.msra.mxu0 0
        %2880 = vmatprep.subr.bf16.mxu0 0
        %2881 = vmatpush2.bf16.xpose.msra.mxu0 0
        %2882 = vmatprep.subr.bf16.mxu0 0
        %2883 = vmatpush2.bf16.xpose.msra.mxu0 0
        %2884 = vmatprep.mubr.bf16.mxu0 0
        %2885 = vmatmul.mubr.bf16.gmra.mxu0 %v2847
        %v2886 = vpop.f32.mrf.mxu0
        %v2887 = vadd.f32 0.0, %v2886
        %v2888 = vpop.f32.mrf.mxu0
        %v2889 = vpop.f32.mrf.mxu0
        %v2890 = vpop.f32.mrf.mxu0
        %2891 = vdwg.mxu0
        %v2893 = vsel %vm1177, %v2302, 0
        %v2896 = vsel %vm1177, %v2527, 0
        %2898 = vmatprep.subr.bf16.mxu0 0
        %2899 = vmatpush1.bf16.xpose.msra.mxu0 0
        %2900 = vmatprep.subr.bf16.mxu0 0
        %2901 = vmatpush1.bf16.xpose.msra.mxu0 0
        %2902 = vmatprep.subr.bf16.mxu0 0
        %2903 = vmatpush1.bf16.xpose.msra.mxu0 0
        %2904 = vmatprep.subr.bf16.mxu0 0
        %2905 = vmatpush1.bf16.xpose.msra.mxu0 0
        %2906 = vmatprep.subr.bf16.mxu0 0
        %2907 = vmatpush1.bf16.xpose.msra.mxu0 0
        %2908 = vmatprep.subr.bf16.mxu0 0
        %2909 = vmatpush1.bf16.xpose.msra.mxu0 0
        %2910 = vmatprep.subr.bf16.mxu0 0
        %2911 = vmatpush1.bf16.xpose.msra.mxu0 0
        %2912 = vmatprep.subr.bf16.mxu0 0
        %2913 = vmatpush1.bf16.xpose.msra.mxu0 %v2896
        %2914 = vmatprep.subr.bf16.mxu0 0
        %2915 = vmatpush2.bf16.xpose.msra.mxu0 0
        %2916 = vmatprep.subr.bf16.mxu0 0
        %2917 = vmatpush2.bf16.xpose.msra.mxu0 0
        %2918 = vmatprep.subr.bf16.mxu0 0
        %2919 = vmatpush2.bf16.xpose.msra.mxu0 0
        %2920 = vmatprep.subr.bf16.mxu0 0
        %2921 = vmatpush2.bf16.xpose.msra.mxu0 0
        %2922 = vmatprep.subr.bf16.mxu0 0
        %2923 = vmatpush2.bf16.xpose.msra.mxu0 0
        %2924 = vmatprep.subr.bf16.mxu0 0
        %2925 = vmatpush2.bf16.xpose.msra.mxu0 0
        %2926 = vmatprep.subr.bf16.mxu0 0
        %2927 = vmatpush2.bf16.xpose.msra.mxu0 0
        %2928 = vmatprep.subr.bf16.mxu0 0
        %2929 = vmatpush2.bf16.xpose.msra.mxu0 0
        %2930 = vmatprep.mubr.bf16.mxu0 0
        %2931 = vmatmul.mubr.bf16.gmra.mxu0 %v2893
        %v2932 = vpop.f32.mrf.mxu0
        %v2933 = vadd.f32 0.0, %v2932
        %v2934 = vpop.f32.mrf.mxu0
        %v2935 = vpop.f32.mrf.mxu0
        %v2936 = vpop.f32.mrf.mxu0
        %2937 = vdwg.mxu0
        %v2938 = vmul.f32 %v2795, 0.35355338
        %v2939 = vmul.f32 %v2841, 0.35355338
        %v2940 = vmul.f32 %v2887, 0.35355338
        %v2941 = vmul.f32 %v2933, 0.35355338
        %vm2942 = vcmp.eq.f32.partialorder %v601, 0.0
        %v2943 = vsel %vm2942, 1, 0
        %v2944 = vlaneseq
        %v2945 = vshrl.u32 %v2944, 7
        %v2946 = vsub.s32 0, %v2945
        %v2947 = vrot.slane %v2943, %v2946
        %vm2948 = vcmp.eq.s32.totalorder %v2947, 1
        %v2949 = vsel %vm2948, -10000.0, %v2938
        %v2950 = vsel %vm2948, -10000.0, %v2939
        %v2951 = vsel %vm2948, -10000.0, %v2940
        %v2952 = vsel %vm2948, -10000.0, %v2941
        %vm2953 = vcmask 97280
        %v2954 = vsel %vm2953, %v2949, -inf
        %2955 = vmax.xlane.f32.xlu0 %v2954
        %v2956 = vpop.xlane.xlu0 %2955
        %v2957 = vsel %vm2953, %v2950, -inf
        %2958 = vmax.xlane.f32.xlu0 %v2957
        %v2959 = vpop.xlane.xlu0 %2958
        %v2960 = vsel %vm2953, %v2951, -inf
        %2961 = vmax.xlane.f32.xlu0 %v2960
        %v2962 = vpop.xlane.xlu0 %2961
        %v2963 = vsel %vm2953, %v2952, -inf
        %2964 = vmax.xlane.f32.xlu0 %v2963
        %v2965 = vpop.xlane.xlu0 %2964
        %v2966 = vsub.f32 %v2949, %v2956
        %v2967 = vsub.f32 %v2950, %v2959
        %v2968 = vsub.f32 %v2951, %v2962
        %v2969 = vsub.f32 %v2952, %v2965
        %v2970 = vmul.f32 %v2966, 1.442695
        %v2971 = vpow.pop %v2970
        %v2972 = vmul.f32 %v2967, 1.442695
        %v2973 = vpow.pop %v2972
        %v2974 = vmul.f32 %v2968, 1.442695
        %v2975 = vpow.pop %v2974
        %v2976 = vmul.f32 %v2969, 1.442695
        %v2977 = vpow.pop %v2976
        %v2978 = vsel %vm2953, %v2971, 0.0
        %2979 = vadd.xlane.f32.xlu0 %v2978
        %v2980 = vpop.xlane.xlu0 %2979
        %v2981 = vsel %vm2953, %v2973, 0.0
        %2982 = vadd.xlane.f32.xlu0 %v2981
        %v2983 = vpop.xlane.xlu0 %2982
        %v2984 = vsel %vm2953, %v2975, 0.0
        %2985 = vadd.xlane.f32.xlu0 %v2984
        %v2986 = vpop.xlane.xlu0 %2985
        %v2987 = vsel %vm2953, %v2977, 0.0
        %2988 = vadd.xlane.f32.xlu0 %v2987
        %v2989 = vpop.xlane.xlu0 %2988
        %v2990 = vrcp.pop %v2980
        %v2991 = vmul.f32 %v2971, %v2990
        %v2992 = vrcp.pop %v2983
        %v2993 = vmul.f32 %v2973, %v2992
        %v2994 = vrcp.pop %v2986
        %v2995 = vmul.f32 %v2975, %v2994
        %v2996 = vrcp.pop %v2989
        %v2997 = vmul.f32 %v2977, %v2996
        %v2998 = vcombine.low %v2991, %v2995
        %v2999 = vcombine.high %v2991, %v2995
        %v3001 = vunpack.c.l.s4 1983009808
        %v3002 = vunpack.c.0.s8 %v3001
        %v3003 = vlaneseq
        %v3004 = vshrl.u32 %v3003, 7
        %v3005 = vsub.s32 %v3002, %v3004
        %v3006 = vrot.slane %v2998, %v3005
        %v3008 = vunpack.c.l.s4 1983009808
        %v3009 = vunpack.c.0.s8 %v3008
        %v3010 = vlaneseq
        %v3011 = vshrl.u32 %v3010, 7
        %v3012 = vsub.s32 %v3009, %v3011
        %v3013 = vrot.slane %v2999, %v3012
        %v3014 = vcombine.low %v2993, %v2997
        %v3015 = vcombine.high %v2993, %v2997
        %v3017 = vunpack.c.l.s4 1983009808
        %v3018 = vunpack.c.0.s8 %v3017
        %v3019 = vlaneseq
        %v3020 = vshrl.u32 %v3019, 7
        %v3021 = vsub.s32 %v3018, %v3020
        %v3022 = vrot.slane %v3014, %v3021
        %v3024 = vunpack.c.l.s4 1983009808
        %v3025 = vunpack.c.0.s8 %v3024
        %v3026 = vlaneseq
        %v3027 = vshrl.u32 %v3026, 7
        %v3028 = vsub.s32 %v3025, %v3027
        %v3029 = vrot.slane %v3015, %v3028
        %v3030 = vcombine.low %v3006, %v3022
        %v3031 = vcombine.high %v3006, %v3022
        %v3033 = vunpack.c.l.s4 1934713408
        %v3034 = vunpack.c.0.s8 %v3033
        %v3035 = vlaneseq
        %v3036 = vshrl.u32 %v3035, 7
        %v3037 = vsub.s32 %v3034, %v3036
        %v3038 = vrot.slane %v3030, %v3037
        %v3040 = vunpack.c.l.s4 1934713408
        %v3041 = vunpack.c.0.s8 %v3040
        %v3042 = vlaneseq
        %v3043 = vshrl.u32 %v3042, 7
        %v3044 = vsub.s32 %v3041, %v3043
        %v3045 = vrot.slane %v3031, %v3044
        %v3046 = vcombine.low %v3013, %v3029
        %v3047 = vcombine.high %v3013, %v3029
        %v3049 = vunpack.c.l.s4 1934713408
        %v3050 = vunpack.c.0.s8 %v3049
        %v3051 = vlaneseq
        %v3052 = vshrl.u32 %v3051, 7
        %v3053 = vsub.s32 %v3050, %v3052
        %v3054 = vrot.slane %v3046, %v3053
        %v3056 = vunpack.c.l.s4 1934713408
        %v3057 = vunpack.c.0.s8 %v3056
        %v3058 = vlaneseq
        %v3059 = vshrl.u32 %v3058, 7
        %v3060 = vsub.s32 %v3057, %v3059
        %v3061 = vrot.slane %v3047, %v3060
        %v3062 = vcombine.high %v3038, 0.0
        %v3063 = vcombine.high %v3045, 0.0
        %v3064 = vcombine.high %v3054, 0.0
        %v3065 = vcombine.high %v3061, 0.0
        %v3066 = vcombine.low %v3038, %v3045
        %v3068 = vunpack.c.l.s4 1983009808
        %v3069 = vunpack.c.0.s8 %v3068
        %v3070 = vlaneseq
        %v3071 = vshrl.u32 %v3070, 7
        %v3072 = vsub.s32 %v3069, %v3071
        %v3073 = vrot.slane %v3066, %v3072
        %v3074 = vcombine.low %v3062, %v3063
        %v3076 = vunpack.c.l.s4 1983009808
        %v3077 = vunpack.c.0.s8 %v3076
        %v3078 = vlaneseq
        %v3079 = vshrl.u32 %v3078, 7
        %v3080 = vsub.s32 %v3077, %v3079
        %v3081 = vrot.slane %v3074, %v3080
        %v3082 = vcombine.low %v3054, %v3061
        %v3084 = vunpack.c.l.s4 1983009808
        %v3085 = vunpack.c.0.s8 %v3084
        %v3086 = vlaneseq
        %v3087 = vshrl.u32 %v3086, 7
        %v3088 = vsub.s32 %v3085, %v3087
        %v3089 = vrot.slane %v3082, %v3088
        %v3090 = vcombine.low %v3064, %v3065
        %v3092 = vunpack.c.l.s4 1983009808
        %v3093 = vunpack.c.0.s8 %v3092
        %v3094 = vlaneseq
        %v3095 = vshrl.u32 %v3094, 7
        %v3096 = vsub.s32 %v3093, %v3095
        %v3097 = vrot.slane %v3090, %v3096
        %v3098 = vcombine.low %v3073, %v3081
        %v3099 = vcombine.high %v3073, %v3081
        %v3101 = vunpack.c.l.s4 1934713408
        %v3102 = vunpack.c.0.s8 %v3101
        %v3103 = vlaneseq
        %v3104 = vshrl.u32 %v3103, 7
        %v3105 = vsub.s32 %v3102, %v3104
        %v3106 = vrot.slane %v3098, %v3105
        %v3108 = vunpack.c.l.s4 1934713408
        %v3109 = vunpack.c.0.s8 %v3108
        %v3110 = vlaneseq
        %v3111 = vshrl.u32 %v3110, 7
        %v3112 = vsub.s32 %v3109, %v3111
        %v3113 = vrot.slane %v3099, %v3112
        %v3114 = vcombine.low %v3089, %v3097
        %v3115 = vcombine.high %v3089, %v3097
        %v3117 = vunpack.c.l.s4 1934713408
        %v3118 = vunpack.c.0.s8 %v3117
        %v3119 = vlaneseq
        %v3120 = vshrl.u32 %v3119, 7
        %v3121 = vsub.s32 %v3118, %v3120
        %v3122 = vrot.slane %v3114, %v3121
        %v3124 = vunpack.c.l.s4 1934713408
        %v3125 = vunpack.c.0.s8 %v3124
        %v3126 = vlaneseq
        %v3127 = vshrl.u32 %v3126, 7
        %v3128 = vsub.s32 %v3125, %v3127
        %v3129 = vrot.slane %v3115, %v3128
        %v3130 = vcombine.low %v3106, %v3122
        %v3131 = vcombine.high %v3106, %v3122
        %v3132 = vcombine.low %v3113, %v3129
        %v3133 = vcombine.high %v3113, %v3129
        %3135 = vrot.lane.b32.xlu0 %v3131, 12
        %v3136 = vpop.permute.xlu0 %3135
        %3139 = vrot.lane.b32.xlu0 %v3132, 24
        %v3140 = vpop.permute.xlu0 %3139
        %3143 = vrot.lane.b32.xlu0 %v3133, 36
        %v3144 = vpop.permute.xlu0 %3143
        %v3146 = vsel %vm2953, %v3130, %v3136
        %v3147 = vsel %vm1568, %v3146, %v3140
        %vm3148 = vcmask 293888
        %v3149 = vsel %vm3148, %v3147, %v3144
        %vm3150 = vcmask 392192
        %3151 = vst.msk [vmem:[%s582] sm:$0xff] %vm3150, %v3149
        %v3152 = vpack.c.bf16 %v2991, %v2991
        %v3153 = vpack.c.bf16 %v2993, %v2993
        %v3154 = vpack.c.bf16 %v2995, %v2995
        %v3155 = vpack.c.bf16 %v2997, %v2997
        %v3157 = vsel %vm2953, %v3152, 0
        %vm3159 = vcmask 1045504
        %v3161 = vsel %vm3159, %v2744, 0
        %3163 = vmatprep.subr.bf16.mxu0 0
        %3164 = vmatpush1.bf16.msra.mxu0 0
        %3165 = vmatprep.subr.bf16.mxu0 0
        %3166 = vmatpush1.bf16.msra.mxu0 0
        %3167 = vmatprep.subr.bf16.mxu0 0
        %3168 = vmatpush1.bf16.msra.mxu0 0
        %3169 = vmatprep.subr.bf16.mxu0 0
        %3170 = vmatpush1.bf16.msra.mxu0 0
        %3171 = vmatprep.subr.bf16.mxu0 0
        %3172 = vmatpush1.bf16.msra.mxu0 0
        %3173 = vmatprep.subr.bf16.mxu0 0
        %3174 = vmatpush1.bf16.msra.mxu0 0
        %3175 = vmatprep.subr.bf16.mxu0 0
        %3176 = vmatpush1.bf16.msra.mxu0 0
        %3177 = vmatprep.subr.bf16.mxu0 0
        %3178 = vmatpush1.bf16.msra.mxu0 %v3161
        %3179 = vmatprep.subr.bf16.mxu0 0
        %3180 = vmatpush2.bf16.msra.mxu0 0
        %3181 = vmatprep.subr.bf16.mxu0 0
        %3182 = vmatpush2.bf16.msra.mxu0 0
        %3183 = vmatprep.subr.bf16.mxu0 0
        %3184 = vmatpush2.bf16.msra.mxu0 0
        %3185 = vmatprep.subr.bf16.mxu0 0
        %3186 = vmatpush2.bf16.msra.mxu0 0
        %3187 = vmatprep.subr.bf16.mxu0 0
        %3188 = vmatpush2.bf16.msra.mxu0 0
        %3189 = vmatprep.subr.bf16.mxu0 0
        %3190 = vmatpush2.bf16.msra.mxu0 0
        %3191 = vmatprep.subr.bf16.mxu0 0
        %3192 = vmatpush2.bf16.msra.mxu0 0
        %3193 = vmatprep.subr.bf16.mxu0 0
        %3194 = vmatpush2.bf16.msra.mxu0 0
        %3195 = vmatprep.mubr.bf16.mxu0 0
        %3196 = vmatmul.mubr.bf16.gmra.mxu0 %v3157
        %v3197 = vpop.f32.mrf.mxu0
        %v3198 = vadd.f32 0.0, %v3197
        %v3199 = vpop.f32.mrf.mxu0
        %v3200 = vpop.f32.mrf.mxu0
        %v3201 = vpop.f32.mrf.mxu0
        %3202 = vdwg.mxu0
        %v3204 = vsel %vm2953, %v3153, 0
        %v3207 = vsel %vm3159, %v2747, 0
        %3209 = vmatprep.subr.bf16.mxu0 0
        %3210 = vmatpush1.bf16.msra.mxu0 0
        %3211 = vmatprep.subr.bf16.mxu0 0
        %3212 = vmatpush1.bf16.msra.mxu0 0
        %3213 = vmatprep.subr.bf16.mxu0 0
        %3214 = vmatpush1.bf16.msra.mxu0 0
        %3215 = vmatprep.subr.bf16.mxu0 0
        %3216 = vmatpush1.bf16.msra.mxu0 0
        %3217 = vmatprep.subr.bf16.mxu0 0
        %3218 = vmatpush1.bf16.msra.mxu0 0
        %3219 = vmatprep.subr.bf16.mxu0 0
        %3220 = vmatpush1.bf16.msra.mxu0 0
        %3221 = vmatprep.subr.bf16.mxu0 0
        %3222 = vmatpush1.bf16.msra.mxu0 0
        %3223 = vmatprep.subr.bf16.mxu0 0
        %3224 = vmatpush1.bf16.msra.mxu0 %v3207
        %3225 = vmatprep.subr.bf16.mxu0 0
        %3226 = vmatpush2.bf16.msra.mxu0 0
        %3227 = vmatprep.subr.bf16.mxu0 0
        %3228 = vmatpush2.bf16.msra.mxu0 0
        %3229 = vmatprep.subr.bf16.mxu0 0
        %3230 = vmatpush2.bf16.msra.mxu0 0
        %3231 = vmatprep.subr.bf16.mxu0 0
        %3232 = vmatpush2.bf16.msra.mxu0 0
        %3233 = vmatprep.subr.bf16.mxu0 0
        %3234 = vmatpush2.bf16.msra.mxu0 0
        %3235 = vmatprep.subr.bf16.mxu0 0
        %3236 = vmatpush2.bf16.msra.mxu0 0
        %3237 = vmatprep.subr.bf16.mxu0 0
        %3238 = vmatpush2.bf16.msra.mxu0 0
        %3239 = vmatprep.subr.bf16.mxu0 0
        %3240 = vmatpush2.bf16.msra.mxu0 0
        %3241 = vmatprep.mubr.bf16.mxu0 0
        %3242 = vmatmul.mubr.bf16.gmra.mxu0 %v3204
        %v3243 = vpop.f32.mrf.mxu0
        %v3244 = vadd.f32 0.0, %v3243
        %v3245 = vpop.f32.mrf.mxu0
        %v3246 = vpop.f32.mrf.mxu0
        %v3247 = vpop.f32.mrf.mxu0
        %3248 = vdwg.mxu0
        %v3250 = vsel %vm2953, %v3154, 0
        %v3253 = vsel %vm3159, %v2750, 0
        %3255 = vmatprep.subr.bf16.mxu0 0
        %3256 = vmatpush1.bf16.msra.mxu0 0
        %3257 = vmatprep.subr.bf16.mxu0 0
        %3258 = vmatpush1.bf16.msra.mxu0 0
        %3259 = vmatprep.subr.bf16.mxu0 0
        %3260 = vmatpush1.bf16.msra.mxu0 0
        %3261 = vmatprep.subr.bf16.mxu0 0
        %3262 = vmatpush1.bf16.msra.mxu0 0
        %3263 = vmatprep.subr.bf16.mxu0 0
        %3264 = vmatpush1.bf16.msra.mxu0 0
        %3265 = vmatprep.subr.bf16.mxu0 0
        %3266 = vmatpush1.bf16.msra.mxu0 0
        %3267 = vmatprep.subr.bf16.mxu0 0
        %3268 = vmatpush1.bf16.msra.mxu0 0
        %3269 = vmatprep.subr.bf16.mxu0 0
        %3270 = vmatpush1.bf16.msra.mxu0 %v3253
        %3271 = vmatprep.subr.bf16.mxu0 0
        %3272 = vmatpush2.bf16.msra.mxu0 0
        %3273 = vmatprep.subr.bf16.mxu0 0
        %3274 = vmatpush2.bf16.msra.mxu0 0
        %3275 = vmatprep.subr.bf16.mxu0 0
        %3276 = vmatpush2.bf16.msra.mxu0 0
        %3277 = vmatprep.subr.bf16.mxu0 0
        %3278 = vmatpush2.bf16.msra.mxu0 0
        %3279 = vmatprep.subr.bf16.mxu0 0
        %3280 = vmatpush2.bf16.msra.mxu0 0
        %3281 = vmatprep.subr.bf16.mxu0 0
        %3282 = vmatpush2.bf16.msra.mxu0 0
        %3283 = vmatprep.subr.bf16.mxu0 0
        %3284 = vmatpush2.bf16.msra.mxu0 0
        %3285 = vmatprep.subr.bf16.mxu0 0
        %3286 = vmatpush2.bf16.msra.mxu0 0
        %3287 = vmatprep.mubr.bf16.mxu0 0
        %3288 = vmatmul.mubr.bf16.gmra.mxu0 %v3250
        %v3289 = vpop.f32.mrf.mxu0
        %v3290 = vadd.f32 0.0, %v3289
        %v3291 = vpop.f32.mrf.mxu0
        %v3292 = vpop.f32.mrf.mxu0
        %v3293 = vpop.f32.mrf.mxu0
        %3294 = vdwg.mxu0
        %v3296 = vsel %vm2953, %v3155, 0
        %v3299 = vsel %vm3159, %v2753, 0
        %3301 = vmatprep.subr.bf16.mxu0 0
        %3302 = vmatpush1.bf16.msra.mxu0 0
        %3303 = vmatprep.subr.bf16.mxu0 0
        %3304 = vmatpush1.bf16.msra.mxu0 0
        %3305 = vmatprep.subr.bf16.mxu0 0
        %3306 = vmatpush1.bf16.msra.mxu0 0
        %3307 = vmatprep.subr.bf16.mxu0 0
        %3308 = vmatpush1.bf16.msra.mxu0 0
        %3309 = vmatprep.subr.bf16.mxu0 0
        %3310 = vmatpush1.bf16.msra.mxu0 0
        %3311 = vmatprep.subr.bf16.mxu0 0
        %3312 = vmatpush1.bf16.msra.mxu0 0
        %3313 = vmatprep.subr.bf16.mxu0 0
        %3314 = vmatpush1.bf16.msra.mxu0 0
        %3315 = vmatprep.subr.bf16.mxu0 0
        %3316 = vmatpush1.bf16.msra.mxu0 %v3299
        %3317 = vmatprep.subr.bf16.mxu0 0
        %3318 = vmatpush2.bf16.msra.mxu0 0
        %3319 = vmatprep.subr.bf16.mxu0 0
        %3320 = vmatpush2.bf16.msra.mxu0 0
        %3321 = vmatprep.subr.bf16.mxu0 0
        %3322 = vmatpush2.bf16.msra.mxu0 0
        %3323 = vmatprep.subr.bf16.mxu0 0
        %3324 = vmatpush2.bf16.msra.mxu0 0
        %3325 = vmatprep.subr.bf16.mxu0 0
        %3326 = vmatpush2.bf16.msra.mxu0 0
        %3327 = vmatprep.subr.bf16.mxu0 0
        %3328 = vmatpush2.bf16.msra.mxu0 0
        %3329 = vmatprep.subr.bf16.mxu0 0
        %3330 = vmatpush2.bf16.msra.mxu0 0
        %3331 = vmatprep.subr.bf16.mxu0 0
        %3332 = vmatpush2.bf16.msra.mxu0 0
        %3333 = vmatprep.mubr.bf16.mxu0 0
        %3334 = vmatmul.mubr.bf16.gmra.mxu0 %v3296
        %v3335 = vpop.f32.mrf.mxu0
        %v3336 = vadd.f32 0.0, %v3335
        %v3337 = vpop.f32.mrf.mxu0
        %v3338 = vpop.f32.mrf.mxu0
        %v3339 = vpop.f32.mrf.mxu0
        %3340 = vdwg.mxu0
        %v3341 = vcombine.low %v3198, %v3290
        %v3342 = vcombine.high %v3198, %v3290
        %v3344 = vunpack.c.l.s4 1983009808
        %v3345 = vunpack.c.0.s8 %v3344
        %v3346 = vlaneseq
        %v3347 = vshrl.u32 %v3346, 7
        %v3348 = vsub.s32 %v3345, %v3347
        %v3349 = vrot.slane %v3341, %v3348
        %v3351 = vunpack.c.l.s4 1983009808
        %v3352 = vunpack.c.0.s8 %v3351
        %v3353 = vlaneseq
        %v3354 = vshrl.u32 %v3353, 7
        %v3355 = vsub.s32 %v3352, %v3354
        %v3356 = vrot.slane %v3342, %v3355
        %v3357 = vcombine.low %v3244, %v3336
        %v3358 = vcombine.high %v3244, %v3336
        %v3360 = vunpack.c.l.s4 1983009808
        %v3361 = vunpack.c.0.s8 %v3360
        %v3362 = vlaneseq
        %v3363 = vshrl.u32 %v3362, 7
        %v3364 = vsub.s32 %v3361, %v3363
        %v3365 = vrot.slane %v3357, %v3364
        %v3367 = vunpack.c.l.s4 1983009808
        %v3368 = vunpack.c.0.s8 %v3367
        %v3369 = vlaneseq
        %v3370 = vshrl.u32 %v3369, 7
        %v3371 = vsub.s32 %v3368, %v3370
        %v3372 = vrot.slane %v3358, %v3371
        %v3373 = vcombine.low %v3349, %v3365
        %v3374 = vcombine.high %v3349, %v3365
        %v3376 = vunpack.c.l.s4 1934713408
        %v3377 = vunpack.c.0.s8 %v3376
        %v3378 = vlaneseq
        %v3379 = vshrl.u32 %v3378, 7
        %v3380 = vsub.s32 %v3377, %v3379
        %v3381 = vrot.slane %v3373, %v3380
        %v3383 = vunpack.c.l.s4 1934713408
        %v3384 = vunpack.c.0.s8 %v3383
        %v3385 = vlaneseq
        %v3386 = vshrl.u32 %v3385, 7
        %v3387 = vsub.s32 %v3384, %v3386
        %v3388 = vrot.slane %v3374, %v3387
        %v3389 = vcombine.low %v3356, %v3372
        %v3390 = vcombine.high %v3356, %v3372
        %v3392 = vunpack.c.l.s4 1934713408
        %v3393 = vunpack.c.0.s8 %v3392
        %v3394 = vlaneseq
        %v3395 = vshrl.u32 %v3394, 7
        %v3396 = vsub.s32 %v3393, %v3395
        %v3397 = vrot.slane %v3389, %v3396
        %v3399 = vunpack.c.l.s4 1934713408
        %v3400 = vunpack.c.0.s8 %v3399
        %v3401 = vlaneseq
        %v3402 = vshrl.u32 %v3401, 7
        %v3403 = vsub.s32 %v3400, %v3402
        %v3404 = vrot.slane %v3390, %v3403
        %v3405 = vcombine.high %v3381, 0.0
        %v3406 = vcombine.high %v3388, 0.0
        %v3407 = vcombine.high %v3397, 0.0
        %v3408 = vcombine.high %v3404, 0.0
        %v3409 = vcombine.low %v3381, %v3388
        %v3411 = vunpack.c.l.s4 1983009808
        %v3412 = vunpack.c.0.s8 %v3411
        %v3413 = vlaneseq
        %v3414 = vshrl.u32 %v3413, 7
        %v3415 = vsub.s32 %v3412, %v3414
        %v3416 = vrot.slane %v3409, %v3415
        %v3417 = vcombine.low %v3405, %v3406
        %v3419 = vunpack.c.l.s4 1983009808
        %v3420 = vunpack.c.0.s8 %v3419
        %v3421 = vlaneseq
        %v3422 = vshrl.u32 %v3421, 7
        %v3423 = vsub.s32 %v3420, %v3422
        %v3424 = vrot.slane %v3417, %v3423
        %v3425 = vcombine.low %v3397, %v3404
        %v3427 = vunpack.c.l.s4 1983009808
        %v3428 = vunpack.c.0.s8 %v3427
        %v3429 = vlaneseq
        %v3430 = vshrl.u32 %v3429, 7
        %v3431 = vsub.s32 %v3428, %v3430
        %v3432 = vrot.slane %v3425, %v3431
        %v3433 = vcombine.low %v3407, %v3408
        %v3435 = vunpack.c.l.s4 1983009808
        %v3436 = vunpack.c.0.s8 %v3435
        %v3437 = vlaneseq
        %v3438 = vshrl.u32 %v3437, 7
        %v3439 = vsub.s32 %v3436, %v3438
        %v3440 = vrot.slane %v3433, %v3439
        %v3441 = vcombine.low %v3416, %v3424
        %v3442 = vcombine.high %v3416, %v3424
        %v3444 = vunpack.c.l.s4 1934713408
        %v3445 = vunpack.c.0.s8 %v3444
        %v3446 = vlaneseq
        %v3447 = vshrl.u32 %v3446, 7
        %v3448 = vsub.s32 %v3445, %v3447
        %v3449 = vrot.slane %v3441, %v3448
        %v3451 = vunpack.c.l.s4 1934713408
        %v3452 = vunpack.c.0.s8 %v3451
        %v3453 = vlaneseq
        %v3454 = vshrl.u32 %v3453, 7
        %v3455 = vsub.s32 %v3452, %v3454
        %v3456 = vrot.slane %v3442, %v3455
        %v3457 = vcombine.low %v3432, %v3440
        %v3458 = vcombine.high %v3432, %v3440
        %v3460 = vunpack.c.l.s4 1934713408
        %v3461 = vunpack.c.0.s8 %v3460
        %v3462 = vlaneseq
        %v3463 = vshrl.u32 %v3462, 7
        %v3464 = vsub.s32 %v3461, %v3463
        %v3465 = vrot.slane %v3457, %v3464
        %v3467 = vunpack.c.l.s4 1934713408
        %v3468 = vunpack.c.0.s8 %v3467
        %v3469 = vlaneseq
        %v3470 = vshrl.u32 %v3469, 7
        %v3471 = vsub.s32 %v3468, %v3470
        %v3472 = vrot.slane %v3458, %v3471
        %v3473 = vcombine.low %v3449, %v3465
        %v3474 = vcombine.high %v3449, %v3465
        %v3475 = vcombine.low %v3456, %v3472
        %v3476 = vcombine.high %v3456, %v3472
        %3478 = vrot.lane.b32.xlu0 %v3474, 8
        %v3479 = vpop.permute.xlu0 %3478
        %3482 = vrot.lane.b32.xlu0 %v3475, 16
        %v3483 = vpop.permute.xlu0 %3482
        %3486 = vrot.lane.b32.xlu0 %v3476, 24
        %v3487 = vpop.permute.xlu0 %3486
        %v3489 = vsel %vm1177, %v3473, %v3479
        %v3490 = vsel %vm1566, %v3489, %v3483
        %v3491 = vsel %vm1568, %v3490, %v3487
        %v3492 = vld [vmem:[#allocation5] sm:$0xf]
        %v3493 = vld [vmem:[#allocation5 + $0x4] sm:$0xf]
        %v3494 = vld [vmem:[#allocation5 + $0x8] sm:$0xf]
        %v3495 = vld [vmem:[#allocation5 + $0xc] sm:$0xf]
        %v3496 = vld [vmem:[#allocation8 + $0x4] sm:$0x1]
        %v3497 = vpack.c.bf16 %v3491, %v3491
        %v3498 = vlaneseq
        %v3499 = vshrl.u32 %v3498, 7
        %v3500 = vsub.s32 0, %v3499
        %v3501 = vrot.slane %v3496, %v3500
        %v3506 = vunpack.c.l.b16 %v3492
        %v3507 = vunpack.c.l.b16 %v3493
        %v3508 = vunpack.c.l.b16 %v3494
        %v3509 = vunpack.c.l.b16 %v3495
        %v3510 = vpack.c.b16 %v3507, %v3506
        %v3511 = vpack.c.b16 %v3509, %v3508
        %v3515 = vsel %vm624, %v3497, 0
        %3517 = vmatprep.subr.bf16.mxu0 0
        %3518 = vmatpush1.bf16.msra.mxu0 0
        %3519 = vmatprep.subr.bf16.mxu0 0
        %3520 = vmatpush1.bf16.msra.mxu0 0
        %3521 = vmatprep.subr.bf16.mxu0 0
        %3522 = vmatpush1.bf16.msra.mxu0 0
        %3523 = vmatprep.subr.bf16.mxu0 0
        %3524 = vmatpush1.bf16.msra.mxu0 0
        %3525 = vmatprep.subr.bf16.mxu0 0
        %3526 = vmatpush1.bf16.msra.mxu0 0
        %3527 = vmatprep.subr.bf16.mxu0 0
        %3528 = vmatpush1.bf16.msra.mxu0 0
        %3529 = vmatprep.subr.bf16.mxu0 0
        %3530 = vmatpush1.bf16.msra.mxu0 %v3511
        %3531 = vmatprep.subr.bf16.mxu0 0
        %3532 = vmatpush1.bf16.msra.mxu0 %v3510
        %3533 = vmatprep.subr.bf16.mxu0 0
        %3534 = vmatpush2.bf16.msra.mxu0 0
        %3535 = vmatprep.subr.bf16.mxu0 0
        %3536 = vmatpush2.bf16.msra.mxu0 0
        %3537 = vmatprep.subr.bf16.mxu0 0
        %3538 = vmatpush2.bf16.msra.mxu0 0
        %3539 = vmatprep.subr.bf16.mxu0 0
        %3540 = vmatpush2.bf16.msra.mxu0 0
        %3541 = vmatprep.subr.bf16.mxu0 0
        %3542 = vmatpush2.bf16.msra.mxu0 0
        %3543 = vmatprep.subr.bf16.mxu0 0
        %3544 = vmatpush2.bf16.msra.mxu0 0
        %3545 = vmatprep.subr.bf16.mxu0 0
        %3546 = vmatpush2.bf16.msra.mxu0 0
        %3547 = vmatprep.subr.bf16.mxu0 0
        %3548 = vmatpush2.bf16.msra.mxu0 0
        %3549 = vmatprep.mubr.bf16.mxu0 0
        %3550 = vmatmul.mubr.bf16.gmra.mxu0 %v3515
        %v3551 = vpop.f32.mrf.mxu0
        %v3552 = vadd.f32 %v3501, %v3551
        %v3553 = vpop.f32.mrf.mxu0
        %v3554 = vpop.f32.mrf.mxu0
        %v3555 = vpop.f32.mrf.mxu0
        %3556 = vdwg.mxu0
        %v3557 = vadd.f32 %v2002, %v3552
        %v3558 = vld [vmem:[#allocation8 + $0x9] sm:$0x1]
        %v3559 = vld [vmem:[#allocation8 + $0xa] sm:$0x1]
        %v3560 = vsel %vm624, %v3557, 0.0
        %3561 = vadd.xlane.f32.xlu0 %v3560
        %v3562 = vpop.xlane.xlu0 %3561
        %v3563 = vmul.f32 %v3562, %v1982
        %v3564 = vsub.f32 %v3557, %v3563
        %v3565 = vmul.f32 %v3564, %v3564
        %v3566 = vsel %vm624, %v3565, 0.0
        %3567 = vadd.xlane.f32.xlu0 %v3566
        %v3568 = vpop.xlane.xlu0 %3567
        %v3569 = vmul.f32 %v3568, %v1982
        %v3570 = vadd.f32 %v3569, 1e-05
        %v3571 = vrsqrt.pop %v3570
        %v3572 = vmul.f32 %v3564, %v3571
        %v3573 = vlaneseq
        %v3574 = vshrl.u32 %v3573, 7
        %v3575 = vsub.s32 0, %v3574
        %v3576 = vrot.slane %v3558, %v3575
        %v3577 = vmul.f32 %v3572, %v3576
        %v3578 = vlaneseq
        %v3579 = vshrl.u32 %v3578, 7
        %v3580 = vsub.s32 0, %v3579
        %v3581 = vrot.slane %v3559, %v3580
        %v3582 = vadd.f32 %v3577, %v3581
        %v3583 = vld [vmem:[#allocation7] sm:$0xf]
        %v3584 = vld [vmem:[#allocation7 + $0x4] sm:$0xf]
        %v3585 = vld [vmem:[#allocation7 + $0x8] sm:$0xf]
        %v3586 = vld [vmem:[#allocation7 + $0xc] sm:$0xf]
        %v3587 = vld [vmem:[#allocation8 + $0x5] sm:$0x1]
        %v3588 = vpack.c.bf16 %v3582, %v3582
        %v3589 = vlaneseq
        %v3590 = vshrl.u32 %v3589, 7
        %v3591 = vsub.s32 0, %v3590
        %v3592 = vrot.slane %v3587, %v3591
        %v3597 = vunpack.c.l.b16 %v3583
        %v3598 = vunpack.c.l.b16 %v3584
        %v3599 = vunpack.c.l.b16 %v3585
        %v3600 = vunpack.c.l.b16 %v3586
        %v3601 = vpack.c.b16 %v3598, %v3597
        %v3602 = vpack.c.b16 %v3600, %v3599
        %v3606 = vsel %vm624, %v3588, 0
        %3608 = vmatprep.subr.bf16.mxu0 0
        %3609 = vmatpush1.bf16.msra.mxu0 0
        %3610 = vmatprep.subr.bf16.mxu0 0
        %3611 = vmatpush1.bf16.msra.mxu0 0
        %3612 = vmatprep.subr.bf16.mxu0 0
        %3613 = vmatpush1.bf16.msra.mxu0 0
        %3614 = vmatprep.subr.bf16.mxu0 0
        %3615 = vmatpush1.bf16.msra.mxu0 0
        %3616 = vmatprep.subr.bf16.mxu0 0
        %3617 = vmatpush1.bf16.msra.mxu0 0
        %3618 = vmatprep.subr.bf16.mxu0 0
        %3619 = vmatpush1.bf16.msra.mxu0 0
        %3620 = vmatprep.subr.bf16.mxu0 0
        %3621 = vmatpush1.bf16.msra.mxu0 %v3602
        %3622 = vmatprep.subr.bf16.mxu0 0
        %3623 = vmatpush1.bf16.msra.mxu0 %v3601
        %3624 = vmatprep.subr.bf16.mxu0 0
        %3625 = vmatpush2.bf16.msra.mxu0 0
        %3626 = vmatprep.subr.bf16.mxu0 0
        %3627 = vmatpush2.bf16.msra.mxu0 0
        %3628 = vmatprep.subr.bf16.mxu0 0
        %3629 = vmatpush2.bf16.msra.mxu0 0
        %3630 = vmatprep.subr.bf16.mxu0 0
        %3631 = vmatpush2.bf16.msra.mxu0 0
        %3632 = vmatprep.subr.bf16.mxu0 0
        %3633 = vmatpush2.bf16.msra.mxu0 0
        %3634 = vmatprep.subr.bf16.mxu0 0
        %3635 = vmatpush2.bf16.msra.mxu0 0
        %3636 = vmatprep.subr.bf16.mxu0 0
        %3637 = vmatpush2.bf16.msra.mxu0 0
        %3638 = vmatprep.subr.bf16.mxu0 0
        %3639 = vmatpush2.bf16.msra.mxu0 0
        %3640 = vmatprep.mubr.bf16.mxu0 0
        %3641 = vmatmul.mubr.bf16.gmra.mxu0 %v3606
        %v3642 = vpop.f32.mrf.mxu0
        %v3643 = vadd.f32 %v3592, %v3642
        %v3644 = vpop.f32.mrf.mxu0
        %v3645 = vpop.f32.mrf.mxu0
        %v3646 = vpop.f32.mrf.mxu0
        %3647 = vdwg.mxu0
        %v3648 = vmax.f32 %v3643, 0.0
        %v3649 = vld [vmem:[%s10] sm:$0xf]
        %v3650 = vld [vmem:[%s10 + $0x4] sm:$0xf]
        %v3651 = vld [vmem:[%s10 + $0x8] sm:$0xf]
        %v3652 = vld [vmem:[%s10 + $0xc] sm:$0xf]
        %v3653 = vld [vmem:[%s10 + $0x10] sm:$0xf]
        %v3654 = vld [vmem:[%s10 + $0x14] sm:$0xf]
        %v3655 = vld [vmem:[%s10 + $0x18] sm:$0xf]
        %v3656 = vld [vmem:[%s10 + $0x1c] sm:$0xf]
        %v3657 = vld [vmem:[#allocation8 + $0x6] sm:$0x1]
        %v3658 = vpack.c.bf16 %v3648, %v3648
        %v3659 = vlaneseq
        %v3660 = vshrl.u32 %v3659, 7
        %v3661 = vsub.s32 0, %v3660
        %v3662 = vrot.slane %v3657, %v3661
        %v3671 = vunpack.c.l.b16 %v3649
        %v3672 = vunpack.c.l.b16 %v3650
        %v3673 = vunpack.c.l.b16 %v3651
        %v3674 = vunpack.c.l.b16 %v3652
        %v3675 = vunpack.c.l.b16 %v3653
        %v3676 = vunpack.c.l.b16 %v3654
        %v3677 = vunpack.c.l.b16 %v3655
        %v3678 = vunpack.c.l.b16 %v3656
        %v3679 = vpack.c.b16 %v3672, %v3671
        %v3680 = vpack.c.b16 %v3674, %v3673
        %v3681 = vpack.c.b16 %v3676, %v3675
        %v3682 = vpack.c.b16 %v3678, %v3677
        %vm3687 = vcmask 523264
        %v3689 = vsel %vm3687, %v3658, 0
        %3691 = vmatprep.subr.bf16.mxu0 0
        %3692 = vmatpush1.bf16.msra.mxu0 0
        %3693 = vmatprep.subr.bf16.mxu0 0
        %3694 = vmatpush1.bf16.msra.mxu0 0
        %3695 = vmatprep.subr.bf16.mxu0 0
        %3696 = vmatpush1.bf16.msra.mxu0 0
        %3697 = vmatprep.subr.bf16.mxu0 0
        %3698 = vmatpush1.bf16.msra.mxu0 0
        %3699 = vmatprep.subr.bf16.mxu0 0
        %3700 = vmatpush1.bf16.msra.mxu0 %v3682
        %3701 = vmatprep.subr.bf16.mxu0 0
        %3702 = vmatpush1.bf16.msra.mxu0 %v3681
        %3703 = vmatprep.subr.bf16.mxu0 0
        %3704 = vmatpush1.bf16.msra.mxu0 %v3680
        %3705 = vmatprep.subr.bf16.mxu0 0
        %3706 = vmatpush1.bf16.msra.mxu0 %v3679
        %3707 = vmatprep.subr.bf16.mxu0 0
        %3708 = vmatpush2.bf16.msra.mxu0 0
        %3709 = vmatprep.subr.bf16.mxu0 0
        %3710 = vmatpush2.bf16.msra.mxu0 0
        %3711 = vmatprep.subr.bf16.mxu0 0
        %3712 = vmatpush2.bf16.msra.mxu0 0
        %3713 = vmatprep.subr.bf16.mxu0 0
        %3714 = vmatpush2.bf16.msra.mxu0 0
        %3715 = vmatprep.subr.bf16.mxu0 0
        %3716 = vmatpush2.bf16.msra.mxu0 0
        %3717 = vmatprep.subr.bf16.mxu0 0
        %3718 = vmatpush2.bf16.msra.mxu0 0
        %3719 = vmatprep.subr.bf16.mxu0 0
        %3720 = vmatpush2.bf16.msra.mxu0 0
        %3721 = vmatprep.subr.bf16.mxu0 0
        %3722 = vmatpush2.bf16.msra.mxu0 0
        %3723 = vmatprep.mubr.bf16.mxu0 0
        %3724 = vmatmul.mubr.bf16.gmra.mxu0 %v3689
        %v3725 = vpop.f32.mrf.mxu0
        %v3726 = vadd.f32 %v3662, %v3725
        %v3727 = vpop.f32.mrf.mxu0
        %v3728 = vpop.f32.mrf.mxu0
        %v3729 = vpop.f32.mrf.mxu0
        %3730 = vdwg.mxu0
        %v3731 = vadd.f32 %v3582, %v3726
        %v3732 = vld [vmem:[#allocation8 + $0xb] sm:$0x1]
        %v3733 = vld [vmem:[#allocation8 + $0xc] sm:$0x1]
        %v3734 = vsel %vm624, %v3731, 0.0
        %3735 = vadd.xlane.f32.xlu0 %v3734
        %v3736 = vpop.xlane.xlu0 %3735
        %v3737 = vmul.f32 %v3736, %v1982
        %v3738 = vsub.f32 %v3731, %v3737
        %v3739 = vmul.f32 %v3738, %v3738
        %v3740 = vsel %vm624, %v3739, 0.0
        %3741 = vadd.xlane.f32.xlu0 %v3740
        %v3742 = vpop.xlane.xlu0 %3741
        %v3743 = vmul.f32 %v3742, %v1982
        %v3744 = vadd.f32 %v3743, 1e-05
        %v3745 = vrsqrt.pop %v3744
        %v3746 = vmul.f32 %v3738, %v3745
        %v3747 = vlaneseq
        %v3748 = vshrl.u32 %v3747, 7
        %v3749 = vsub.s32 0, %v3748
        %v3750 = vrot.slane %v3732, %v3749
        %v3751 = vmul.f32 %v3746, %v3750
        %v3752 = vlaneseq
        %v3753 = vshrl.u32 %v3752, 7
        %v3754 = vsub.s32 0, %v3753
        %v3755 = vrot.slane %v3733, %v3754
        %v3756 = vadd.f32 %v3751, %v3755
        %3757 = vst.msk [vmem:[%s568] sm:$0xff] %vm624, %v3756
        %s3758 = sand.u32 %s317, 1
        %s3759 = scalar_lea.sflag [#allocation4], %s3758
        %s3760 = sand.u32 %s317, 1
        %s3761 = smul.addr %s3760, 8
        %s3762 = scalar_lea.vmem [#allocation10], %s3761
        %s3763 = sand.u32 %s37, 1
        %s3764 = scalar_lea.sflag [#allocation12], %s3763
        %s3765 = sand.u32 %s343, 1
        %s3766 = smul.addr %s3765, 8
        %s3767 = scalar_lea.vmem [#allocation11], %s3766
        %s3768 = sand.u32 %s37, 1
        %s3769 = scalar_lea.sflag [#allocation12], %s3768
        %s3770 = sand.u32 %s369, 1
        %s3771 = smul.addr %s3770, 8
        %s3772 = scalar_lea.vmem [#allocation13], %s3771
        // Predicated region
        $region85: #{tpu_custom_call.1} parent=67 // pred_check
          %p3773 = pneg %p327
        $region86: #{tpu_custom_call.1} parent=67 // pred_check_branch
          %3775 = sbr.rel (%p3773) target = $region88
        $region87: #{tpu_custom_call.1} parent=67 // pred_region
          %s3777 = ssub.s32 128, 128
          %3778 = vsyncadd %s3759, %s3777
          %s3779 = smul.addr %s37, 128
          %s3780 = scalar_lea.hbm %s12, %s3779
          %s3782 = sshll.u32 %s3762, 4
          %s3783 = int_to_ptr.vmem [resolvable:$true] %s3782
          %3785 = dma.vmem_to_hbm [thread:$0]  %s3783, 128, %s3780, %s3759
        $region88: #{tpu_custom_call.1} parent=67 // pred_fallthru
          _
        // Predicated region
        $region89: #{tpu_custom_call.1} parent=67 // pred_check
          %p3786 = pneg %p353
        $region90: #{tpu_custom_call.1} parent=67 // pred_check_branch
          %3788 = sbr.rel (%p3786) target = $region92
        $region91: #{tpu_custom_call.1} parent=67 // pred_region
          %s3790 = ssub.s32 128, 128
          %3791 = vsyncadd %s3764, %s3790
          %s3792 = smul.addr %s37, 128
          %s3793 = scalar_lea.hbm %s13, %s3792
          %s3795 = sshll.u32 %s3767, 4
          %s3796 = int_to_ptr.vmem [resolvable:$true] %s3795
          %3798 = dma.vmem_to_hbm [thread:$0]  %s3796, 128, %s3793, %s3764
        $region92: #{tpu_custom_call.1} parent=67 // pred_fallthru
          _
        // Predicated region
        $region93: #{tpu_custom_call.1} parent=67 // pred_check
          %p3799 = pneg %p379
        $region94: #{tpu_custom_call.1} parent=67 // pred_check_branch
          %3801 = sbr.rel (%p3799) target = $region96
        $region95: #{tpu_custom_call.1} parent=67 // pred_region
          %s3803 = ssub.s32 128, 128
          %3804 = vsyncadd %s3769, %s3803
          %s3805 = smul.addr %s37, 128
          %s3806 = scalar_lea.hbm %s14, %s3805
          %s3808 = sshll.u32 %s3772, 4
          %s3809 = int_to_ptr.vmem [resolvable:$true] %s3808
          %3811 = dma.vmem_to_hbm [thread:$0]  %s3809, 128, %s3806, %s3769
        $region96: #{tpu_custom_call.1} parent=67 // pred_fallthru
          _
      $region68: #{tpu_custom_call.1} parent=5 // pred_fallthru
        _
      %p3812 = scmp.le.s32.totalorder 2, %s32
      // Predicated region
      $region97: #{tpu_custom_call.1} parent=5 // pred_check
        %p3813 = pneg %p3812
      $region98: #{tpu_custom_call.1} parent=5 // pred_check_branch
        %3815 = sbr.rel (%p3813) target = $region100
      $region99: #{tpu_custom_call.1} parent=5 // pred_region
        %s3816 = ssub.s32 %s32, 2
        // Predicated region
        $region101: #{tpu_custom_call.1} parent=99 // pred_check
          %p3817 = pneg %p333
        $region102: #{tpu_custom_call.1} parent=99 // pred_check_branch
          %3819 = sbr.rel (%p3817) target = $region104
        $region103: #{tpu_custom_call.1} parent=99 // pred_region
          %s3820 = sand.u32 %s318, 1
          %s3821 = scalar_lea.sflag [#allocation4], %s3820
          %s3822 = sand.u32 %s318, 1
          %s3823 = smul.addr %s3822, 8
          %s3824 = scalar_lea.vmem [#allocation10], %s3823
          %3825 = dma.done %s3821, 128
        $region104: #{tpu_custom_call.1} parent=99 // pred_fallthru
          _
        // Predicated region
        $region105: #{tpu_custom_call.1} parent=99 // pred_check
          %p3826 = pneg %p359
        $region106: #{tpu_custom_call.1} parent=99 // pred_check_branch
          %3828 = sbr.rel (%p3826) target = $region108
        $region107: #{tpu_custom_call.1} parent=99 // pred_region
          %s3829 = sand.u32 %s38, 1
          %s3830 = scalar_lea.sflag [#allocation12], %s3829
          %s3831 = sand.u32 %s344, 1
          %s3832 = smul.addr %s3831, 8
          %s3833 = scalar_lea.vmem [#allocation11], %s3832
          %3834 = dma.done %s3830, 128
        $region108: #{tpu_custom_call.1} parent=99 // pred_fallthru
          _
        // Predicated region
        $region109: #{tpu_custom_call.1} parent=99 // pred_check
          %p3835 = pneg %p385
        $region110: #{tpu_custom_call.1} parent=99 // pred_check_branch
          %3837 = sbr.rel (%p3835) target = $region112
        $region111: #{tpu_custom_call.1} parent=99 // pred_region
          %s3838 = sand.u32 %s38, 1
          %s3839 = scalar_lea.sflag [#allocation12], %s3838
          %s3840 = sand.u32 %s370, 1
          %s3841 = smul.addr %s3840, 8
          %s3842 = scalar_lea.vmem [#allocation13], %s3841
          %3843 = dma.done %s3839, 128
        $region112: #{tpu_custom_call.1} parent=99 // pred_fallthru
          _
      $region100: #{tpu_custom_call.1} parent=5 // pred_fallthru
        _
    $region6: #{tpu_custom_call.1} parent=1 // loop_footer
      %s36 = sadd.s32 1, %s32
    $region7: #{tpu_custom_call.1} parent=1 // loop_footer_branch
      %31 = sbr.rel target = $region3
    $region8: #{tpu_custom_call.1} parent=1 // loop_exit
      _
    %3844 = vsyncpa [#allocation3], 1
    %s3845 = scalar_lea.sflag [#allocation3], 1
    %3846 = vsyncpa %s3845, 1
    %3847 = vsyncpa [#allocation6], 1
    %3848 = vsyncpa [#allocation9], 1
    %3849 = vsyncpa [#allocation4], 1
    %s3850 = scalar_lea.sflag [#allocation4], 1
    %3851 = vsyncpa %s3850, 1
    %3852 = vsyncpa [#allocation12], 1
    %s3853 = scalar_lea.sflag [#allocation12], 1
    %3854 = vsyncpa %s3853, 1

</llo_original>
